<compile_context>
chip_gen: v5e
topology: v5e:2x2
jax: 0.10.0
libtpu: 0.0.40
codegen_flags: <defaults>
</compile_context>

<pallas_src>
import math

import jax
import jax.numpy as jnp
from jax import lax
from jax.experimental import pallas as pl
from jax.experimental.pallas import tpu as pltpu

BN_EPS = 1e-5


# ----------------------------------------------------------------------------
# Small helpers
# ----------------------------------------------------------------------------
def _round_up(x, m):
    return (x + m - 1) // m * m


def _pick_row_tile(ho, cap=8):
    """Largest divisor of `ho` that is <= cap (bounds the VMEM scratch, exact tiling)."""
    for t in range(min(cap, ho), 0, -1):
        if ho % t == 0:
            return t
    return 1


def _ds(start, size, stride):
    return pl.ds(start, size) if stride == 1 else pl.ds(start, size, stride)


# ----------------------------------------------------------------------------
# Fused InvertedResidual kernel
# ----------------------------------------------------------------------------
def _make_block_kernel(H, W, Wp, Wo, TH, stride, cin, hidden, cout, use_res):
    """One fused kernel: expand(1x1) -> dw3x3 -> project(1x1) [+ residual].

    Grid is (batch, output_row_tiles). The expanded activation for the current
    row tile (incl. 1-row halo) is kept in a VMEM scratch, never written to HBM.
    """
    Rt = (TH - 1) * stride + 3        # hidden rows (incl. halo) needed per tile

    def kernel(xp_ref, w1_ref, b1_ref, wd_ref, b2_ref, w3_ref, b3_ref,
               o_ref, hid_ref):
        r = pl.program_id(1)
        row0 = pl.multiple_of(r * (TH * stride), TH * stride)   # padded-row offset

        # ---- 1x1 expand conv + BN + ReLU6 (MXU: bf16 in, f32 accumulate) ----
        xw = xp_ref[pl.ds(row0, Rt), :, :]                       # (Rt, Wp, cin) f32
        xm = xw.reshape(Rt * Wp, cin).astype(jnp.bfloat16)
        h = jnp.dot(xm, w1_ref[...], preferred_element_type=jnp.float32)
        h = jnp.clip(h + b1_ref[...], 0.0, 6.0).reshape(Rt, Wp, hidden)

        # The depthwise conv's zero padding applies to the *expanded* activation,
        # so zero every halo/pad position that lies outside the real image.
        gr = row0 + lax.broadcasted_iota(jnp.int32, (Rt, Wp, 1), 0)
        gc = lax.broadcasted_iota(jnp.int32, (Rt, Wp, 1), 1)
        inside = (gr >= 1) & (gr <= H) & (gc >= 1) & (gc <= W)
        hid_ref[...] = jnp.where(inside, h, 0.0)                 # stays in VMEM

        # ---- depthwise 3x3 + BN + ReLU6 (VPU, f32) ----
        def tap(kh, kw):
            win = hid_ref[_ds(kh, TH, stride), _ds(kw, Wo, stride), :]
            return win * wd_ref[kh * 3 + kw]                     # (TH, Wo, hidden)

        # partial accumulators: break the 9-long serial dependency chain
        acc_a = tap(0, 0) + tap(0, 1)
        acc_b = tap(0, 2) + tap(1, 0)
        acc_c = tap(1, 1) + tap(1, 2)
        acc_d = tap(2, 0) + tap(2, 1)
        y = (acc_a + acc_b) + (acc_c + acc_d) + tap(2, 2)
        y = jnp.clip(y + b2_ref[...], 0.0, 6.0)

        # ---- 1x1 project conv + BN (no activation) + fused residual ----
        ym = y.reshape(TH * Wo, hidden).astype(jnp.bfloat16)
        out = jnp.dot(ym, w3_ref[...], preferred_element_type=jnp.float32)
        out = (out + b3_ref[...]).reshape(TH, Wo, cout)
        if use_res:  # stride == 1 and cin == cout  ->  Wo == W
            out = out + xp_ref[pl.ds(row0 + 1, TH), pl.ds(1, W), :]
        o_ref[...] = out

    return kernel, Rt


def inverted_residual_forward(params, x_nchw):
    """Forward pass of one InvertedResidual block; input/output are NCHW (PyTorch)."""
    cfg = params['cfg']
    stride = cfg['stride']
    cin, hidden, cout = cfg['inp'], cfg['hidden'], cfg['oup']
    use_res = cfg['use_res']

    x = jnp.transpose(x_nchw, (0, 2, 3, 1)).astype(jnp.float32)      # NHWC
    N, H, W, _ = x.shape
    Ho = (H - 1) // stride + 1
    Wo = (W - 1) // stride + 1
    TH = _pick_row_tile(Ho)
    Wp = _round_up(W + 2, 8)        # 1px conv halo + sublane-alignment padding

    # zero-pad once in the wrapper (no 9x im2col duplication)
    xp = jnp.pad(x, ((0, 0), (1, 1), (1, Wp - W - 1), (0, 0)))

    kernel, Rt = _make_block_kernel(H, W, Wp, Wo, TH, stride,
                                    cin, hidden, cout, use_res)

    out = pl.pallas_call(
        kernel,
        out_shape=jax.ShapeDtypeStruct((N, Ho, Wo, cout), jnp.float32),
        grid=(N, Ho // TH),
        in_specs=[
            pl.BlockSpec((None, H + 2, Wp, cin), lambda n, r: (n, 0, 0, 0)),
            pl.BlockSpec((cin, hidden), lambda n, r: (0, 0)),
            pl.BlockSpec((1, hidden), lambda n, r: (0, 0)),
            pl.BlockSpec((9, 1, hidden), lambda n, r: (0, 0, 0)),
            pl.BlockSpec((1, hidden), lambda n, r: (0, 0)),
            pl.BlockSpec((hidden, cout), lambda n, r: (0, 0)),
            pl.BlockSpec((1, cout), lambda n, r: (0, 0)),
        ],
        out_specs=pl.BlockSpec((None, TH, Wo, cout), lambda n, r: (n, r, 0, 0)),
        scratch_shapes=[pltpu.VMEM((Rt, Wp, hidden), jnp.float32)],
        compiler_params=pltpu.CompilerParams(
            dimension_semantics=("parallel", "parallel")),
    )(xp, params['w1'], params['b1'], params['wd'], params['b2'],
      params['w3'], params['b3'])

    return jnp.transpose(out, (0, 3, 1, 2))                           # back to NCHW


# ----------------------------------------------------------------------------
# Parameters: raw (PyTorch-like) + eval-mode BN folding
# ----------------------------------------------------------------------------
def init_inverted_residual(key, inp, oup, stride, expand_ratio):
    assert stride in (1, 2)
    hidden = inp * expand_ratio
    keys = jax.random.split(key, 6)
    w1 = jax.random.normal(keys[0], (inp, hidden), jnp.float32) * math.sqrt(2.0 / inp)
    wd = jax.random.normal(keys[1], (9, hidden), jnp.float32) * math.sqrt(2.0 / 9.0)
    w3 = jax.random.normal(keys[2], (hidden, oup), jnp.float32) * math.sqrt(2.0 / hidden)

    def bn_init(k, c):  # non-trivial eval-mode BN stats to exercise the folding
        kg, kb, km, kv = jax.random.split(k, 4)
        gamma = 1.0 + 0.1 * jax.random.normal(kg, (c,), jnp.float32)
        beta = 0.1 * jax.random.normal(kb, (c,), jnp.float32)
        mean = 0.1 * jax.random.normal(km, (c,), jnp.float32)
        var = 0.5 + jax.random.uniform(kv, (c,), jnp.float32)
        return gamma, beta, mean, var

    return dict(
        w1=w1, wd=wd, w3=w3,
        bn1=bn_init(keys[3], hidden), bn2=bn_init(keys[4], hidden),
        bn3=bn_init(keys[5], oup),
        inp=inp, oup=oup, stride=stride, hidden=hidden,
        use_res=(stride == 1 and inp == oup),
    )


def fold_params(raw):
    """Fold eval-mode BatchNorm into conv weights/biases; bf16 for the MXU weights."""
    def fold(gamma, beta, mean, var):
        scale = gamma / jnp.sqrt(var + BN_EPS)
        return scale, beta - mean * scale

    s1, b1 = fold(*raw['bn1'])
    s2, b2 = fold(*raw['bn2'])
    s3, b3 = fold(*raw['bn3'])
    return dict(
        w1=(raw['w1'] * s1[None, :]).astype(jnp.bfloat16),
        b1=b1.reshape(1, -1),
        wd=(raw['wd'] * s2[None, :]).reshape(9, 1, -1),         # f32 (VPU path)
        b2=b2.reshape(1, -1),
        w3=(raw['w3'] * s3[None, :]).astype(jnp.bfloat16),
        b3=b3.reshape(1, -1),
        cfg=dict(inp=raw['inp'], oup=raw['oup'], stride=raw['stride'],
                 hidden=raw['hidden'], use_res=raw['use_res']),
    )


# ----------------------------------------------------------------------------
# Pure-XLA f32 reference (for a numerical sanity check)
# ----------------------------------------------------------------------------
def reference_forward(raw, x_nchw):
    dn = ('NHWC', 'HWIO', 'NHWC')
    hp = lax.Precision.HIGHEST
    x = jnp.transpose(x_nchw, (0, 2, 3, 1)).astype(jnp.float32)

    def bn(y, p):
        gamma, beta, mean, var = p
        return (y - mean) * (gamma / jnp.sqrt(var + BN_EPS)) + beta

    hidden, s = raw['hidden'], raw['stride']
    h = lax.conv_general_dilated(x, raw['w1'][None, None], (1, 1), 'VALID',
                                 dimension_numbers=dn, precision=hp)
    h = jnp.clip(bn(h, raw['bn1']), 0.0, 6.0)
    h = lax.conv_general_dilated(h, raw['wd'].reshape(3, 3, 1, hidden), (s, s),
                                 ((1, 1), (1, 1)), dimension_numbers=dn,
                                 feature_group_count=hidden, precision=hp)
    h = jnp.clip(bn(h, raw['bn2']), 0.0, 6.0)
    h = lax.conv_general_dilated(h, raw['w3'][None, None], (1, 1), 'VALID',
                                 dimension_numbers=dn, precision=hp)
    h = bn(h, raw['bn3'])
    if raw['use_res']:
        h = h + x
    return jnp.transpose(h, (0, 3, 1, 2))


# ----------------------------------------------------------------------------
# Demo / self-test
# ----------------------------------------------------------------------------
if __name__ == "__main__":
    root = jax.random.PRNGKey(0)
    kp1, kp2, kx = jax.random.split(root, 3)

    BATCH, CIN, SIZE = 2, 16, 16

    # Block 1: stride=1, inp==oup  -> residual path
    raw1 = init_inverted_residual(kp1, inp=CIN, oup=CIN, stride=1, expand_ratio=6)
    # Block 2: stride=2, inp!=oup  -> plain (downsampling) path
    raw2 = init_inverted_residual(kp2, inp=CIN, oup=24, stride=2, expand_ratio=6)

    p1, p2 = fold_params(raw1), fold_params(raw2)
    x = jax.random.normal(kx, (BATCH, CIN, SIZE, SIZE), jnp.float32)

    @jax.jit
    def fwd(inp):
        y = inverted_residual_forward(p1, inp)
        return inverted_residual_forward(p2, y)

    out = jax.block_until_ready(fwd(x))
    assert out.shape == (BATCH, 24, SIZE // 2, SIZE // 2), out.shape

    # numerical check against the f32 XLA reference (bf16 MXU inputs -> loose tol)
    ref = reference_forward(raw2, reference_forward(raw1, x))
    rel_err = jnp.linalg.norm(out - ref) / (jnp.linalg.norm(ref) + 1e-6)
    assert float(rel_err) < 5e-2, f"mismatch: relative L2 error {float(rel_err):.4f}"

    print("KERNEL_OK")
</pallas_src>

<mosaic_0001>
module attributes {stable_mosaic.version = 11 : i64} {
  func.func @kernel(%arg0: i32, %arg1: i32, %arg2: memref<1x18x24x16xf32, #tpu.memory_space<vmem>>, %arg3: memref<16x96xbf16, #tpu.memory_space<vmem>>, %arg4: memref<1x96xf32, #tpu.memory_space<vmem>>, %arg5: memref<9x1x96xf32, #tpu.memory_space<vmem>>, %arg6: memref<1x96xf32, #tpu.memory_space<vmem>>, %arg7: memref<96x24xbf16, #tpu.memory_space<vmem>>, %arg8: memref<1x24xf32, #tpu.memory_space<vmem>>, %arg9: memref<1x8x8x24xf32, #tpu.memory_space<vmem>>, %arg10: memref<17x24x96xf32, #tpu.memory_space<vmem>>) attributes {dimension_semantics = [#tpu.dimension_semantics<parallel>, #tpu.dimension_semantics<parallel>], iteration_bounds = array<i64: 2, 1>, scalar_prefetch = 0 : i64, scratch_operands = 1 : i64, tpu.core_type = #tpu.core_type<tc>, window_params = [{transform_indices = @transform_0, window_bounds = array<i64: 1, 18, 24, 16>}, {pipeline_mode = #tpu.pipeline_mode<synchronous>, transform_indices = @transform_1, window_bounds = array<i64: 16, 96>}, {pipeline_mode = #tpu.pipeline_mode<synchronous>, transform_indices = @transform_2, window_bounds = array<i64: 1, 96>}, {pipeline_mode = #tpu.pipeline_mode<synchronous>, transform_indices = @transform_3, window_bounds = array<i64: 9, 1, 96>}, {pipeline_mode = #tpu.pipeline_mode<synchronous>, transform_indices = @transform_4, window_bounds = array<i64: 1, 96>}, {pipeline_mode = #tpu.pipeline_mode<synchronous>, transform_indices = @transform_5, window_bounds = array<i64: 96, 24>}, {pipeline_mode = #tpu.pipeline_mode<synchronous>, transform_indices = @transform_6, window_bounds = array<i64: 1, 24>}, {transform_indices = @transform_7, window_bounds = array<i64: 1, 8, 8, 24>}]} {
    %c16_i32 = arith.constant 16 : i32
    %0 = arith.muli %arg1, %c16_i32 : i32
    %1 = tpu.assume_multiple %0, 16 : i32
    %c0 = arith.constant 0 : index
    %2 = arith.index_cast %1 : i32 to index
    %c0_0 = arith.constant 0 : index
    %c0_1 = arith.constant 0 : index
    %3 = vector.load %arg2[%c0, %2, %c0_0, %c0_1] : memref<1x18x24x16xf32, #tpu.memory_space<vmem>>, vector<1x17x24x16xf32>
    %4 = vector.shape_cast %3 : vector<1x17x24x16xf32> to vector<17x24x16xf32>
    %5 = vector.shape_cast %4 : vector<17x24x16xf32> to vector<408x16xf32>
    %6 = arith.truncf %5 : vector<408x16xf32> to vector<408x16xbf16>
    %c0_2 = arith.constant 0 : index
    %c0_3 = arith.constant 0 : index
    %7 = vector.load %arg3[%c0_2, %c0_3] : memref<16x96xbf16, #tpu.memory_space<vmem>>, vector<16x96xbf16>
    %cst = arith.constant dense<0.000000e+00> : vector<408x96xf32>
    %8 = tpu.matmul %6, %7, %cst {dimension_numbers = #tpu.dot_dimension_numbers<[1], [0], [0], [1], [0, 0, 1, 1], [], []>} : vector<408x16xbf16>, vector<16x96xbf16>, vector<408x96xf32> -> vector<408x96xf32>
    %c0_4 = arith.constant 0 : index
    %c0_5 = arith.constant 0 : index
    %9 = vector.load %arg4[%c0_4, %c0_5] : memref<1x96xf32, #tpu.memory_space<vmem>>, vector<1x96xf32>
    %10 = vector.broadcast %9 : vector<1x96xf32> to vector<408x96xf32>
    %11 = arith.addf %8, %10 : vector<408x96xf32>
    %cst_6 = arith.constant 0.000000e+00 : f32
    %cst_7 = arith.constant 6.000000e+00 : f32
    %12 = vector.broadcast %cst_6 : f32 to vector<408x96xf32>
    %13 = arith.maximumf %12, %11 : vector<408x96xf32>
    %14 = vector.broadcast %cst_7 : f32 to vector<408x96xf32>
    %15 = arith.minimumf %14, %13 : vector<408x96xf32>
    %16 = vector.shape_cast %15 : vector<408x96xf32> to vector<17x24x96xf32>
    %17 = tpu.iota {dimensions = array<i32: 0>} : vector<17x24x1xi32>
    %18 = vector.broadcast %1 : i32 to vector<17x24x1xi32>
    %19 = arith.addi %18, %17 : vector<17x24x1xi32>
    %20 = tpu.iota {dimensions = array<i32: 1>} : vector<17x24x1xi32>
    %c1_i32 = arith.constant 1 : i32
    %21 = vector.broadcast %c1_i32 : i32 to vector<17x24x1xi32>
    %22 = arith.cmpi sge, %19, %21 : vector<17x24x1xi32>
    %c16_i32_8 = arith.constant 16 : i32
    %23 = vector.broadcast %c16_i32_8 : i32 to vector<17x24x1xi32>
    %24 = arith.cmpi sle, %19, %23 : vector<17x24x1xi32>
    %25 = arith.andi %22, %24 : vector<17x24x1xi1>
    %c1_i32_9 = arith.constant 1 : i32
    %26 = vector.broadcast %c1_i32_9 : i32 to vector<17x24x1xi32>
    %27 = arith.cmpi sge, %20, %26 : vector<17x24x1xi32>
    %28 = arith.andi %25, %27 : vector<17x24x1xi1>
    %c16_i32_10 = arith.constant 16 : i32
    %29 = vector.broadcast %c16_i32_10 : i32 to vector<17x24x1xi32>
    %30 = arith.cmpi sle, %20, %29 : vector<17x24x1xi32>
    %31 = arith.andi %28, %30 : vector<17x24x1xi1>
    %cst_11 = arith.constant 0.000000e+00 : f32
    %32 = vector.shape_cast %31 : vector<17x24x1xi1> to vector<17x24x1xi1>
    %33 = vector.broadcast %32 : vector<17x24x1xi1> to vector<17x24x96xi1>
    %34 = vector.broadcast %cst_11 : f32 to vector<17x24x96xf32>
    %35 = arith.select %33, %16, %34 : vector<17x24x96xi1>, vector<17x24x96xf32>
    %c0_12 = arith.constant 0 : index
    %c0_13 = arith.constant 0 : index
    %c0_14 = arith.constant 0 : index
    %36 = vector.load %arg10[%c0_12, %c0_13, %c0_14] : memref<17x24x96xf32, #tpu.memory_space<vmem>>, vector<17x24x96xf32>
    tpu.vector_store %arg10[%c0_12, %c0_13, %c0_14], %35 {strides = array<i32>} : memref<17x24x96xf32, #tpu.memory_space<vmem>>, vector<17x24x96xf32>,
    %c0_15 = arith.constant 0 : index
    %c0_16 = arith.constant 0 : index
    %c0_17 = arith.constant 0 : index
    %37 = tpu.strided_load %arg10[%c0_15, %c0_16, %c0_17] {strides = array<i32: 2, 2, 1>} : memref<17x24x96xf32, #tpu.memory_space<vmem>>, vector<8x8x96xf32>
    %c0_18 = arith.constant 0 : index
    %c0_19 = arith.constant 0 : index
    %c0_20 = arith.constant 0 : index
    %38 = vector.load %arg5[%c0_18, %c0_19, %c0_20] : memref<9x1x96xf32, #tpu.memory_space<vmem>>, vector<1x1x96xf32>
    %39 = vector.shape_cast %38 : vector<1x1x96xf32> to vector<1x96xf32>
    %40 = vector.shape_cast %39 : vector<1x96xf32> to vector<1x1x96xf32>
    %41 = vector.broadcast %40 : vector<1x1x96xf32> to vector<8x8x96xf32>
    %42 = arith.mulf %37, %41 : vector<8x8x96xf32>
    %c0_21 = arith.constant 0 : index
    %c1 = arith.constant 1 : index
    %c0_22 = arith.constant 0 : index
    %43 = tpu.strided_load %arg10[%c0_21, %c1, %c0_22] {strides = array<i32: 2, 2, 1>} : memref<17x24x96xf32, #tpu.memory_space<vmem>>, vector<8x8x96xf32>
    %c1_23 = arith.constant 1 : index
    %c0_24 = arith.constant 0 : index
    %c0_25 = arith.constant 0 : index
    %44 = vector.load %arg5[%c1_23, %c0_24, %c0_25] : memref<9x1x96xf32, #tpu.memory_space<vmem>>, vector<1x1x96xf32>
    %45 = vector.shape_cast %44 : vector<1x1x96xf32> to vector<1x96xf32>
    %46 = vector.shape_cast %45 : vector<1x96xf32> to vector<1x1x96xf32>
    %47 = vector.broadcast %46 : vector<1x1x96xf32> to vector<8x8x96xf32>
    %48 = arith.mulf %43, %47 : vector<8x8x96xf32>
    %49 = arith.addf %42, %48 : vector<8x8x96xf32>
    %c0_26 = arith.constant 0 : index
    %c2 = arith.constant 2 : index
    %c0_27 = arith.constant 0 : index
    %50 = tpu.strided_load %arg10[%c0_26, %c2, %c0_27] {strides = array<i32: 2, 2, 1>} : memref<17x24x96xf32, #tpu.memory_space<vmem>>, vector<8x8x96xf32>
    %c2_28 = arith.constant 2 : index
    %c0_29 = arith.constant 0 : index
    %c0_30 = arith.constant 0 : index
    %51 = vector.load %arg5[%c2_28, %c0_29, %c0_30] : memref<9x1x96xf32, #tpu.memory_space<vmem>>, vector<1x1x96xf32>
    %52 = vector.shape_cast %51 : vector<1x1x96xf32> to vector<1x96xf32>
    %53 = vector.shape_cast %52 : vector<1x96xf32> to vector<1x1x96xf32>
    %54 = vector.broadcast %53 : vector<1x1x96xf32> to vector<8x8x96xf32>
    %55 = arith.mulf %50, %54 : vector<8x8x96xf32>
    %c1_31 = arith.constant 1 : index
    %c0_32 = arith.constant 0 : index
    %c0_33 = arith.constant 0 : index
    %56 = tpu.strided_load %arg10[%c1_31, %c0_32, %c0_33] {strides = array<i32: 2, 2, 1>} : memref<17x24x96xf32, #tpu.memory_space<vmem>>, vector<8x8x96xf32>
    %c3 = arith.constant 3 : index
    %c0_34 = arith.constant 0 : index
    %c0_35 = arith.constant 0 : index
    %57 = vector.load %arg5[%c3, %c0_34, %c0_35] : memref<9x1x96xf32, #tpu.memory_space<vmem>>, vector<1x1x96xf32>
    %58 = vector.shape_cast %57 : vector<1x1x96xf32> to vector<1x96xf32>
    %59 = vector.shape_cast %58 : vector<1x96xf32> to vector<1x1x96xf32>
    %60 = vector.broadcast %59 : vector<1x1x96xf32> to vector<8x8x96xf32>
    %61 = arith.mulf %56, %60 : vector<8x8x96xf32>
    %62 = arith.addf %55, %61 : vector<8x8x96xf32>
    %c1_36 = arith.constant 1 : index
    %c1_37 = arith.constant 1 : index
    %c0_38 = arith.constant 0 : index
    %63 = tpu.strided_load %arg10[%c1_36, %c1_37, %c0_38] {strides = array<i32: 2, 2, 1>} : memref<17x24x96xf32, #tpu.memory_space<vmem>>, vector<8x8x96xf32>
    %c4 = arith.constant 4 : index
    %c0_39 = arith.constant 0 : index
    %c0_40 = arith.constant 0 : index
    %64 = vector.load %arg5[%c4, %c0_39, %c0_40] : memref<9x1x96xf32, #tpu.memory_space<vmem>>, vector<1x1x96xf32>
    %65 = vector.shape_cast %64 : vector<1x1x96xf32> to vector<1x96xf32>
    %66 = vector.shape_cast %65 : vector<1x96xf32> to vector<1x1x96xf32>
    %67 = vector.broadcast %66 : vector<1x1x96xf32> to vector<8x8x96xf32>
    %68 = arith.mulf %63, %67 : vector<8x8x96xf32>
    %c1_41 = arith.constant 1 : index
    %c2_42 = arith.constant 2 : index
    %c0_43 = arith.constant 0 : index
    %69 = tpu.strided_load %arg10[%c1_41, %c2_42, %c0_43] {strides = array<i32: 2, 2, 1>} : memref<17x24x96xf32, #tpu.memory_space<vmem>>, vector<8x8x96xf32>
    %c5 = arith.constant 5 : index
    %c0_44 = arith.constant 0 : index
    %c0_45 = arith.constant 0 : index
    %70 = vector.load %arg5[%c5, %c0_44, %c0_45] : memref<9x1x96xf32, #tpu.memory_space<vmem>>, vector<1x1x96xf32>
    %71 = vector.shape_cast %70 : vector<1x1x96xf32> to vector<1x96xf32>
    %72 = vector.shape_cast %71 : vector<1x96xf32> to vector<1x1x96xf32>
    %73 = vector.broadcast %72 : vector<1x1x96xf32> to vector<8x8x96xf32>
    %74 = arith.mulf %69, %73 : vector<8x8x96xf32>
    %75 = arith.addf %68, %74 : vector<8x8x96xf32>
    %c2_46 = arith.constant 2 : index
    %c0_47 = arith.constant 0 : index
    %c0_48 = arith.constant 0 : index
    %76 = tpu.strided_load %arg10[%c2_46, %c0_47, %c0_48] {strides = array<i32: 2, 2, 1>} : memref<17x24x96xf32, #tpu.memory_space<vmem>>, vector<8x8x96xf32>
    %c6 = arith.constant 6 : index
    %c0_49 = arith.constant 0 : index
    %c0_50 = arith.constant 0 : index
    %77 = vector.load %arg5[%c6, %c0_49, %c0_50] : memref<9x1x96xf32, #tpu.memory_space<vmem>>, vector<1x1x96xf32>
    %78 = vector.shape_cast %77 : vector<1x1x96xf32> to vector<1x96xf32>
    %79 = vector.shape_cast %78 : vector<1x96xf32> to vector<1x1x96xf32>
    %80 = vector.broadcast %79 : vector<1x1x96xf32> to vector<8x8x96xf32>
    %81 = arith.mulf %76, %80 : vector<8x8x96xf32>
    %c2_51 = arith.constant 2 : index
    %c1_52 = arith.constant 1 : index
    %c0_53 = arith.constant 0 : index
    %82 = tpu.strided_load %arg10[%c2_51, %c1_52, %c0_53] {strides = array<i32: 2, 2, 1>} : memref<17x24x96xf32, #tpu.memory_space<vmem>>, vector<8x8x96xf32>
    %c7 = arith.constant 7 : index
    %c0_54 = arith.constant 0 : index
    %c0_55 = arith.constant 0 : index
    %83 = vector.load %arg5[%c7, %c0_54, %c0_55] : memref<9x1x96xf32, #tpu.memory_space<vmem>>, vector<1x1x96xf32>
    %84 = vector.shape_cast %83 : vector<1x1x96xf32> to vector<1x96xf32>
    %85 = vector.shape_cast %84 : vector<1x96xf32> to vector<1x1x96xf32>
    %86 = vector.broadcast %85 : vector<1x1x96xf32> to vector<8x8x96xf32>
    %87 = arith.mulf %82, %86 : vector<8x8x96xf32>
    %88 = arith.addf %81, %87 : vector<8x8x96xf32>
    %89 = arith.addf %49, %62 : vector<8x8x96xf32>
    %90 = arith.addf %75, %88 : vector<8x8x96xf32>
    %91 = arith.addf %89, %90 : vector<8x8x96xf32>
    %c2_56 = arith.constant 2 : index
    %c2_57 = arith.constant 2 : index
    %c0_58 = arith.constant 0 : index
    %92 = tpu.strided_load %arg10[%c2_56, %c2_57, %c0_58] {strides = array<i32: 2, 2, 1>} : memref<17x24x96xf32, #tpu.memory_space<vmem>>, vector<8x8x96xf32>
    %c8 = arith.constant 8 : index
    %c0_59 = arith.constant 0 : index
    %c0_60 = arith.constant 0 : index
    %93 = vector.load %arg5[%c8, %c0_59, %c0_60] : memref<9x1x96xf32, #tpu.memory_space<vmem>>, vector<1x1x96xf32>
    %94 = vector.shape_cast %93 : vector<1x1x96xf32> to vector<1x96xf32>
    %95 = vector.shape_cast %94 : vector<1x96xf32> to vector<1x1x96xf32>
    %96 = vector.broadcast %95 : vector<1x1x96xf32> to vector<8x8x96xf32>
    %97 = arith.mulf %92, %96 : vector<8x8x96xf32>
    %98 = arith.addf %91, %97 : vector<8x8x96xf32>
    %c0_61 = arith.constant 0 : index
    %c0_62 = arith.constant 0 : index
    %99 = vector.load %arg6[%c0_61, %c0_62] : memref<1x96xf32, #tpu.memory_space<vmem>>, vector<1x96xf32>
    %100 = vector.shape_cast %99 : vector<1x96xf32> to vector<1x1x96xf32>
    %101 = vector.broadcast %100 : vector<1x1x96xf32> to vector<8x8x96xf32>
    %102 = arith.addf %98, %101 : vector<8x8x96xf32>
    %cst_63 = arith.constant 0.000000e+00 : f32
    %cst_64 = arith.constant 6.000000e+00 : f32
    %103 = vector.broadcast %cst_63 : f32 to vector<8x8x96xf32>
    %104 = arith.maximumf %103, %102 : vector<8x8x96xf32>
    %105 = vector.broadcast %cst_64 : f32 to vector<8x8x96xf32>
    %106 = arith.minimumf %105, %104 : vector<8x8x96xf32>
    %107 = vector.shape_cast %106 : vector<8x8x96xf32> to vector<64x96xf32>
    %108 = arith.truncf %107 : vector<64x96xf32> to vector<64x96xbf16>
    %c0_65 = arith.constant 0 : index
    %c0_66 = arith.constant 0 : index
    %109 = vector.load %arg7[%c0_65, %c0_66] : memref<96x24xbf16, #tpu.memory_space<vmem>>, vector<96x24xbf16>
    %cst_67 = arith.constant dense<0.000000e+00> : vector<64x24xf32>
    %110 = tpu.matmul %108, %109, %cst_67 {dimension_numbers = #tpu.dot_dimension_numbers<[1], [0], [0], [1], [0, 0, 1, 1], [], []>} : vector<64x96xbf16>, vector<96x24xbf16>, vector<64x24xf32> -> vector<64x24xf32>
    %c0_68 = arith.constant 0 : index
    %c0_69 = arith.constant 0 : index
    %111 = vector.load %arg8[%c0_68, %c0_69] : memref<1x24xf32, #tpu.memory_space<vmem>>, vector<1x24xf32>
    %112 = vector.broadcast %111 : vector<1x24xf32> to vector<64x24xf32>
    %113 = arith.addf %110, %112 : vector<64x24xf32>
    %114 = vector.shape_cast %113 : vector<64x24xf32> to vector<8x8x24xf32>
    %c0_70 = arith.constant 0 : index
    %c0_71 = arith.constant 0 : index
    %c0_72 = arith.constant 0 : index
    %c0_73 = arith.constant 0 : index
    %115 = vector.load %arg9[%c0_70, %c0_71, %c0_72, %c0_73] : memref<1x8x8x24xf32, #tpu.memory_space<vmem>>, vector<1x8x8x24xf32>
    %116 = vector.shape_cast %115 : vector<1x8x8x24xf32> to vector<8x8x24xf32>
    %117 = vector.shape_cast %114 : vector<8x8x24xf32> to vector<1x8x8x24xf32>
    tpu.vector_store %arg9[%c0_70, %c0_71, %c0_72, %c0_73], %117 {strides = array<i32>} : memref<1x8x8x24xf32, #tpu.memory_space<vmem>>, vector<1x8x8x24xf32>,
    return
  }
  func.func @transform_0(%arg0: i32, %arg1: i32) -> (i32, i32, i32, i32) {
    %c0_i32 = arith.constant 0 : i32
    %c0_i32_0 = arith.constant 0 : i32
    %c0_i32_1 = arith.constant 0 : i32
    %c0_i32_2 = arith.constant 0 : i32
    return %arg0, %c0_i32, %c0_i32_0, %c0_i32_1 : i32, i32, i32, i32
  }
  func.func @transform_1(%arg0: i32, %arg1: i32) -> (i32, i32) {
    %c0_i32 = arith.constant 0 : i32
    %c0_i32_0 = arith.constant 0 : i32
    %c0_i32_1 = arith.constant 0 : i32
    return %c0_i32, %c0_i32_0 : i32, i32
  }
  func.func @transform_2(%arg0: i32, %arg1: i32) -> (i32, i32) {
    %c0_i32 = arith.constant 0 : i32
    %c0_i32_0 = arith.constant 0 : i32
    %c0_i32_1 = arith.constant 0 : i32
    return %c0_i32, %c0_i32_0 : i32, i32
  }
  func.func @transform_3(%arg0: i32, %arg1: i32) -> (i32, i32, i32) {
    %c0_i32 = arith.constant 0 : i32
    %c0_i32_0 = arith.constant 0 : i32
    %c0_i32_1 = arith.constant 0 : i32
    %c0_i32_2 = arith.constant 0 : i32
    return %c0_i32, %c0_i32_0, %c0_i32_1 : i32, i32, i32
  }
  func.func @transform_4(%arg0: i32, %arg1: i32) -> (i32, i32) {
    %c0_i32 = arith.constant 0 : i32
    %c0_i32_0 = arith.constant 0 : i32
    %c0_i32_1 = arith.constant 0 : i32
    return %c0_i32, %c0_i32_0 : i32, i32
  }
  func.func @transform_5(%arg0: i32, %arg1: i32) -> (i32, i32) {
    %c0_i32 = arith.constant 0 : i32
    %c0_i32_0 = arith.constant 0 : i32
    %c0_i32_1 = arith.constant 0 : i32
    return %c0_i32, %c0_i32_0 : i32, i32
  }
  func.func @transform_6(%arg0: i32, %arg1: i32) -> (i32, i32) {
    %c0_i32 = arith.constant 0 : i32
    %c0_i32_0 = arith.constant 0 : i32
    %c0_i32_1 = arith.constant 0 : i32
    return %c0_i32, %c0_i32_0 : i32, i32
  }
  func.func @transform_7(%arg0: i32, %arg1: i32) -> (i32, i32, i32, i32) {
    %c0_i32 = arith.constant 0 : i32
    %c0_i32_0 = arith.constant 0 : i32
    %c0_i32_1 = arith.constant 0 : i32
    return %arg0, %arg1, %c0_i32, %c0_i32_0 : i32, i32, i32, i32
  }
}

module attributes {stable_mosaic.version = 11 : i64} {
  func.func @kernel(%arg0: i32, %arg1: i32, %arg2: memref<1x18x24x16xf32, #tpu.memory_space<vmem>>, %arg3: memref<16x96xbf16, #tpu.memory_space<vmem>>, %arg4: memref<1x96xf32, #tpu.memory_space<vmem>>, %arg5: memref<9x1x96xf32, #tpu.memory_space<vmem>>, %arg6: memref<1x96xf32, #tpu.memory_space<vmem>>, %arg7: memref<96x16xbf16, #tpu.memory_space<vmem>>, %arg8: memref<1x16xf32, #tpu.memory_space<vmem>>, %arg9: memref<1x8x16x16xf32, #tpu.memory_space<vmem>>, %arg10: memref<10x24x96xf32, #tpu.memory_space<vmem>>) attributes {dimension_semantics = [#tpu.dimension_semantics<parallel>, #tpu.dimension_semantics<parallel>], iteration_bounds = array<i64: 2, 2>, scalar_prefetch = 0 : i64, scratch_operands = 1 : i64, tpu.core_type = #tpu.core_type<tc>, window_params = [{transform_indices = @transform_0, window_bounds = array<i64: 1, 18, 24, 16>}, {pipeline_mode = #tpu.pipeline_mode<synchronous>, transform_indices = @transform_1, window_bounds = array<i64: 16, 96>}, {pipeline_mode = #tpu.pipeline_mode<synchronous>, transform_indices = @transform_2, window_bounds = array<i64: 1, 96>}, {pipeline_mode = #tpu.pipeline_mode<synchronous>, transform_indices = @transform_3, window_bounds = array<i64: 9, 1, 96>}, {pipeline_mode = #tpu.pipeline_mode<synchronous>, transform_indices = @transform_4, window_bounds = array<i64: 1, 96>}, {pipeline_mode = #tpu.pipeline_mode<synchronous>, transform_indices = @transform_5, window_bounds = array<i64: 96, 16>}, {pipeline_mode = #tpu.pipeline_mode<synchronous>, transform_indices = @transform_6, window_bounds = array<i64: 1, 16>}, {transform_indices = @transform_7, window_bounds = array<i64: 1, 8, 16, 16>}]} {
    %c8_i32 = arith.constant 8 : i32
    %0 = arith.muli %arg1, %c8_i32 : i32
    %1 = tpu.assume_multiple %0, 8 : i32
    %c0 = arith.constant 0 : index
    %2 = arith.index_cast %1 : i32 to index
    %c0_0 = arith.constant 0 : index
    %c0_1 = arith.constant 0 : index
    %3 = vector.load %arg2[%c0, %2, %c0_0, %c0_1] : memref<1x18x24x16xf32, #tpu.memory_space<vmem>>, vector<1x10x24x16xf32>
    %4 = vector.shape_cast %3 : vector<1x10x24x16xf32> to vector<10x24x16xf32>
    %5 = vector.shape_cast %4 : vector<10x24x16xf32> to vector<240x16xf32>
    %6 = arith.truncf %5 : vector<240x16xf32> to vector<240x16xbf16>
    %c0_2 = arith.constant 0 : index
    %c0_3 = arith.constant 0 : index
    %7 = vector.load %arg3[%c0_2, %c0_3] : memref<16x96xbf16, #tpu.memory_space<vmem>>, vector<16x96xbf16>
    %cst = arith.constant dense<0.000000e+00> : vector<240x96xf32>
    %8 = tpu.matmul %6, %7, %cst {dimension_numbers = #tpu.dot_dimension_numbers<[1], [0], [0], [1], [0, 0, 1, 1], [], []>} : vector<240x16xbf16>, vector<16x96xbf16>, vector<240x96xf32> -> vector<240x96xf32>
    %c0_4 = arith.constant 0 : index
    %c0_5 = arith.constant 0 : index
    %9 = vector.load %arg4[%c0_4, %c0_5] : memref<1x96xf32, #tpu.memory_space<vmem>>, vector<1x96xf32>
    %10 = vector.broadcast %9 : vector<1x96xf32> to vector<240x96xf32>
    %11 = arith.addf %8, %10 : vector<240x96xf32>
    %cst_6 = arith.constant 0.000000e+00 : f32
    %cst_7 = arith.constant 6.000000e+00 : f32
    %12 = vector.broadcast %cst_6 : f32 to vector<240x96xf32>
    %13 = arith.maximumf %12, %11 : vector<240x96xf32>
    %14 = vector.broadcast %cst_7 : f32 to vector<240x96xf32>
    %15 = arith.minimumf %14, %13 : vector<240x96xf32>
    %16 = vector.shape_cast %15 : vector<240x96xf32> to vector<10x24x96xf32>
    %17 = tpu.iota {dimensions = array<i32: 0>} : vector<10x24x1xi32>
    %18 = vector.broadcast %1 : i32 to vector<10x24x1xi32>
    %19 = arith.addi %18, %17 : vector<10x24x1xi32>
    %20 = tpu.iota {dimensions = array<i32: 1>} : vector<10x24x1xi32>
    %c1_i32 = arith.constant 1 : i32
    %21 = vector.broadcast %c1_i32 : i32 to vector<10x24x1xi32>
    %22 = arith.cmpi sge, %19, %21 : vector<10x24x1xi32>
    %c16_i32 = arith.constant 16 : i32
    %23 = vector.broadcast %c16_i32 : i32 to vector<10x24x1xi32>
    %24 = arith.cmpi sle, %19, %23 : vector<10x24x1xi32>
    %25 = arith.andi %22, %24 : vector<10x24x1xi1>
    %c1_i32_8 = arith.constant 1 : i32
    %26 = vector.broadcast %c1_i32_8 : i32 to vector<10x24x1xi32>
    %27 = arith.cmpi sge, %20, %26 : vector<10x24x1xi32>
    %28 = arith.andi %25, %27 : vector<10x24x1xi1>
    %c16_i32_9 = arith.constant 16 : i32
    %29 = vector.broadcast %c16_i32_9 : i32 to vector<10x24x1xi32>
    %30 = arith.cmpi sle, %20, %29 : vector<10x24x1xi32>
    %31 = arith.andi %28, %30 : vector<10x24x1xi1>
    %cst_10 = arith.constant 0.000000e+00 : f32
    %32 = vector.shape_cast %31 : vector<10x24x1xi1> to vector<10x24x1xi1>
    %33 = vector.broadcast %32 : vector<10x24x1xi1> to vector<10x24x96xi1>
    %34 = vector.broadcast %cst_10 : f32 to vector<10x24x96xf32>
    %35 = arith.select %33, %16, %34 : vector<10x24x96xi1>, vector<10x24x96xf32>
    %c0_11 = arith.constant 0 : index
    %c0_12 = arith.constant 0 : index
    %c0_13 = arith.constant 0 : index
    %36 = vector.load %arg10[%c0_11, %c0_12, %c0_13] : memref<10x24x96xf32, #tpu.memory_space<vmem>>, vector<10x24x96xf32>
    tpu.vector_store %arg10[%c0_11, %c0_12, %c0_13], %35 {strides = array<i32>} : memref<10x24x96xf32, #tpu.memory_space<vmem>>, vector<10x24x96xf32>,
    %c0_14 = arith.constant 0 : index
    %c0_15 = arith.constant 0 : index
    %c0_16 = arith.constant 0 : index
    %37 = vector.load %arg10[%c0_14, %c0_15, %c0_16] : memref<10x24x96xf32, #tpu.memory_space<vmem>>, vector<8x16x96xf32>
    %c0_17 = arith.constant 0 : index
    %c0_18 = arith.constant 0 : index
    %c0_19 = arith.constant 0 : index
    %38 = vector.load %arg5[%c0_17, %c0_18, %c0_19] : memref<9x1x96xf32, #tpu.memory_space<vmem>>, vector<1x1x96xf32>
    %39 = vector.shape_cast %38 : vector<1x1x96xf32> to vector<1x96xf32>
    %40 = vector.shape_cast %39 : vector<1x96xf32> to vector<1x1x96xf32>
    %41 = vector.broadcast %40 : vector<1x1x96xf32> to vector<8x16x96xf32>
    %42 = arith.mulf %37, %41 : vector<8x16x96xf32>
    %c0_20 = arith.constant 0 : index
    %c1 = arith.constant 1 : index
    %c0_21 = arith.constant 0 : index
    %43 = vector.load %arg10[%c0_20, %c1, %c0_21] : memref<10x24x96xf32, #tpu.memory_space<vmem>>, vector<8x16x96xf32>
    %c1_22 = arith.constant 1 : index
    %c0_23 = arith.constant 0 : index
    %c0_24 = arith.constant 0 : index
    %44 = vector.load %arg5[%c1_22, %c0_23, %c0_24] : memref<9x1x96xf32, #tpu.memory_space<vmem>>, vector<1x1x96xf32>
    %45 = vector.shape_cast %44 : vector<1x1x96xf32> to vector<1x96xf32>
    %46 = vector.shape_cast %45 : vector<1x96xf32> to vector<1x1x96xf32>
    %47 = vector.broadcast %46 : vector<1x1x96xf32> to vector<8x16x96xf32>
    %48 = arith.mulf %43, %47 : vector<8x16x96xf32>
    %49 = arith.addf %42, %48 : vector<8x16x96xf32>
    %c0_25 = arith.constant 0 : index
    %c2 = arith.constant 2 : index
    %c0_26 = arith.constant 0 : index
    %50 = vector.load %arg10[%c0_25, %c2, %c0_26] : memref<10x24x96xf32, #tpu.memory_space<vmem>>, vector<8x16x96xf32>
    %c2_27 = arith.constant 2 : index
    %c0_28 = arith.constant 0 : index
    %c0_29 = arith.constant 0 : index
    %51 = vector.load %arg5[%c2_27, %c0_28, %c0_29] : memref<9x1x96xf32, #tpu.memory_space<vmem>>, vector<1x1x96xf32>
    %52 = vector.shape_cast %51 : vector<1x1x96xf32> to vector<1x96xf32>
    %53 = vector.shape_cast %52 : vector<1x96xf32> to vector<1x1x96xf32>
    %54 = vector.broadcast %53 : vector<1x1x96xf32> to vector<8x16x96xf32>
    %55 = arith.mulf %50, %54 : vector<8x16x96xf32>
    %c1_30 = arith.constant 1 : index
    %c0_31 = arith.constant 0 : index
    %c0_32 = arith.constant 0 : index
    %56 = vector.load %arg10[%c1_30, %c0_31, %c0_32] : memref<10x24x96xf32, #tpu.memory_space<vmem>>, vector<8x16x96xf32>
    %c3 = arith.constant 3 : index
    %c0_33 = arith.constant 0 : index
    %c0_34 = arith.constant 0 : index
    %57 = vector.load %arg5[%c3, %c0_33, %c0_34] : memref<9x1x96xf32, #tpu.memory_space<vmem>>, vector<1x1x96xf32>
    %58 = vector.shape_cast %57 : vector<1x1x96xf32> to vector<1x96xf32>
    %59 = vector.shape_cast %58 : vector<1x96xf32> to vector<1x1x96xf32>
    %60 = vector.broadcast %59 : vector<1x1x96xf32> to vector<8x16x96xf32>
    %61 = arith.mulf %56, %60 : vector<8x16x96xf32>
    %62 = arith.addf %55, %61 : vector<8x16x96xf32>
    %c1_35 = arith.constant 1 : index
    %c1_36 = arith.constant 1 : index
    %c0_37 = arith.constant 0 : index
    %63 = vector.load %arg10[%c1_35, %c1_36, %c0_37] : memref<10x24x96xf32, #tpu.memory_space<vmem>>, vector<8x16x96xf32>
    %c4 = arith.constant 4 : index
    %c0_38 = arith.constant 0 : index
    %c0_39 = arith.constant 0 : index
    %64 = vector.load %arg5[%c4, %c0_38, %c0_39] : memref<9x1x96xf32, #tpu.memory_space<vmem>>, vector<1x1x96xf32>
    %65 = vector.shape_cast %64 : vector<1x1x96xf32> to vector<1x96xf32>
    %66 = vector.shape_cast %65 : vector<1x96xf32> to vector<1x1x96xf32>
    %67 = vector.broadcast %66 : vector<1x1x96xf32> to vector<8x16x96xf32>
    %68 = arith.mulf %63, %67 : vector<8x16x96xf32>
    %c1_40 = arith.constant 1 : index
    %c2_41 = arith.constant 2 : index
    %c0_42 = arith.constant 0 : index
    %69 = vector.load %arg10[%c1_40, %c2_41, %c0_42] : memref<10x24x96xf32, #tpu.memory_space<vmem>>, vector<8x16x96xf32>
    %c5 = arith.constant 5 : index
    %c0_43 = arith.constant 0 : index
    %c0_44 = arith.constant 0 : index
    %70 = vector.load %arg5[%c5, %c0_43, %c0_44] : memref<9x1x96xf32, #tpu.memory_space<vmem>>, vector<1x1x96xf32>
    %71 = vector.shape_cast %70 : vector<1x1x96xf32> to vector<1x96xf32>
    %72 = vector.shape_cast %71 : vector<1x96xf32> to vector<1x1x96xf32>
    %73 = vector.broadcast %72 : vector<1x1x96xf32> to vector<8x16x96xf32>
    %74 = arith.mulf %69, %73 : vector<8x16x96xf32>
    %75 = arith.addf %68, %74 : vector<8x16x96xf32>
    %c2_45 = arith.constant 2 : index
    %c0_46 = arith.constant 0 : index
    %c0_47 = arith.constant 0 : index
    %76 = vector.load %arg10[%c2_45, %c0_46, %c0_47] : memref<10x24x96xf32, #tpu.memory_space<vmem>>, vector<8x16x96xf32>
    %c6 = arith.constant 6 : index
    %c0_48 = arith.constant 0 : index
    %c0_49 = arith.constant 0 : index
    %77 = vector.load %arg5[%c6, %c0_48, %c0_49] : memref<9x1x96xf32, #tpu.memory_space<vmem>>, vector<1x1x96xf32>
    %78 = vector.shape_cast %77 : vector<1x1x96xf32> to vector<1x96xf32>
    %79 = vector.shape_cast %78 : vector<1x96xf32> to vector<1x1x96xf32>
    %80 = vector.broadcast %79 : vector<1x1x96xf32> to vector<8x16x96xf32>
    %81 = arith.mulf %76, %80 : vector<8x16x96xf32>
    %c2_50 = arith.constant 2 : index
    %c1_51 = arith.constant 1 : index
    %c0_52 = arith.constant 0 : index
    %82 = vector.load %arg10[%c2_50, %c1_51, %c0_52] : memref<10x24x96xf32, #tpu.memory_space<vmem>>, vector<8x16x96xf32>
    %c7 = arith.constant 7 : index
    %c0_53 = arith.constant 0 : index
    %c0_54 = arith.constant 0 : index
    %83 = vector.load %arg5[%c7, %c0_53, %c0_54] : memref<9x1x96xf32, #tpu.memory_space<vmem>>, vector<1x1x96xf32>
    %84 = vector.shape_cast %83 : vector<1x1x96xf32> to vector<1x96xf32>
    %85 = vector.shape_cast %84 : vector<1x96xf32> to vector<1x1x96xf32>
    %86 = vector.broadcast %85 : vector<1x1x96xf32> to vector<8x16x96xf32>
    %87 = arith.mulf %82, %86 : vector<8x16x96xf32>
    %88 = arith.addf %81, %87 : vector<8x16x96xf32>
    %89 = arith.addf %49, %62 : vector<8x16x96xf32>
    %90 = arith.addf %75, %88 : vector<8x16x96xf32>
    %91 = arith.addf %89, %90 : vector<8x16x96xf32>
    %c2_55 = arith.constant 2 : index
    %c2_56 = arith.constant 2 : index
    %c0_57 = arith.constant 0 : index
    %92 = vector.load %arg10[%c2_55, %c2_56, %c0_57] : memref<10x24x96xf32, #tpu.memory_space<vmem>>, vector<8x16x96xf32>
    %c8 = arith.constant 8 : index
    %c0_58 = arith.constant 0 : index
    %c0_59 = arith.constant 0 : index
    %93 = vector.load %arg5[%c8, %c0_58, %c0_59] : memref<9x1x96xf32, #tpu.memory_space<vmem>>, vector<1x1x96xf32>
    %94 = vector.shape_cast %93 : vector<1x1x96xf32> to vector<1x96xf32>
    %95 = vector.shape_cast %94 : vector<1x96xf32> to vector<1x1x96xf32>
    %96 = vector.broadcast %95 : vector<1x1x96xf32> to vector<8x16x96xf32>
    %97 = arith.mulf %92, %96 : vector<8x16x96xf32>
    %98 = arith.addf %91, %97 : vector<8x16x96xf32>
    %c0_60 = arith.constant 0 : index
    %c0_61 = arith.constant 0 : index
    %99 = vector.load %arg6[%c0_60, %c0_61] : memref<1x96xf32, #tpu.memory_space<vmem>>, vector<1x96xf32>
    %100 = vector.shape_cast %99 : vector<1x96xf32> to vector<1x1x96xf32>
    %101 = vector.broadcast %100 : vector<1x1x96xf32> to vector<8x16x96xf32>
    %102 = arith.addf %98, %101 : vector<8x16x96xf32>
    %cst_62 = arith.constant 0.000000e+00 : f32
    %cst_63 = arith.constant 6.000000e+00 : f32
    %103 = vector.broadcast %cst_62 : f32 to vector<8x16x96xf32>
    %104 = arith.maximumf %103, %102 : vector<8x16x96xf32>
    %105 = vector.broadcast %cst_63 : f32 to vector<8x16x96xf32>
    %106 = arith.minimumf %105, %104 : vector<8x16x96xf32>
    %107 = vector.shape_cast %106 : vector<8x16x96xf32> to vector<128x96xf32>
    %108 = arith.truncf %107 : vector<128x96xf32> to vector<128x96xbf16>
    %c0_64 = arith.constant 0 : index
    %c0_65 = arith.constant 0 : index
    %109 = vector.load %arg7[%c0_64, %c0_65] : memref<96x16xbf16, #tpu.memory_space<vmem>>, vector<96x16xbf16>
    %cst_66 = arith.constant dense<0.000000e+00> : vector<128x16xf32>
    %110 = tpu.matmul %108, %109, %cst_66 {dimension_numbers = #tpu.dot_dimension_numbers<[1], [0], [0], [1], [0, 0, 1, 1], [], []>} : vector<128x96xbf16>, vector<96x16xbf16>, vector<128x16xf32> -> vector<128x16xf32>
    %c0_67 = arith.constant 0 : index
    %c0_68 = arith.constant 0 : index
    %111 = vector.load %arg8[%c0_67, %c0_68] : memref<1x16xf32, #tpu.memory_space<vmem>>, vector<1x16xf32>
    %112 = vector.broadcast %111 : vector<1x16xf32> to vector<128x16xf32>
    %113 = arith.addf %110, %112 : vector<128x16xf32>
    %114 = vector.shape_cast %113 : vector<128x16xf32> to vector<8x16x16xf32>
    %c1_i32_69 = arith.constant 1 : i32
    %115 = arith.addi %1, %c1_i32_69 : i32
    %c0_70 = arith.constant 0 : index
    %116 = arith.index_cast %115 : i32 to index
    %c1_71 = arith.constant 1 : index
    %c0_72 = arith.constant 0 : index
    %117 = vector.load %arg2[%c0_70, %116, %c1_71, %c0_72] : memref<1x18x24x16xf32, #tpu.memory_space<vmem>>, vector<1x8x16x16xf32>
    %118 = vector.shape_cast %117 : vector<1x8x16x16xf32> to vector<8x16x16xf32>
    %119 = arith.addf %114, %118 : vector<8x16x16xf32>
    %c0_73 = arith.constant 0 : index
    %c0_74 = arith.constant 0 : index
    %c0_75 = arith.constant 0 : index
    %c0_76 = arith.constant 0 : index
    %120 = vector.load %arg9[%c0_73, %c0_74, %c0_75, %c0_76] : memref<1x8x16x16xf32, #tpu.memory_space<vmem>>, vector<1x8x16x16xf32>
    %121 = vector.shape_cast %120 : vector<1x8x16x16xf32> to vector<8x16x16xf32>
    %122 = vector.shape_cast %119 : vector<8x16x16xf32> to vector<1x8x16x16xf32>
    tpu.vector_store %arg9[%c0_73, %c0_74, %c0_75, %c0_76], %122 {strides = array<i32>} : memref<1x8x16x16xf32, #tpu.memory_space<vmem>>, vector<1x8x16x16xf32>,
    return
  }
  func.func @transform_0(%arg0: i32, %arg1: i32) -> (i32, i32, i32, i32) {
    %c0_i32 = arith.constant 0 : i32
    %c0_i32_0 = arith.constant 0 : i32
    %c0_i32_1 = arith.constant 0 : i32
    %c0_i32_2 = arith.constant 0 : i32
    return %arg0, %c0_i32, %c0_i32_0, %c0_i32_1 : i32, i32, i32, i32
  }
  func.func @transform_1(%arg0: i32, %arg1: i32) -> (i32, i32) {
    %c0_i32 = arith.constant 0 : i32
    %c0_i32_0 = arith.constant 0 : i32
    %c0_i32_1 = arith.constant 0 : i32
    return %c0_i32, %c0_i32_0 : i32, i32
  }
  func.func @transform_2(%arg0: i32, %arg1: i32) -> (i32, i32) {
    %c0_i32 = arith.constant 0 : i32
    %c0_i32_0 = arith.constant 0 : i32
    %c0_i32_1 = arith.constant 0 : i32
    return %c0_i32, %c0_i32_0 : i32, i32
  }
  func.func @transform_3(%arg0: i32, %arg1: i32) -> (i32, i32, i32) {
    %c0_i32 = arith.constant 0 : i32
    %c0_i32_0 = arith.constant 0 : i32
    %c0_i32_1 = arith.constant 0 : i32
    %c0_i32_2 = arith.constant 0 : i32
    return %c0_i32, %c0_i32_0, %c0_i32_1 : i32, i32, i32
  }
  func.func @transform_4(%arg0: i32, %arg1: i32) -> (i32, i32) {
    %c0_i32 = arith.constant 0 : i32
    %c0_i32_0 = arith.constant 0 : i32
    %c0_i32_1 = arith.constant 0 : i32
    return %c0_i32, %c0_i32_0 : i32, i32
  }
  func.func @transform_5(%arg0: i32, %arg1: i32) -> (i32, i32) {
    %c0_i32 = arith.constant 0 : i32
    %c0_i32_0 = arith.constant 0 : i32
    %c0_i32_1 = arith.constant 0 : i32
    return %c0_i32, %c0_i32_0 : i32, i32
  }
  func.func @transform_6(%arg0: i32, %arg1: i32) -> (i32, i32) {
    %c0_i32 = arith.constant 0 : i32
    %c0_i32_0 = arith.constant 0 : i32
    %c0_i32_1 = arith.constant 0 : i32
    return %c0_i32, %c0_i32_0 : i32, i32
  }
  func.func @transform_7(%arg0: i32, %arg1: i32) -> (i32, i32, i32, i32) {
    %c0_i32 = arith.constant 0 : i32
    %c0_i32_0 = arith.constant 0 : i32
    %c0_i32_1 = arith.constant 0 : i32
    return %arg0, %arg1, %c0_i32, %c0_i32_0 : i32, i32, i32, i32
  }
}

</mosaic_0001>

<llo_original>
// kernel: fwd.2
$region0: #{fwd.2}
  #allocation0 [shape = 'u32[]', space=smem, size = 0x4, offset = 0x4, fixed_abs, tag = 'smem constant byte address 0x4 - core index']
  #allocation1 [shape = 'u32[72,128]{1,0:T(1,128)}', space=vmem, size = 0x9000, scoped, tag = 'internal scratch']
  #allocation2 [shape = 'f32[10,24,96]{2,1,0:T(8,128)}', space=vmem, size = 0x1e000, scoped, tag = 'scratch operand']
  %s0 = inlined_call_operand.vmem [shape: f32[2,18,24,16], index: 0, kind: input, shape index: {}]
  %s1 = inlined_call_operand.vmem [shape: bf16[16,96], index: 1, kind: input, shape index: {}]
  %s2 = inlined_call_operand.vmem [shape: f32[1,96], index: 2, kind: input, shape index: {}]
  %s3 = inlined_call_operand.vmem [shape: f32[9,1,96], index: 3, kind: input, shape index: {}]
  %s4 = inlined_call_operand.vmem [shape: f32[1,96], index: 4, kind: input, shape index: {}]
  %s5 = inlined_call_operand.vmem [shape: bf16[96,16], index: 5, kind: input, shape index: {}]
  %s6 = inlined_call_operand.vmem [shape: f32[1,16], index: 6, kind: input, shape index: {}]
  %s7 = inlined_call_operand.vmem [shape: f32[2,16,16,16], index: 7, kind: output, shape index: {}]
  %s8 = sld [smem:[#allocation0]]
  $region61: #{fwd.2} parent=0
    _
  %s10 = ssub.s32 1, %s8
  %s11 = scalar_select 0, %s10, %s8
  loop: start=0, step=1, limit=6
  $region2: #{fwd.2} parent=0 // loop_pre_header
    _
  $region3: #{fwd.2} parent=0 // loop_header
    %s13 = sphi 0, %s17
    %p14 = scmp.ge.s32.totalorder %s13, 6
    %s20 = sphi 0, %s32
    %s21 = sphi 0, %s28
    %s22 = sphi 0, %s20
    %s23 = sphi 0, %s21
    %s24 = sphi 0, %s22
    %s25 = sphi 0, %s23
    %s35 = sphi 0, %s37
    %s38 = sphi 0, %s35
    %s39 = sphi 0, %s38
    %s55 = sphi 0, %s39
    %s59 = sphi 0, %s59
    %s61 = sphi 0, %s59
    %s62 = sphi 0, %s61
    %s76 = sphi 0, %s62
    %s80 = sphi 0, %s80
    %s82 = sphi 0, %s80
    %s83 = sphi 0, %s82
    %s97 = sphi 0, %s83
    %s101 = sphi 0, %s101
    %s103 = sphi 0, %s101
    %s104 = sphi 0, %s103
    %s118 = sphi 0, %s104
    %s122 = sphi 0, %s122
    %s124 = sphi 0, %s122
    %s125 = sphi 0, %s124
    %s139 = sphi 0, %s125
    %s143 = sphi 0, %s143
    %s145 = sphi 0, %s143
    %s146 = sphi 0, %s145
    %s160 = sphi 0, %s146
    %s164 = sphi 0, %s164
    %s166 = sphi 0, %s164
    %s167 = sphi 0, %s166
    %s181 = sphi 0, %s167
    %s189 = sphi 0, %s191
    %s192 = sphi 0, %s189
    %s193 = sphi 0, %s192
    %s209 = sphi 0, %s193
  $region4: #{fwd.2} parent=0 // loop_header_branch
    %16 = sbr.rel (%p14) target = $region8
  $region5: #{fwd.2} parent=0 // loop_body
    %s18 = ssub.s32 %s13, 1
    %s19 = ssub.s32 %s13, 2
    %s26 = sadd.s32 1, %s21
    %p27 = scmp.ge.s32.totalorder %s26, 2
    %s28 = scalar_select %p27, 0, %s26
    %s29 = sadd.s32 1, %s20
    %s30 = scalar_select %p27, %s29, %s20
    %p31 = scmp.ge.s32.totalorder %s30, 2
    %s32 = scalar_select %p31, 0, %s30
    %s33 = ssub.s32 %s20, %s32
    %p34 = scmp.eq.s32.totalorder %s33, 0
    %s36 = sadd.s32 %s35, 1
    %s37 = scalar_select %p34, %s35, %s36
    %p40 = pneg %p34
    %p41 = scmp.eq.s32.totalorder %s13, 3
    %p42 = por %p40, %p41
    %p43 = scmp.ne.s32.totalorder %s35, %s38
    %p44 = scmp.eq.s32.totalorder %s13, 0
    %p45 = por %p43, %p44
    %p46 = scmp.ne.s32.totalorder %s35, %s38
    %p47 = scmp.eq.s32.totalorder %s18, 3
    %p48 = por %p46, %p47
    %p49 = scmp.ne.s32.totalorder %s38, %s39
    %p50 = scmp.eq.s32.totalorder %s18, 0
    %p51 = por %p49, %p50
    %p52 = scmp.ne.s32.totalorder %s38, %s39
    %p53 = scmp.eq.s32.totalorder %s19, 3
    %p54 = por %p52, %p53
    %p56 = scmp.ne.s32.totalorder %s39, %s55
    %p57 = scmp.eq.s32.totalorder %s19, 0
    %p58 = por %p56, %p57
    %s60 = sadd.s32 %s59, 1
    %p63 = scmp.eq.s32.totalorder %s13, 3
    %p64 = scmp.ne.s32.totalorder %s59, %s61
    %p65 = scmp.eq.s32.totalorder %s13, 0
    %p66 = por %p64, %p65
    %p67 = scmp.ne.s32.totalorder %s59, %s61
    %p68 = scmp.eq.s32.totalorder %s18, 3
    %p69 = por %p67, %p68
    %p70 = scmp.ne.s32.totalorder %s61, %s62
    %p71 = scmp.eq.s32.totalorder %s18, 0
    %p72 = por %p70, %p71
    %p73 = scmp.ne.s32.totalorder %s61, %s62
    %p74 = scmp.eq.s32.totalorder %s19, 3
    %p75 = por %p73, %p74
    %p77 = scmp.ne.s32.totalorder %s62, %s76
    %p78 = scmp.eq.s32.totalorder %s19, 0
    %p79 = por %p77, %p78
    %s81 = sadd.s32 %s80, 1
    %p84 = scmp.eq.s32.totalorder %s13, 3
    %p85 = scmp.ne.s32.totalorder %s80, %s82
    %p86 = scmp.eq.s32.totalorder %s13, 0
    %p87 = por %p85, %p86
    %p88 = scmp.ne.s32.totalorder %s80, %s82
    %p89 = scmp.eq.s32.totalorder %s18, 3
    %p90 = por %p88, %p89
    %p91 = scmp.ne.s32.totalorder %s82, %s83
    %p92 = scmp.eq.s32.totalorder %s18, 0
    %p93 = por %p91, %p92
    %p94 = scmp.ne.s32.totalorder %s82, %s83
    %p95 = scmp.eq.s32.totalorder %s19, 3
    %p96 = por %p94, %p95
    %p98 = scmp.ne.s32.totalorder %s83, %s97
    %p99 = scmp.eq.s32.totalorder %s19, 0
    %p100 = por %p98, %p99
    %s102 = sadd.s32 %s101, 1
    %p105 = scmp.eq.s32.totalorder %s13, 3
    %p106 = scmp.ne.s32.totalorder %s101, %s103
    %p107 = scmp.eq.s32.totalorder %s13, 0
    %p108 = por %p106, %p107
    %p109 = scmp.ne.s32.totalorder %s101, %s103
    %p110 = scmp.eq.s32.totalorder %s18, 3
    %p111 = por %p109, %p110
    %p112 = scmp.ne.s32.totalorder %s103, %s104
    %p113 = scmp.eq.s32.totalorder %s18, 0
    %p114 = por %p112, %p113
    %p115 = scmp.ne.s32.totalorder %s103, %s104
    %p116 = scmp.eq.s32.totalorder %s19, 3
    %p117 = por %p115, %p116
    %p119 = scmp.ne.s32.totalorder %s104, %s118
    %p120 = scmp.eq.s32.totalorder %s19, 0
    %p121 = por %p119, %p120
    %s123 = sadd.s32 %s122, 1
    %p126 = scmp.eq.s32.totalorder %s13, 3
    %p127 = scmp.ne.s32.totalorder %s122, %s124
    %p128 = scmp.eq.s32.totalorder %s13, 0
    %p129 = por %p127, %p128
    %p130 = scmp.ne.s32.totalorder %s122, %s124
    %p131 = scmp.eq.s32.totalorder %s18, 3
    %p132 = por %p130, %p131
    %p133 = scmp.ne.s32.totalorder %s124, %s125
    %p134 = scmp.eq.s32.totalorder %s18, 0
    %p135 = por %p133, %p134
    %p136 = scmp.ne.s32.totalorder %s124, %s125
    %p137 = scmp.eq.s32.totalorder %s19, 3
    %p138 = por %p136, %p137
    %p140 = scmp.ne.s32.totalorder %s125, %s139
    %p141 = scmp.eq.s32.totalorder %s19, 0
    %p142 = por %p140, %p141
    %s144 = sadd.s32 %s143, 1
    %p147 = scmp.eq.s32.totalorder %s13, 3
    %p148 = scmp.ne.s32.totalorder %s143, %s145
    %p149 = scmp.eq.s32.totalorder %s13, 0
    %p150 = por %p148, %p149
    %p151 = scmp.ne.s32.totalorder %s143, %s145
    %p152 = scmp.eq.s32.totalorder %s18, 3
    %p153 = por %p151, %p152
    %p154 = scmp.ne.s32.totalorder %s145, %s146
    %p155 = scmp.eq.s32.totalorder %s18, 0
    %p156 = por %p154, %p155
    %p157 = scmp.ne.s32.totalorder %s145, %s146
    %p158 = scmp.eq.s32.totalorder %s19, 3
    %p159 = por %p157, %p158
    %p161 = scmp.ne.s32.totalorder %s146, %s160
    %p162 = scmp.eq.s32.totalorder %s19, 0
    %p163 = por %p161, %p162
    %s165 = sadd.s32 %s164, 1
    %p168 = scmp.eq.s32.totalorder %s13, 3
    %p169 = scmp.ne.s32.totalorder %s164, %s166
    %p170 = scmp.eq.s32.totalorder %s13, 0
    %p171 = por %p169, %p170
    %p172 = scmp.ne.s32.totalorder %s164, %s166
    %p173 = scmp.eq.s32.totalorder %s18, 3
    %p174 = por %p172, %p173
    %p175 = scmp.ne.s32.totalorder %s166, %s167
    %p176 = scmp.eq.s32.totalorder %s18, 0
    %p177 = por %p175, %p176
    %p178 = scmp.ne.s32.totalorder %s166, %s167
    %p179 = scmp.eq.s32.totalorder %s19, 3
    %p180 = por %p178, %p179
    %p182 = scmp.ne.s32.totalorder %s167, %s181
    %p183 = scmp.eq.s32.totalorder %s19, 0
    %p184 = por %p182, %p183
    %s185 = ssub.s32 %s20, %s32
    %s186 = ssub.s32 %s21, %s28
    %s187 = sor.u32 %s185, %s186
    %p188 = scmp.eq.s32.totalorder %s187, 0
    %s190 = sadd.s32 %s189, 1
    %s191 = scalar_select %p188, %s189, %s190
    %p194 = pneg %p188
    %p195 = scmp.eq.s32.totalorder %s13, 3
    %p196 = por %p194, %p195
    %p197 = scmp.ne.s32.totalorder %s189, %s192
    %p198 = scmp.eq.s32.totalorder %s13, 0
    %p199 = por %p197, %p198
    %p200 = scmp.ne.s32.totalorder %s189, %s192
    %p201 = scmp.eq.s32.totalorder %s18, 3
    %p202 = por %p200, %p201
    %p203 = scmp.ne.s32.totalorder %s192, %s193
    %p204 = scmp.eq.s32.totalorder %s18, 0
    %p205 = por %p203, %p204
    %p206 = scmp.ne.s32.totalorder %s192, %s193
    %p207 = scmp.eq.s32.totalorder %s19, 3
    %p208 = por %p206, %p207
    %p210 = scmp.ne.s32.totalorder %s193, %s209
    %p211 = scmp.eq.s32.totalorder %s19, 0
    %p212 = por %p210, %p211
    %p213 = scmp.le.s32.totalorder 1, %s13
    %p214 = scmp.lt.s32.totalorder %s13, 5
    %p215 = pnand %p213, %p214
    %p216 = pneg %p215
    // Predicated region
    $region9: #{fwd.2} parent=5 // pred_check
      _
    $region10: #{fwd.2} parent=5 // pred_check_branch
      %218 = sbr.rel (%p215) target = $region12
    $region11: #{fwd.2} parent=5 // pred_region
      %s219 = ssub.s32 %s13, 1
      // Predicated region
      $region13: #{fwd.2} parent=11 // pred_check
        %p220 = pneg %p72
      $region14: #{fwd.2} parent=11 // pred_check_branch
        %222 = sbr.rel (%p220) target = $region16
      $region15: #{fwd.2} parent=11 // pred_region
        _
      $region16: #{fwd.2} parent=11 // pred_fallthru
        _
      // Predicated region
      $region17: #{fwd.2} parent=11 // pred_check
        %p223 = pneg %p93
      $region18: #{fwd.2} parent=11 // pred_check_branch
        %225 = sbr.rel (%p223) target = $region20
      $region19: #{fwd.2} parent=11 // pred_region
        _
      $region20: #{fwd.2} parent=11 // pred_fallthru
        _
      // Predicated region
      $region21: #{fwd.2} parent=11 // pred_check
        %p226 = pneg %p114
      $region22: #{fwd.2} parent=11 // pred_check_branch
        %228 = sbr.rel (%p226) target = $region24
      $region23: #{fwd.2} parent=11 // pred_region
        _
      $region24: #{fwd.2} parent=11 // pred_fallthru
        _
      // Predicated region
      $region25: #{fwd.2} parent=11 // pred_check
        %p229 = pneg %p135
      $region26: #{fwd.2} parent=11 // pred_check_branch
        %231 = sbr.rel (%p229) target = $region28
      $region27: #{fwd.2} parent=11 // pred_region
        _
      $region28: #{fwd.2} parent=11 // pred_fallthru
        _
      // Predicated region
      $region29: #{fwd.2} parent=11 // pred_check
        %p232 = pneg %p156
      $region30: #{fwd.2} parent=11 // pred_check_branch
        %234 = sbr.rel (%p232) target = $region32
      $region31: #{fwd.2} parent=11 // pred_region
        _
      $region32: #{fwd.2} parent=11 // pred_fallthru
        _
      // Predicated region
      $region33: #{fwd.2} parent=11 // pred_check
        %p235 = pneg %p177
      $region34: #{fwd.2} parent=11 // pred_check_branch
        %237 = sbr.rel (%p235) target = $region36
      $region35: #{fwd.2} parent=11 // pred_region
        _
      $region36: #{fwd.2} parent=11 // pred_fallthru
        _
    $region12: #{fwd.2} parent=5 // pred_fallthru
      _
    %p238 = scmp.lt.s32.totalorder %s13, 4
    // Predicated region
    $region37: #{fwd.2} parent=5 // pred_check
      %p239 = pneg %p238
    $region38: #{fwd.2} parent=5 // pred_check_branch
      %241 = sbr.rel (%p239) target = $region40
    $region39: #{fwd.2} parent=5 // pred_region
      // Predicated region
      $region41: #{fwd.2} parent=39 // pred_check
        %p242 = pneg %p45
      $region42: #{fwd.2} parent=39 // pred_check_branch
        %244 = sbr.rel (%p242) target = $region44
      $region43: #{fwd.2} parent=39 // pred_region
        %p245 = scmp.lt.s32.totalorder %s20, 1
        %s246 = scalar_select %p245, %s20, 1
        %s247 = smul.addr %s246, 54
        %s248 = smul.addr %s247, 8
        %s249 = scalar_lea.vmem %s0, %s248
      $region44: #{fwd.2} parent=39 // pred_fallthru
        _
    $region40: #{fwd.2} parent=5 // pred_fallthru
      _
    %p250 = scmp.le.s32.totalorder 1, %s13
    %p251 = scmp.lt.s32.totalorder %s13, 5
    %p252 = pnand %p250, %p251
    %p253 = pneg %p252
    // Predicated region
    $region45: #{fwd.2} parent=5 // pred_check
      _
    $region46: #{fwd.2} parent=5 // pred_check_branch
      %255 = sbr.rel (%p252) target = $region48
    $region47: #{fwd.2} parent=5 // pred_region
      %s256 = ssub.s32 %s13, 1
      %p257 = scmp.lt.s32.totalorder %s22, 1
      %s258 = scalar_select %p257, %s22, 1
      %s259 = smul.addr %s258, 54
      %s260 = smul.addr %s259, 8
      %s261 = scalar_lea.vmem %s0, %s260
      %p262 = pneg %p51
      %p263 = pneg %p48
      %p264 = pneg %p72
      %p265 = pneg %p69
      %p266 = pneg %p93
      %p267 = pneg %p90
      %p268 = pneg %p114
      %p269 = pneg %p111
      %p270 = pneg %p135
      %p271 = pneg %p132
      %p272 = pneg %p156
      %p273 = pneg %p153
      %p274 = pneg %p177
      %p275 = pneg %p174
      %p276 = pneg %p205
      %p277 = pneg %p202
      %s278 = smul.u32 8, %s23
      %p279 = scmp.lt.s32.totalorder %s22, 1
      %s280 = scalar_select %p279, %s22, 1
      %p281 = scmp.lt.s32.totalorder %s278, 15
      %s282 = scalar_select %p281, %s278, 15
      %s283 = smul.addr %s282, 2
      %s284 = smul.addr %s280, 32
      %s285 = sadd.s32 %s283, %s284
      %s286 = smul.addr %s285, 8
      %s287 = scalar_lea.vmem %s7, %s286
      %p288 = scmp.lt.s32.totalorder %s22, 1
      %s289 = scalar_select %p288, %s22, 1
      %s290 = smul.addr %s289, 54
      %s291 = smul.addr %s290, 8
      %s292 = scalar_lea.vmem %s0, %s291
      %s293 = smul.u32 8, %s23
      %p294 = scmp.lt.s32.totalorder %s22, 1
      %s295 = scalar_select %p294, %s22, 1
      %p296 = scmp.lt.s32.totalorder %s293, 15
      %s297 = scalar_select %p296, %s293, 15
      %s298 = smul.addr %s297, 2
      %s299 = smul.addr %s295, 32
      %s300 = sadd.s32 %s298, %s299
      %s301 = smul.addr %s300, 8
      %s302 = scalar_lea.vmem %s7, %s301
      %s303 = smul.u32 8, %s23
      %s305 = smul.u32 %s23, 8
      %s306 = smul.u32 %s305, 24
      %s307 = scalar_lea.vmem %s292, %s306
      %v308 = vld [vmem:[%s307] sm:$0xff]
      %v309 = vld [vmem:[%s307 + $0x8] sm:$0xff]
      %v310 = vld [vmem:[%s307 + $0x10] sm:$0xff]
      %v311 = vld [vmem:[%s307 + $0x18] sm:$0xff]
      %v312 = vld [vmem:[%s307 + $0x20] sm:$0xff]
      %v313 = vld [vmem:[%s307 + $0x28] sm:$0xff]
      %v314 = vld [vmem:[%s307 + $0x30] sm:$0xff]
      %v315 = vld [vmem:[%s307 + $0x38] sm:$0xff]
      %v316 = vld [vmem:[%s307 + $0x40] sm:$0xff]
      %v317 = vld [vmem:[%s307 + $0x48] sm:$0xff]
      %v318 = vld [vmem:[%s307 + $0x50] sm:$0xff]
      %v319 = vld [vmem:[%s307 + $0x58] sm:$0xff]
      %v320 = vld [vmem:[%s307 + $0x60] sm:$0xff]
      %v321 = vld [vmem:[%s307 + $0x68] sm:$0xff]
      %v322 = vld [vmem:[%s307 + $0x70] sm:$0xff]
      %v323 = vld [vmem:[%s307 + $0x78] sm:$0xff]
      %v324 = vld [vmem:[%s307 + $0x80] sm:$0xff]
      %v325 = vld [vmem:[%s307 + $0x88] sm:$0xff]
      %v326 = vld [vmem:[%s307 + $0x90] sm:$0xff]
      %v327 = vld [vmem:[%s307 + $0x98] sm:$0xff]
      %v328 = vld [vmem:[%s307 + $0xa0] sm:$0xff]
      %v329 = vld [vmem:[%s307 + $0xa8] sm:$0xff]
      %v330 = vld [vmem:[%s307 + $0xb0] sm:$0xff]
      %v331 = vld [vmem:[%s307 + $0xb8] sm:$0xff]
      %v332 = vld [vmem:[%s307 + $0xc0] sm:$0xff]
      %v333 = vld [vmem:[%s307 + $0xc8] sm:$0xff]
      %v334 = vld [vmem:[%s307 + $0xd0] sm:$0xff]
      %v335 = vld [vmem:[%s307 + $0xd8] sm:$0xff]
      %v336 = vld [vmem:[%s307 + $0xe0] sm:$0xff]
      %v337 = vld [vmem:[%s307 + $0xe8] sm:$0xff]
      %v338 = vpack.c.bf16 %v309, %v308
      %v339 = vpack.c.bf16 %v311, %v310
      %v340 = vpack.c.bf16 %v313, %v312
      %v341 = vpack.c.bf16 %v315, %v314
      %v342 = vpack.c.bf16 %v317, %v316
      %v343 = vpack.c.bf16 %v319, %v318
      %v344 = vpack.c.bf16 %v321, %v320
      %v345 = vpack.c.bf16 %v323, %v322
      %v346 = vpack.c.bf16 %v325, %v324
      %v347 = vpack.c.bf16 %v327, %v326
      %v348 = vpack.c.bf16 %v329, %v328
      %v349 = vpack.c.bf16 %v331, %v330
      %v350 = vpack.c.bf16 %v333, %v332
      %v351 = vpack.c.bf16 %v335, %v334
      %v352 = vpack.c.bf16 %v337, %v336
      %v353 = vld [vmem:[%s1] sm:$0xf]
      %v354 = vld [vmem:[%s1 + $0x4] sm:$0xf]
      %v355 = vld [vmem:[%s2] sm:$0x1]
      %v357 = vperm.slane %v355, 0
      %v361 = vunpack.c.l.b16 %v353
      %v362 = vunpack.c.l.b16 %v354
      %v363 = vpack.c.b16 %v362, %v361
      %vm365 = vcmask 130048
      %v367 = vsel %vm365, %v338, 0
      %v370 = vsel %vm365, %v339, 0
      %v373 = vsel %vm365, %v340, 0
      %v376 = vsel %vm365, %v341, 0
      %v379 = vsel %vm365, %v342, 0
      %v382 = vsel %vm365, %v343, 0
      %v385 = vsel %vm365, %v344, 0
      %v388 = vsel %vm365, %v345, 0
      %v391 = vsel %vm365, %v346, 0
      %v394 = vsel %vm365, %v347, 0
      %v397 = vsel %vm365, %v348, 0
      %v400 = vsel %vm365, %v349, 0
      %v403 = vsel %vm365, %v350, 0
      %v406 = vsel %vm365, %v351, 0
      %v409 = vsel %vm365, %v352, 0
      %411 = vmatpush.bf16.msra.mxu0 0
      %412 = vmatpush.bf16.msra.mxu0 0
      %413 = vmatpush.bf16.msra.mxu0 0
      %414 = vmatpush.bf16.msra.mxu0 0
      %415 = vmatpush.bf16.msra.mxu0 0
      %416 = vmatpush.bf16.msra.mxu0 0
      %417 = vmatpush.bf16.msra.mxu0 0
      %418 = vmatpush.bf16.msra.mxu0 %v363
      %419 = vmatmul.bf16.gmra.mxu0 %v367
      %v420 = vpop.f32.mrf.mxu0
      %v421 = vadd.f32 %v357, %v420
      %v422 = vpop.f32.mrf.mxu0
      %v423 = vadd.f32 %v357, %v422
      %424 = vmatmul.bf16.gmra.mxu0 %v370
      %v425 = vpop.f32.mrf.mxu0
      %v426 = vadd.f32 %v357, %v425
      %v427 = vpop.f32.mrf.mxu0
      %v428 = vadd.f32 %v357, %v427
      %429 = vmatmul.bf16.gmra.mxu0 %v373
      %v430 = vpop.f32.mrf.mxu0
      %v431 = vadd.f32 %v357, %v430
      %v432 = vpop.f32.mrf.mxu0
      %v433 = vadd.f32 %v357, %v432
      %434 = vmatmul.bf16.gmra.mxu0 %v376
      %v435 = vpop.f32.mrf.mxu0
      %v436 = vadd.f32 %v357, %v435
      %v437 = vpop.f32.mrf.mxu0
      %v438 = vadd.f32 %v357, %v437
      %439 = vmatmul.bf16.gmra.mxu0 %v379
      %v440 = vpop.f32.mrf.mxu0
      %v441 = vadd.f32 %v357, %v440
      %v442 = vpop.f32.mrf.mxu0
      %v443 = vadd.f32 %v357, %v442
      %444 = vmatmul.bf16.gmra.mxu0 %v382
      %v445 = vpop.f32.mrf.mxu0
      %v446 = vadd.f32 %v357, %v445
      %v447 = vpop.f32.mrf.mxu0
      %v448 = vadd.f32 %v357, %v447
      %449 = vmatmul.bf16.gmra.mxu0 %v385
      %v450 = vpop.f32.mrf.mxu0
      %v451 = vadd.f32 %v357, %v450
      %v452 = vpop.f32.mrf.mxu0
      %v453 = vadd.f32 %v357, %v452
      %454 = vmatmul.bf16.gmra.mxu0 %v388
      %v455 = vpop.f32.mrf.mxu0
      %v456 = vadd.f32 %v357, %v455
      %v457 = vpop.f32.mrf.mxu0
      %v458 = vadd.f32 %v357, %v457
      %459 = vmatmul.bf16.gmra.mxu0 %v391
      %v460 = vpop.f32.mrf.mxu0
      %v461 = vadd.f32 %v357, %v460
      %v462 = vpop.f32.mrf.mxu0
      %v463 = vadd.f32 %v357, %v462
      %464 = vmatmul.bf16.gmra.mxu0 %v394
      %v465 = vpop.f32.mrf.mxu0
      %v466 = vadd.f32 %v357, %v465
      %v467 = vpop.f32.mrf.mxu0
      %v468 = vadd.f32 %v357, %v467
      %469 = vmatmul.bf16.gmra.mxu0 %v397
      %v470 = vpop.f32.mrf.mxu0
      %v471 = vadd.f32 %v357, %v470
      %v472 = vpop.f32.mrf.mxu0
      %v473 = vadd.f32 %v357, %v472
      %474 = vmatmul.bf16.gmra.mxu0 %v400
      %v475 = vpop.f32.mrf.mxu0
      %v476 = vadd.f32 %v357, %v475
      %v477 = vpop.f32.mrf.mxu0
      %v478 = vadd.f32 %v357, %v477
      %479 = vmatmul.bf16.gmra.mxu0 %v403
      %v480 = vpop.f32.mrf.mxu0
      %v481 = vadd.f32 %v357, %v480
      %v482 = vpop.f32.mrf.mxu0
      %v483 = vadd.f32 %v357, %v482
      %484 = vmatmul.bf16.gmra.mxu0 %v406
      %v485 = vpop.f32.mrf.mxu0
      %v486 = vadd.f32 %v357, %v485
      %v487 = vpop.f32.mrf.mxu0
      %v488 = vadd.f32 %v357, %v487
      %489 = vmatmul.bf16.gmra.mxu0 %v409
      %v490 = vpop.f32.mrf.mxu0
      %v491 = vadd.f32 %v357, %v490
      %v492 = vpop.f32.mrf.mxu0
      %v493 = vadd.f32 %v357, %v492
      %494 = vdwg.mxu0
      %v495 = vmax.f32 %v421, 0.0
      %v496 = vmax.f32 %v423, 0.0
      %v497 = vmax.f32 %v426, 0.0
      %v498 = vmax.f32 %v428, 0.0
      %v499 = vmax.f32 %v431, 0.0
      %v500 = vmax.f32 %v433, 0.0
      %v501 = vmax.f32 %v436, 0.0
      %v502 = vmax.f32 %v438, 0.0
      %v503 = vmax.f32 %v441, 0.0
      %v504 = vmax.f32 %v443, 0.0
      %v505 = vmax.f32 %v446, 0.0
      %v506 = vmax.f32 %v448, 0.0
      %v507 = vmax.f32 %v451, 0.0
      %v508 = vmax.f32 %v453, 0.0
      %v509 = vmax.f32 %v456, 0.0
      %v510 = vmax.f32 %v458, 0.0
      %v511 = vmax.f32 %v461, 0.0
      %v512 = vmax.f32 %v463, 0.0
      %v513 = vmax.f32 %v466, 0.0
      %v514 = vmax.f32 %v468, 0.0
      %v515 = vmax.f32 %v471, 0.0
      %v516 = vmax.f32 %v473, 0.0
      %v517 = vmax.f32 %v476, 0.0
      %v518 = vmax.f32 %v478, 0.0
      %v519 = vmax.f32 %v481, 0.0
      %v520 = vmax.f32 %v483, 0.0
      %v521 = vmax.f32 %v486, 0.0
      %v522 = vmax.f32 %v488, 0.0
      %v523 = vmax.f32 %v491, 0.0
      %v524 = vmax.f32 %v493, 0.0
      %v525 = vmin.f32 %v495, 6.0
      %v526 = vmin.f32 %v496, 6.0
      %v527 = vmin.f32 %v497, 6.0
      %v528 = vmin.f32 %v498, 6.0
      %v529 = vmin.f32 %v499, 6.0
      %v530 = vmin.f32 %v500, 6.0
      %v531 = vmin.f32 %v501, 6.0
      %v532 = vmin.f32 %v502, 6.0
      %v533 = vmin.f32 %v503, 6.0
      %v534 = vmin.f32 %v504, 6.0
      %v535 = vmin.f32 %v505, 6.0
      %v536 = vmin.f32 %v506, 6.0
      %v537 = vmin.f32 %v507, 6.0
      %v538 = vmin.f32 %v508, 6.0
      %v539 = vmin.f32 %v509, 6.0
      %v540 = vmin.f32 %v510, 6.0
      %v541 = vmin.f32 %v511, 6.0
      %v542 = vmin.f32 %v512, 6.0
      %v543 = vmin.f32 %v513, 6.0
      %v544 = vmin.f32 %v514, 6.0
      %v545 = vmin.f32 %v515, 6.0
      %v546 = vmin.f32 %v516, 6.0
      %v547 = vmin.f32 %v517, 6.0
      %v548 = vmin.f32 %v518, 6.0
      %v549 = vmin.f32 %v519, 6.0
      %v550 = vmin.f32 %v520, 6.0
      %v551 = vmin.f32 %v521, 6.0
      %v552 = vmin.f32 %v522, 6.0
      %v553 = vmin.f32 %v523, 6.0
      %v554 = vmin.f32 %v524, 6.0
      %v555 = vstv %s305
      %v556 = vadd.s32 %v555, 1
      %v557 = vadd.s32 %v555, 2
      %v558 = vadd.s32 %v555, 3
      %v559 = vadd.s32 %v555, 4
      %v560 = vadd.s32 %v555, 5
      %v561 = vadd.s32 %v555, 6
      %v562 = vadd.s32 %v555, 7
      %v563 = vadd.s32 %v555, 8
      %v564 = vadd.s32 %v555, 9
      %v565 = vlaneseq
      %v566 = vshrl.u32 %v565, 7
      %v567 = vadd.s32 %v566, 8
      %v568 = vadd.s32 %v566, 16
      %vm569 = vcmp.ge.s32.totalorder %v555, 1
      %vm570 = vcmp.ge.s32.totalorder %v556, 1
      %vm571 = vcmp.ge.s32.totalorder %v557, 1
      %vm572 = vcmp.ge.s32.totalorder %v558, 1
      %vm573 = vcmp.ge.s32.totalorder %v559, 1
      %vm574 = vcmp.ge.s32.totalorder %v560, 1
      %vm575 = vcmp.ge.s32.totalorder %v561, 1
      %vm576 = vcmp.ge.s32.totalorder %v562, 1
      %vm577 = vcmp.ge.s32.totalorder %v563, 1
      %vm578 = vcmp.ge.s32.totalorder %v564, 1
      %vm579 = vcmp.le.s32.totalorder %v555, 16
      %vm580 = vcmp.le.s32.totalorder %v556, 16
      %vm581 = vcmp.le.s32.totalorder %v557, 16
      %vm582 = vcmp.le.s32.totalorder %v558, 16
      %vm583 = vcmp.le.s32.totalorder %v559, 16
      %vm584 = vcmp.le.s32.totalorder %v560, 16
      %vm585 = vcmp.le.s32.totalorder %v561, 16
      %vm586 = vcmp.le.s32.totalorder %v562, 16
      %vm587 = vcmp.le.s32.totalorder %v563, 16
      %vm588 = vcmp.le.s32.totalorder %v564, 16
      %vm589 = vmand %vm569, %vm579
      %vm590 = vmand %vm570, %vm580
      %vm591 = vmand %vm571, %vm581
      %vm592 = vmand %vm572, %vm582
      %vm593 = vmand %vm573, %vm583
      %vm594 = vmand %vm574, %vm584
      %vm595 = vmand %vm575, %vm585
      %vm596 = vmand %vm576, %vm586
      %vm597 = vmand %vm577, %vm587
      %vm598 = vmand %vm578, %vm588
      %vm599 = vcmp.ge.s32.totalorder %v566, 1
      %vm600 = vcmp.ge.s32.totalorder %v567, 1
      %vm601 = vcmp.ge.s32.totalorder %v568, 1
      %vm602 = vmand %vm589, %vm599
      %vm603 = vmand %vm589, %vm600
      %vm604 = vmand %vm589, %vm601
      %vm605 = vmand %vm590, %vm599
      %vm606 = vmand %vm590, %vm600
      %vm607 = vmand %vm590, %vm601
      %vm608 = vmand %vm591, %vm599
      %vm609 = vmand %vm591, %vm600
      %vm610 = vmand %vm591, %vm601
      %vm611 = vmand %vm592, %vm599
      %vm612 = vmand %vm592, %vm600
      %vm613 = vmand %vm592, %vm601
      %vm614 = vmand %vm593, %vm599
      %vm615 = vmand %vm593, %vm600
      %vm616 = vmand %vm593, %vm601
      %vm617 = vmand %vm594, %vm599
      %vm618 = vmand %vm594, %vm600
      %vm619 = vmand %vm594, %vm601
      %vm620 = vmand %vm595, %vm599
      %vm621 = vmand %vm595, %vm600
      %vm622 = vmand %vm595, %vm601
      %vm623 = vmand %vm596, %vm599
      %vm624 = vmand %vm596, %vm600
      %vm625 = vmand %vm596, %vm601
      %vm626 = vmand %vm597, %vm599
      %vm627 = vmand %vm597, %vm600
      %vm628 = vmand %vm597, %vm601
      %vm629 = vmand %vm598, %vm599
      %vm630 = vmand %vm598, %vm600
      %vm631 = vmand %vm598, %vm601
      %vm632 = vcmp.le.s32.totalorder %v566, 16
      %vm633 = vcmp.le.s32.totalorder %v567, 16
      %vm634 = vcmp.le.s32.totalorder %v568, 16
      %vm635 = vmand %vm602, %vm632
      %vm636 = vmand %vm603, %vm633
      %vm637 = vmand %vm604, %vm634
      %vm638 = vmand %vm605, %vm632
      %vm639 = vmand %vm606, %vm633
      %vm640 = vmand %vm607, %vm634
      %vm641 = vmand %vm608, %vm632
      %vm642 = vmand %vm609, %vm633
      %vm643 = vmand %vm610, %vm634
      %vm644 = vmand %vm611, %vm632
      %vm645 = vmand %vm612, %vm633
      %vm646 = vmand %vm613, %vm634
      %vm647 = vmand %vm614, %vm632
      %vm648 = vmand %vm615, %vm633
      %vm649 = vmand %vm616, %vm634
      %vm650 = vmand %vm617, %vm632
      %vm651 = vmand %vm618, %vm633
      %vm652 = vmand %vm619, %vm634
      %vm653 = vmand %vm620, %vm632
      %vm654 = vmand %vm621, %vm633
      %vm655 = vmand %vm622, %vm634
      %vm656 = vmand %vm623, %vm632
      %vm657 = vmand %vm624, %vm633
      %vm658 = vmand %vm625, %vm634
      %vm659 = vmand %vm626, %vm632
      %vm660 = vmand %vm627, %vm633
      %vm661 = vmand %vm628, %vm634
      %vm662 = vmand %vm629, %vm632
      %vm663 = vmand %vm630, %vm633
      %vm664 = vmand %vm631, %vm634
      %v665 = vsel %vm635, 1, 0
      %v666 = vsel %vm636, 1, 0
      %v667 = vsel %vm637, 1, 0
      %v668 = vsel %vm638, 1, 0
      %v669 = vsel %vm639, 1, 0
      %v670 = vsel %vm640, 1, 0
      %v671 = vsel %vm641, 1, 0
      %v672 = vsel %vm642, 1, 0
      %v673 = vsel %vm643, 1, 0
      %v674 = vsel %vm644, 1, 0
      %v675 = vsel %vm645, 1, 0
      %v676 = vsel %vm646, 1, 0
      %v677 = vsel %vm647, 1, 0
      %v678 = vsel %vm648, 1, 0
      %v679 = vsel %vm649, 1, 0
      %v680 = vsel %vm650, 1, 0
      %v681 = vsel %vm651, 1, 0
      %v682 = vsel %vm652, 1, 0
      %v683 = vsel %vm653, 1, 0
      %v684 = vsel %vm654, 1, 0
      %v685 = vsel %vm655, 1, 0
      %v686 = vsel %vm656, 1, 0
      %v687 = vsel %vm657, 1, 0
      %v688 = vsel %vm658, 1, 0
      %v689 = vsel %vm659, 1, 0
      %v690 = vsel %vm660, 1, 0
      %v691 = vsel %vm661, 1, 0
      %v692 = vsel %vm662, 1, 0
      %v693 = vsel %vm663, 1, 0
      %v694 = vsel %vm664, 1, 0
      %vm695 = vcmp.eq.s32.totalorder %v665, 1
      %vm696 = vcmp.eq.s32.totalorder %v666, 1
      %vm697 = vcmp.eq.s32.totalorder %v667, 1
      %vm698 = vcmp.eq.s32.totalorder %v668, 1
      %vm699 = vcmp.eq.s32.totalorder %v669, 1
      %vm700 = vcmp.eq.s32.totalorder %v670, 1
      %vm701 = vcmp.eq.s32.totalorder %v671, 1
      %vm702 = vcmp.eq.s32.totalorder %v672, 1
      %vm703 = vcmp.eq.s32.totalorder %v673, 1
      %vm704 = vcmp.eq.s32.totalorder %v674, 1
      %vm705 = vcmp.eq.s32.totalorder %v675, 1
      %vm706 = vcmp.eq.s32.totalorder %v676, 1
      %vm707 = vcmp.eq.s32.totalorder %v677, 1
      %vm708 = vcmp.eq.s32.totalorder %v678, 1
      %vm709 = vcmp.eq.s32.totalorder %v679, 1
      %vm710 = vcmp.eq.s32.totalorder %v680, 1
      %vm711 = vcmp.eq.s32.totalorder %v681, 1
      %vm712 = vcmp.eq.s32.totalorder %v682, 1
      %vm713 = vcmp.eq.s32.totalorder %v683, 1
      %vm714 = vcmp.eq.s32.totalorder %v684, 1
      %vm715 = vcmp.eq.s32.totalorder %v685, 1
      %vm716 = vcmp.eq.s32.totalorder %v686, 1
      %vm717 = vcmp.eq.s32.totalorder %v687, 1
      %vm718 = vcmp.eq.s32.totalorder %v688, 1
      %vm719 = vcmp.eq.s32.totalorder %v689, 1
      %vm720 = vcmp.eq.s32.totalorder %v690, 1
      %vm721 = vcmp.eq.s32.totalorder %v691, 1
      %vm722 = vcmp.eq.s32.totalorder %v692, 1
      %vm723 = vcmp.eq.s32.totalorder %v693, 1
      %vm724 = vcmp.eq.s32.totalorder %v694, 1
      %v725 = vsel %vm695, %v525, 0.0
      %v726 = vsel %vm696, %v526, 0.0
      %v727 = vsel %vm697, %v527, 0.0
      %v728 = vsel %vm698, %v528, 0.0
      %v729 = vsel %vm699, %v529, 0.0
      %v730 = vsel %vm700, %v530, 0.0
      %v731 = vsel %vm701, %v531, 0.0
      %v732 = vsel %vm702, %v532, 0.0
      %v733 = vsel %vm703, %v533, 0.0
      %v734 = vsel %vm704, %v534, 0.0
      %v735 = vsel %vm705, %v535, 0.0
      %v736 = vsel %vm706, %v536, 0.0
      %v737 = vsel %vm707, %v537, 0.0
      %v738 = vsel %vm708, %v538, 0.0
      %v739 = vsel %vm709, %v539, 0.0
      %v740 = vsel %vm710, %v540, 0.0
      %v741 = vsel %vm711, %v541, 0.0
      %v742 = vsel %vm712, %v542, 0.0
      %v743 = vsel %vm713, %v543, 0.0
      %v744 = vsel %vm714, %v544, 0.0
      %v745 = vsel %vm715, %v545, 0.0
      %v746 = vsel %vm716, %v546, 0.0
      %v747 = vsel %vm717, %v547, 0.0
      %v748 = vsel %vm718, %v548, 0.0
      %v749 = vsel %vm719, %v549, 0.0
      %v750 = vsel %vm720, %v550, 0.0
      %v751 = vsel %vm721, %v551, 0.0
      %v752 = vsel %vm722, %v552, 0.0
      %v753 = vsel %vm723, %v553, 0.0
      %v754 = vsel %vm724, %v554, 0.0
      %vm755 = vcmask 785408
      %756 = vst.msk [vmem:[#allocation2] sm:$0xff] %vm755, %v725
      %757 = vst.msk [vmem:[#allocation2 + $0x8] sm:$0xff] %vm755, %v726
      %758 = vst.msk [vmem:[#allocation2 + $0x10] sm:$0xff] %vm755, %v727
      %759 = vst.msk [vmem:[#allocation2 + $0x18] sm:$0xff] %vm755, %v728
      %760 = vst.msk [vmem:[#allocation2 + $0x20] sm:$0xff] %vm755, %v729
      %761 = vst.msk [vmem:[#allocation2 + $0x28] sm:$0xff] %vm755, %v730
      %762 = vst.msk [vmem:[#allocation2 + $0x30] sm:$0xff] %vm755, %v731
      %763 = vst.msk [vmem:[#allocation2 + $0x38] sm:$0xff] %vm755, %v732
      %764 = vst.msk [vmem:[#allocation2 + $0x40] sm:$0xff] %vm755, %v733
      %765 = vst.msk [vmem:[#allocation2 + $0x48] sm:$0xff] %vm755, %v734
      %766 = vst.msk [vmem:[#allocation2 + $0x50] sm:$0xff] %vm755, %v735
      %767 = vst.msk [vmem:[#allocation2 + $0x58] sm:$0xff] %vm755, %v736
      %768 = vst.msk [vmem:[#allocation2 + $0x60] sm:$0xff] %vm755, %v737
      %769 = vst.msk [vmem:[#allocation2 + $0x68] sm:$0xff] %vm755, %v738
      %770 = vst.msk [vmem:[#allocation2 + $0x70] sm:$0xff] %vm755, %v739
      %771 = vst.msk [vmem:[#allocation2 + $0x78] sm:$0xff] %vm755, %v740
      %772 = vst.msk [vmem:[#allocation2 + $0x80] sm:$0xff] %vm755, %v741
      %773 = vst.msk [vmem:[#allocation2 + $0x88] sm:$0xff] %vm755, %v742
      %774 = vst.msk [vmem:[#allocation2 + $0x90] sm:$0xff] %vm755, %v743
      %775 = vst.msk [vmem:[#allocation2 + $0x98] sm:$0xff] %vm755, %v744
      %776 = vst.msk [vmem:[#allocation2 + $0xa0] sm:$0xff] %vm755, %v745
      %777 = vst.msk [vmem:[#allocation2 + $0xa8] sm:$0xff] %vm755, %v746
      %778 = vst.msk [vmem:[#allocation2 + $0xb0] sm:$0xff] %vm755, %v747
      %779 = vst.msk [vmem:[#allocation2 + $0xb8] sm:$0xff] %vm755, %v748
      %780 = vst.msk [vmem:[#allocation2 + $0xc0] sm:$0xff] %vm755, %v749
      %781 = vst.msk [vmem:[#allocation2 + $0xc8] sm:$0xff] %vm755, %v750
      %782 = vst.msk [vmem:[#allocation2 + $0xd0] sm:$0xff] %vm755, %v751
      %783 = vst.msk [vmem:[#allocation2 + $0xd8] sm:$0xff] %vm755, %v752
      %784 = vst.msk [vmem:[#allocation2 + $0xe0] sm:$0xff] %vm755, %v753
      %785 = vst.msk [vmem:[#allocation2 + $0xe8] sm:$0xff] %vm755, %v754
      %v786 = vld [vmem:[#allocation2] sm:$0xff]
      %v787 = vld [vmem:[#allocation2 + $0x8] sm:$0xff]
      %v788 = vld [vmem:[#allocation2 + $0x18] sm:$0xff]
      %v789 = vld [vmem:[#allocation2 + $0x20] sm:$0xff]
      %v790 = vld [vmem:[#allocation2 + $0x30] sm:$0xff]
      %v791 = vld [vmem:[#allocation2 + $0x38] sm:$0xff]
      %v792 = vld [vmem:[#allocation2 + $0x48] sm:$0xff]
      %v793 = vld [vmem:[#allocation2 + $0x50] sm:$0xff]
      %v794 = vld [vmem:[#allocation2 + $0x60] sm:$0xff]
      %v795 = vld [vmem:[#allocation2 + $0x68] sm:$0xff]
      %v796 = vld [vmem:[#allocation2 + $0x78] sm:$0xff]
      %v797 = vld [vmem:[#allocation2 + $0x80] sm:$0xff]
      %v798 = vld [vmem:[#allocation2 + $0x90] sm:$0xff]
      %v799 = vld [vmem:[#allocation2 + $0x98] sm:$0xff]
      %v800 = vld [vmem:[#allocation2 + $0xa8] sm:$0xff]
      %v801 = vld [vmem:[#allocation2 + $0xb0] sm:$0xff]
      %v802 = vld [vmem:[%s3] sm:$0x1]
      %v804 = vperm.slane %v802, 0
      %v806 = vmul.f32 %v786, %v804
      %v807 = vmul.f32 %v787, %v804
      %v808 = vmul.f32 %v788, %v804
      %v809 = vmul.f32 %v789, %v804
      %v810 = vmul.f32 %v790, %v804
      %v811 = vmul.f32 %v791, %v804
      %v812 = vmul.f32 %v792, %v804
      %v813 = vmul.f32 %v793, %v804
      %v814 = vmul.f32 %v794, %v804
      %v815 = vmul.f32 %v795, %v804
      %v816 = vmul.f32 %v796, %v804
      %v817 = vmul.f32 %v797, %v804
      %v818 = vmul.f32 %v798, %v804
      %v819 = vmul.f32 %v799, %v804
      %v820 = vmul.f32 %v800, %v804
      %v821 = vmul.f32 %v801, %v804
      %v822 = vld [vmem:[#allocation2 + $0x1] sm:$0xff]
      %v823 = vld [vmem:[#allocation2 + $0x9] sm:$0xff]
      %v824 = vld [vmem:[#allocation2 + $0x19] sm:$0xff]
      %v825 = vld [vmem:[#allocation2 + $0x21] sm:$0xff]
      %v826 = vld [vmem:[#allocation2 + $0x31] sm:$0xff]
      %v827 = vld [vmem:[#allocation2 + $0x39] sm:$0xff]
      %v828 = vld [vmem:[#allocation2 + $0x49] sm:$0xff]
      %v829 = vld [vmem:[#allocation2 + $0x51] sm:$0xff]
      %v830 = vld [vmem:[#allocation2 + $0x61] sm:$0xff]
      %v831 = vld [vmem:[#allocation2 + $0x69] sm:$0xff]
      %v832 = vld [vmem:[#allocation2 + $0x79] sm:$0xff]
      %v833 = vld [vmem:[#allocation2 + $0x81] sm:$0xff]
      %v834 = vld [vmem:[#allocation2 + $0x91] sm:$0xff]
      %v835 = vld [vmem:[#allocation2 + $0x99] sm:$0xff]
      %v836 = vld [vmem:[#allocation2 + $0xa9] sm:$0xff]
      %v837 = vld [vmem:[#allocation2 + $0xb1] sm:$0xff]
      %s838 = scalar_lea.vmem %s3, 1
      %v839 = vld [vmem:[%s838] sm:$0x1]
      %v841 = vperm.slane %v839, 0
      %v843 = vmul.f32 %v822, %v841
      %v844 = vmul.f32 %v823, %v841
      %v845 = vmul.f32 %v824, %v841
      %v846 = vmul.f32 %v825, %v841
      %v847 = vmul.f32 %v826, %v841
      %v848 = vmul.f32 %v827, %v841
      %v849 = vmul.f32 %v828, %v841
      %v850 = vmul.f32 %v829, %v841
      %v851 = vmul.f32 %v830, %v841
      %v852 = vmul.f32 %v831, %v841
      %v853 = vmul.f32 %v832, %v841
      %v854 = vmul.f32 %v833, %v841
      %v855 = vmul.f32 %v834, %v841
      %v856 = vmul.f32 %v835, %v841
      %v857 = vmul.f32 %v836, %v841
      %v858 = vmul.f32 %v837, %v841
      %v859 = vadd.f32 %v806, %v843
      %v860 = vadd.f32 %v807, %v844
      %v861 = vadd.f32 %v808, %v845
      %v862 = vadd.f32 %v809, %v846
      %v863 = vadd.f32 %v810, %v847
      %v864 = vadd.f32 %v811, %v848
      %v865 = vadd.f32 %v812, %v849
      %v866 = vadd.f32 %v813, %v850
      %v867 = vadd.f32 %v814, %v851
      %v868 = vadd.f32 %v815, %v852
      %v869 = vadd.f32 %v816, %v853
      %v870 = vadd.f32 %v817, %v854
      %v871 = vadd.f32 %v818, %v855
      %v872 = vadd.f32 %v819, %v856
      %v873 = vadd.f32 %v820, %v857
      %v874 = vadd.f32 %v821, %v858
      %v875 = vld [vmem:[#allocation2 + $0x2] sm:$0xff]
      %v876 = vld [vmem:[#allocation2 + $0xa] sm:$0xff]
      %v877 = vld [vmem:[#allocation2 + $0x1a] sm:$0xff]
      %v878 = vld [vmem:[#allocation2 + $0x22] sm:$0xff]
      %v879 = vld [vmem:[#allocation2 + $0x32] sm:$0xff]
      %v880 = vld [vmem:[#allocation2 + $0x3a] sm:$0xff]
      %v881 = vld [vmem:[#allocation2 + $0x4a] sm:$0xff]
      %v882 = vld [vmem:[#allocation2 + $0x52] sm:$0xff]
      %v883 = vld [vmem:[#allocation2 + $0x62] sm:$0xff]
      %v884 = vld [vmem:[#allocation2 + $0x6a] sm:$0xff]
      %v885 = vld [vmem:[#allocation2 + $0x7a] sm:$0xff]
      %v886 = vld [vmem:[#allocation2 + $0x82] sm:$0xff]
      %v887 = vld [vmem:[#allocation2 + $0x92] sm:$0xff]
      %v888 = vld [vmem:[#allocation2 + $0x9a] sm:$0xff]
      %v889 = vld [vmem:[#allocation2 + $0xaa] sm:$0xff]
      %v890 = vld [vmem:[#allocation2 + $0xb2] sm:$0xff]
      %s891 = scalar_lea.vmem %s3, 2
      %v892 = vld [vmem:[%s891] sm:$0x1]
      %v894 = vperm.slane %v892, 0
      %v896 = vmul.f32 %v875, %v894
      %v897 = vmul.f32 %v876, %v894
      %v898 = vmul.f32 %v877, %v894
      %v899 = vmul.f32 %v878, %v894
      %v900 = vmul.f32 %v879, %v894
      %v901 = vmul.f32 %v880, %v894
      %v902 = vmul.f32 %v881, %v894
      %v903 = vmul.f32 %v882, %v894
      %v904 = vmul.f32 %v883, %v894
      %v905 = vmul.f32 %v884, %v894
      %v906 = vmul.f32 %v885, %v894
      %v907 = vmul.f32 %v886, %v894
      %v908 = vmul.f32 %v887, %v894
      %v909 = vmul.f32 %v888, %v894
      %v910 = vmul.f32 %v889, %v894
      %v911 = vmul.f32 %v890, %v894
      %s912 = scalar_lea.vmem [#allocation2], 24
      %v913 = vld [vmem:[%s912] sm:$0xff]
      %v914 = vld [vmem:[%s912 + $0x8] sm:$0xff]
      %v915 = vld [vmem:[%s912 + $0x18] sm:$0xff]
      %v916 = vld [vmem:[%s912 + $0x20] sm:$0xff]
      %v917 = vld [vmem:[%s912 + $0x30] sm:$0xff]
      %v918 = vld [vmem:[%s912 + $0x38] sm:$0xff]
      %v919 = vld [vmem:[%s912 + $0x48] sm:$0xff]
      %v920 = vld [vmem:[%s912 + $0x50] sm:$0xff]
      %v921 = vld [vmem:[%s912 + $0x60] sm:$0xff]
      %v922 = vld [vmem:[%s912 + $0x68] sm:$0xff]
      %v923 = vld [vmem:[%s912 + $0x78] sm:$0xff]
      %v924 = vld [vmem:[%s912 + $0x80] sm:$0xff]
      %v925 = vld [vmem:[%s912 + $0x90] sm:$0xff]
      %v926 = vld [vmem:[%s912 + $0x98] sm:$0xff]
      %v927 = vld [vmem:[%s912 + $0xa8] sm:$0xff]
      %v928 = vld [vmem:[%s912 + $0xb0] sm:$0xff]
      %s929 = scalar_lea.vmem %s3, 3
      %v930 = vld [vmem:[%s929] sm:$0x1]
      %v932 = vperm.slane %v930, 0
      %v934 = vmul.f32 %v913, %v932
      %v935 = vmul.f32 %v914, %v932
      %v936 = vmul.f32 %v915, %v932
      %v937 = vmul.f32 %v916, %v932
      %v938 = vmul.f32 %v917, %v932
      %v939 = vmul.f32 %v918, %v932
      %v940 = vmul.f32 %v919, %v932
      %v941 = vmul.f32 %v920, %v932
      %v942 = vmul.f32 %v921, %v932
      %v943 = vmul.f32 %v922, %v932
      %v944 = vmul.f32 %v923, %v932
      %v945 = vmul.f32 %v924, %v932
      %v946 = vmul.f32 %v925, %v932
      %v947 = vmul.f32 %v926, %v932
      %v948 = vmul.f32 %v927, %v932
      %v949 = vmul.f32 %v928, %v932
      %v950 = vadd.f32 %v896, %v934
      %v951 = vadd.f32 %v897, %v935
      %v952 = vadd.f32 %v898, %v936
      %v953 = vadd.f32 %v899, %v937
      %v954 = vadd.f32 %v900, %v938
      %v955 = vadd.f32 %v901, %v939
      %v956 = vadd.f32 %v902, %v940
      %v957 = vadd.f32 %v903, %v941
      %v958 = vadd.f32 %v904, %v942
      %v959 = vadd.f32 %v905, %v943
      %v960 = vadd.f32 %v906, %v944
      %v961 = vadd.f32 %v907, %v945
      %v962 = vadd.f32 %v908, %v946
      %v963 = vadd.f32 %v909, %v947
      %v964 = vadd.f32 %v910, %v948
      %v965 = vadd.f32 %v911, %v949
      %v966 = vld [vmem:[%s912 + $0x1] sm:$0xff]
      %v967 = vld [vmem:[%s912 + $0x9] sm:$0xff]
      %v968 = vld [vmem:[%s912 + $0x19] sm:$0xff]
      %v969 = vld [vmem:[%s912 + $0x21] sm:$0xff]
      %v970 = vld [vmem:[%s912 + $0x31] sm:$0xff]
      %v971 = vld [vmem:[%s912 + $0x39] sm:$0xff]
      %v972 = vld [vmem:[%s912 + $0x49] sm:$0xff]
      %v973 = vld [vmem:[%s912 + $0x51] sm:$0xff]
      %v974 = vld [vmem:[%s912 + $0x61] sm:$0xff]
      %v975 = vld [vmem:[%s912 + $0x69] sm:$0xff]
      %v976 = vld [vmem:[%s912 + $0x79] sm:$0xff]
      %v977 = vld [vmem:[%s912 + $0x81] sm:$0xff]
      %v978 = vld [vmem:[%s912 + $0x91] sm:$0xff]
      %v979 = vld [vmem:[%s912 + $0x99] sm:$0xff]
      %v980 = vld [vmem:[%s912 + $0xa9] sm:$0xff]
      %v981 = vld [vmem:[%s912 + $0xb1] sm:$0xff]
      %s982 = scalar_lea.vmem %s3, 4
      %v983 = vld [vmem:[%s982] sm:$0x1]
      %v985 = vperm.slane %v983, 0
      %v987 = vmul.f32 %v966, %v985
      %v988 = vmul.f32 %v967, %v985
      %v989 = vmul.f32 %v968, %v985
      %v990 = vmul.f32 %v969, %v985
      %v991 = vmul.f32 %v970, %v985
      %v992 = vmul.f32 %v971, %v985
      %v993 = vmul.f32 %v972, %v985
      %v994 = vmul.f32 %v973, %v985
      %v995 = vmul.f32 %v974, %v985
      %v996 = vmul.f32 %v975, %v985
      %v997 = vmul.f32 %v976, %v985
      %v998 = vmul.f32 %v977, %v985
      %v999 = vmul.f32 %v978, %v985
      %v1000 = vmul.f32 %v979, %v985
      %v1001 = vmul.f32 %v980, %v985
      %v1002 = vmul.f32 %v981, %v985
      %v1003 = vld [vmem:[%s912 + $0x2] sm:$0xff]
      %v1004 = vld [vmem:[%s912 + $0xa] sm:$0xff]
      %v1005 = vld [vmem:[%s912 + $0x1a] sm:$0xff]
      %v1006 = vld [vmem:[%s912 + $0x22] sm:$0xff]
      %v1007 = vld [vmem:[%s912 + $0x32] sm:$0xff]
      %v1008 = vld [vmem:[%s912 + $0x3a] sm:$0xff]
      %v1009 = vld [vmem:[%s912 + $0x4a] sm:$0xff]
      %v1010 = vld [vmem:[%s912 + $0x52] sm:$0xff]
      %v1011 = vld [vmem:[%s912 + $0x62] sm:$0xff]
      %v1012 = vld [vmem:[%s912 + $0x6a] sm:$0xff]
      %v1013 = vld [vmem:[%s912 + $0x7a] sm:$0xff]
      %v1014 = vld [vmem:[%s912 + $0x82] sm:$0xff]
      %v1015 = vld [vmem:[%s912 + $0x92] sm:$0xff]
      %v1016 = vld [vmem:[%s912 + $0x9a] sm:$0xff]
      %v1017 = vld [vmem:[%s912 + $0xaa] sm:$0xff]
      %v1018 = vld [vmem:[%s912 + $0xb2] sm:$0xff]
      %s1019 = scalar_lea.vmem %s3, 5
      %v1020 = vld [vmem:[%s1019] sm:$0x1]
      %v1022 = vperm.slane %v1020, 0
      %v1024 = vmul.f32 %v1003, %v1022
      %v1025 = vmul.f32 %v1004, %v1022
      %v1026 = vmul.f32 %v1005, %v1022
      %v1027 = vmul.f32 %v1006, %v1022
      %v1028 = vmul.f32 %v1007, %v1022
      %v1029 = vmul.f32 %v1008, %v1022
      %v1030 = vmul.f32 %v1009, %v1022
      %v1031 = vmul.f32 %v1010, %v1022
      %v1032 = vmul.f32 %v1011, %v1022
      %v1033 = vmul.f32 %v1012, %v1022
      %v1034 = vmul.f32 %v1013, %v1022
      %v1035 = vmul.f32 %v1014, %v1022
      %v1036 = vmul.f32 %v1015, %v1022
      %v1037 = vmul.f32 %v1016, %v1022
      %v1038 = vmul.f32 %v1017, %v1022
      %v1039 = vmul.f32 %v1018, %v1022
      %v1040 = vadd.f32 %v987, %v1024
      %v1041 = vadd.f32 %v988, %v1025
      %v1042 = vadd.f32 %v989, %v1026
      %v1043 = vadd.f32 %v990, %v1027
      %v1044 = vadd.f32 %v991, %v1028
      %v1045 = vadd.f32 %v992, %v1029
      %v1046 = vadd.f32 %v993, %v1030
      %v1047 = vadd.f32 %v994, %v1031
      %v1048 = vadd.f32 %v995, %v1032
      %v1049 = vadd.f32 %v996, %v1033
      %v1050 = vadd.f32 %v997, %v1034
      %v1051 = vadd.f32 %v998, %v1035
      %v1052 = vadd.f32 %v999, %v1036
      %v1053 = vadd.f32 %v1000, %v1037
      %v1054 = vadd.f32 %v1001, %v1038
      %v1055 = vadd.f32 %v1002, %v1039
      %s1056 = scalar_lea.vmem [#allocation2], 48
      %v1057 = vld [vmem:[%s1056] sm:$0xff]
      %v1058 = vld [vmem:[%s1056 + $0x8] sm:$0xff]
      %v1059 = vld [vmem:[%s1056 + $0x18] sm:$0xff]
      %v1060 = vld [vmem:[%s1056 + $0x20] sm:$0xff]
      %v1061 = vld [vmem:[%s1056 + $0x30] sm:$0xff]
      %v1062 = vld [vmem:[%s1056 + $0x38] sm:$0xff]
      %v1063 = vld [vmem:[%s1056 + $0x48] sm:$0xff]
      %v1064 = vld [vmem:[%s1056 + $0x50] sm:$0xff]
      %v1065 = vld [vmem:[%s1056 + $0x60] sm:$0xff]
      %v1066 = vld [vmem:[%s1056 + $0x68] sm:$0xff]
      %v1067 = vld [vmem:[%s1056 + $0x78] sm:$0xff]
      %v1068 = vld [vmem:[%s1056 + $0x80] sm:$0xff]
      %v1069 = vld [vmem:[%s1056 + $0x90] sm:$0xff]
      %v1070 = vld [vmem:[%s1056 + $0x98] sm:$0xff]
      %v1071 = vld [vmem:[%s1056 + $0xa8] sm:$0xff]
      %v1072 = vld [vmem:[%s1056 + $0xb0] sm:$0xff]
      %s1073 = scalar_lea.vmem %s3, 6
      %v1074 = vld [vmem:[%s1073] sm:$0x1]
      %v1076 = vperm.slane %v1074, 0
      %v1078 = vmul.f32 %v1057, %v1076
      %v1079 = vmul.f32 %v1058, %v1076
      %v1080 = vmul.f32 %v1059, %v1076
      %v1081 = vmul.f32 %v1060, %v1076
      %v1082 = vmul.f32 %v1061, %v1076
      %v1083 = vmul.f32 %v1062, %v1076
      %v1084 = vmul.f32 %v1063, %v1076
      %v1085 = vmul.f32 %v1064, %v1076
      %v1086 = vmul.f32 %v1065, %v1076
      %v1087 = vmul.f32 %v1066, %v1076
      %v1088 = vmul.f32 %v1067, %v1076
      %v1089 = vmul.f32 %v1068, %v1076
      %v1090 = vmul.f32 %v1069, %v1076
      %v1091 = vmul.f32 %v1070, %v1076
      %v1092 = vmul.f32 %v1071, %v1076
      %v1093 = vmul.f32 %v1072, %v1076
      %v1094 = vld [vmem:[%s1056 + $0x1] sm:$0xff]
      %v1095 = vld [vmem:[%s1056 + $0x9] sm:$0xff]
      %v1096 = vld [vmem:[%s1056 + $0x19] sm:$0xff]
      %v1097 = vld [vmem:[%s1056 + $0x21] sm:$0xff]
      %v1098 = vld [vmem:[%s1056 + $0x31] sm:$0xff]
      %v1099 = vld [vmem:[%s1056 + $0x39] sm:$0xff]
      %v1100 = vld [vmem:[%s1056 + $0x49] sm:$0xff]
      %v1101 = vld [vmem:[%s1056 + $0x51] sm:$0xff]
      %v1102 = vld [vmem:[%s1056 + $0x61] sm:$0xff]
      %v1103 = vld [vmem:[%s1056 + $0x69] sm:$0xff]
      %v1104 = vld [vmem:[%s1056 + $0x79] sm:$0xff]
      %v1105 = vld [vmem:[%s1056 + $0x81] sm:$0xff]
      %v1106 = vld [vmem:[%s1056 + $0x91] sm:$0xff]
      %v1107 = vld [vmem:[%s1056 + $0x99] sm:$0xff]
      %v1108 = vld [vmem:[%s1056 + $0xa9] sm:$0xff]
      %v1109 = vld [vmem:[%s1056 + $0xb1] sm:$0xff]
      %s1110 = scalar_lea.vmem %s3, 7
      %v1111 = vld [vmem:[%s1110] sm:$0x1]
      %v1113 = vperm.slane %v1111, 0
      %v1115 = vmul.f32 %v1094, %v1113
      %v1116 = vmul.f32 %v1095, %v1113
      %v1117 = vmul.f32 %v1096, %v1113
      %v1118 = vmul.f32 %v1097, %v1113
      %v1119 = vmul.f32 %v1098, %v1113
      %v1120 = vmul.f32 %v1099, %v1113
      %v1121 = vmul.f32 %v1100, %v1113
      %v1122 = vmul.f32 %v1101, %v1113
      %v1123 = vmul.f32 %v1102, %v1113
      %v1124 = vmul.f32 %v1103, %v1113
      %v1125 = vmul.f32 %v1104, %v1113
      %v1126 = vmul.f32 %v1105, %v1113
      %v1127 = vmul.f32 %v1106, %v1113
      %v1128 = vmul.f32 %v1107, %v1113
      %v1129 = vmul.f32 %v1108, %v1113
      %v1130 = vmul.f32 %v1109, %v1113
      %v1131 = vadd.f32 %v1078, %v1115
      %v1132 = vadd.f32 %v1079, %v1116
      %v1133 = vadd.f32 %v1080, %v1117
      %v1134 = vadd.f32 %v1081, %v1118
      %v1135 = vadd.f32 %v1082, %v1119
      %v1136 = vadd.f32 %v1083, %v1120
      %v1137 = vadd.f32 %v1084, %v1121
      %v1138 = vadd.f32 %v1085, %v1122
      %v1139 = vadd.f32 %v1086, %v1123
      %v1140 = vadd.f32 %v1087, %v1124
      %v1141 = vadd.f32 %v1088, %v1125
      %v1142 = vadd.f32 %v1089, %v1126
      %v1143 = vadd.f32 %v1090, %v1127
      %v1144 = vadd.f32 %v1091, %v1128
      %v1145 = vadd.f32 %v1092, %v1129
      %v1146 = vadd.f32 %v1093, %v1130
      %v1147 = vadd.f32 %v859, %v950
      %v1148 = vadd.f32 %v860, %v951
      %v1149 = vadd.f32 %v861, %v952
      %v1150 = vadd.f32 %v862, %v953
      %v1151 = vadd.f32 %v863, %v954
      %v1152 = vadd.f32 %v864, %v955
      %v1153 = vadd.f32 %v865, %v956
      %v1154 = vadd.f32 %v866, %v957
      %v1155 = vadd.f32 %v867, %v958
      %v1156 = vadd.f32 %v868, %v959
      %v1157 = vadd.f32 %v869, %v960
      %v1158 = vadd.f32 %v870, %v961
      %v1159 = vadd.f32 %v871, %v962
      %v1160 = vadd.f32 %v872, %v963
      %v1161 = vadd.f32 %v873, %v964
      %v1162 = vadd.f32 %v874, %v965
      %v1163 = vadd.f32 %v1040, %v1131
      %v1164 = vadd.f32 %v1041, %v1132
      %v1165 = vadd.f32 %v1042, %v1133
      %v1166 = vadd.f32 %v1043, %v1134
      %v1167 = vadd.f32 %v1044, %v1135
      %v1168 = vadd.f32 %v1045, %v1136
      %v1169 = vadd.f32 %v1046, %v1137
      %v1170 = vadd.f32 %v1047, %v1138
      %v1171 = vadd.f32 %v1048, %v1139
      %v1172 = vadd.f32 %v1049, %v1140
      %v1173 = vadd.f32 %v1050, %v1141
      %v1174 = vadd.f32 %v1051, %v1142
      %v1175 = vadd.f32 %v1052, %v1143
      %v1176 = vadd.f32 %v1053, %v1144
      %v1177 = vadd.f32 %v1054, %v1145
      %v1178 = vadd.f32 %v1055, %v1146
      %v1179 = vadd.f32 %v1147, %v1163
      %v1180 = vadd.f32 %v1148, %v1164
      %v1181 = vadd.f32 %v1149, %v1165
      %v1182 = vadd.f32 %v1150, %v1166
      %v1183 = vadd.f32 %v1151, %v1167
      %v1184 = vadd.f32 %v1152, %v1168
      %v1185 = vadd.f32 %v1153, %v1169
      %v1186 = vadd.f32 %v1154, %v1170
      %v1187 = vadd.f32 %v1155, %v1171
      %v1188 = vadd.f32 %v1156, %v1172
      %v1189 = vadd.f32 %v1157, %v1173
      %v1190 = vadd.f32 %v1158, %v1174
      %v1191 = vadd.f32 %v1159, %v1175
      %v1192 = vadd.f32 %v1160, %v1176
      %v1193 = vadd.f32 %v1161, %v1177
      %v1194 = vadd.f32 %v1162, %v1178
      %v1195 = vld [vmem:[%s1056 + $0x2] sm:$0xff]
      %v1196 = vld [vmem:[%s1056 + $0xa] sm:$0xff]
      %v1197 = vld [vmem:[%s1056 + $0x1a] sm:$0xff]
      %v1198 = vld [vmem:[%s1056 + $0x22] sm:$0xff]
      %v1199 = vld [vmem:[%s1056 + $0x32] sm:$0xff]
      %v1200 = vld [vmem:[%s1056 + $0x3a] sm:$0xff]
      %v1201 = vld [vmem:[%s1056 + $0x4a] sm:$0xff]
      %v1202 = vld [vmem:[%s1056 + $0x52] sm:$0xff]
      %v1203 = vld [vmem:[%s1056 + $0x62] sm:$0xff]
      %v1204 = vld [vmem:[%s1056 + $0x6a] sm:$0xff]
      %v1205 = vld [vmem:[%s1056 + $0x7a] sm:$0xff]
      %v1206 = vld [vmem:[%s1056 + $0x82] sm:$0xff]
      %v1207 = vld [vmem:[%s1056 + $0x92] sm:$0xff]
      %v1208 = vld [vmem:[%s1056 + $0x9a] sm:$0xff]
      %v1209 = vld [vmem:[%s1056 + $0xaa] sm:$0xff]
      %v1210 = vld [vmem:[%s1056 + $0xb2] sm:$0xff]
      %s1211 = scalar_lea.vmem %s3, 8
      %v1212 = vld [vmem:[%s1211] sm:$0x1]
      %v1214 = vperm.slane %v1212, 0
      %v1216 = vmul.f32 %v1195, %v1214
      %v1217 = vmul.f32 %v1196, %v1214
      %v1218 = vmul.f32 %v1197, %v1214
      %v1219 = vmul.f32 %v1198, %v1214
      %v1220 = vmul.f32 %v1199, %v1214
      %v1221 = vmul.f32 %v1200, %v1214
      %v1222 = vmul.f32 %v1201, %v1214
      %v1223 = vmul.f32 %v1202, %v1214
      %v1224 = vmul.f32 %v1203, %v1214
      %v1225 = vmul.f32 %v1204, %v1214
      %v1226 = vmul.f32 %v1205, %v1214
      %v1227 = vmul.f32 %v1206, %v1214
      %v1228 = vmul.f32 %v1207, %v1214
      %v1229 = vmul.f32 %v1208, %v1214
      %v1230 = vmul.f32 %v1209, %v1214
      %v1231 = vmul.f32 %v1210, %v1214
      %v1232 = vadd.f32 %v1179, %v1216
      %v1233 = vadd.f32 %v1180, %v1217
      %v1234 = vadd.f32 %v1181, %v1218
      %v1235 = vadd.f32 %v1182, %v1219
      %v1236 = vadd.f32 %v1183, %v1220
      %v1237 = vadd.f32 %v1184, %v1221
      %v1238 = vadd.f32 %v1185, %v1222
      %v1239 = vadd.f32 %v1186, %v1223
      %v1240 = vadd.f32 %v1187, %v1224
      %v1241 = vadd.f32 %v1188, %v1225
      %v1242 = vadd.f32 %v1189, %v1226
      %v1243 = vadd.f32 %v1190, %v1227
      %v1244 = vadd.f32 %v1191, %v1228
      %v1245 = vadd.f32 %v1192, %v1229
      %v1246 = vadd.f32 %v1193, %v1230
      %v1247 = vadd.f32 %v1194, %v1231
      %v1248 = vld [vmem:[%s4] sm:$0x1]
      %v1250 = vperm.slane %v1248, 0
      %v1252 = vadd.f32 %v1232, %v1250
      %v1253 = vadd.f32 %v1233, %v1250
      %v1254 = vadd.f32 %v1234, %v1250
      %v1255 = vadd.f32 %v1235, %v1250
      %v1256 = vadd.f32 %v1236, %v1250
      %v1257 = vadd.f32 %v1237, %v1250
      %v1258 = vadd.f32 %v1238, %v1250
      %v1259 = vadd.f32 %v1239, %v1250
      %v1260 = vadd.f32 %v1240, %v1250
      %v1261 = vadd.f32 %v1241, %v1250
      %v1262 = vadd.f32 %v1242, %v1250
      %v1263 = vadd.f32 %v1243, %v1250
      %v1264 = vadd.f32 %v1244, %v1250
      %v1265 = vadd.f32 %v1245, %v1250
      %v1266 = vadd.f32 %v1246, %v1250
      %v1267 = vadd.f32 %v1247, %v1250
      %v1268 = vmax.f32 %v1252, 0.0
      %v1269 = vmax.f32 %v1253, 0.0
      %v1270 = vmax.f32 %v1254, 0.0
      %v1271 = vmax.f32 %v1255, 0.0
      %v1272 = vmax.f32 %v1256, 0.0
      %v1273 = vmax.f32 %v1257, 0.0
      %v1274 = vmax.f32 %v1258, 0.0
      %v1275 = vmax.f32 %v1259, 0.0
      %v1276 = vmax.f32 %v1260, 0.0
      %v1277 = vmax.f32 %v1261, 0.0
      %v1278 = vmax.f32 %v1262, 0.0
      %v1279 = vmax.f32 %v1263, 0.0
      %v1280 = vmax.f32 %v1264, 0.0
      %v1281 = vmax.f32 %v1265, 0.0
      %v1282 = vmax.f32 %v1266, 0.0
      %v1283 = vmax.f32 %v1267, 0.0
      %v1284 = vmin.f32 %v1268, 6.0
      %v1285 = vmin.f32 %v1269, 6.0
      %v1286 = vmin.f32 %v1270, 6.0
      %v1287 = vmin.f32 %v1271, 6.0
      %v1288 = vmin.f32 %v1272, 6.0
      %v1289 = vmin.f32 %v1273, 6.0
      %v1290 = vmin.f32 %v1274, 6.0
      %v1291 = vmin.f32 %v1275, 6.0
      %v1292 = vmin.f32 %v1276, 6.0
      %v1293 = vmin.f32 %v1277, 6.0
      %v1294 = vmin.f32 %v1278, 6.0
      %v1295 = vmin.f32 %v1279, 6.0
      %v1296 = vmin.f32 %v1280, 6.0
      %v1297 = vmin.f32 %v1281, 6.0
      %v1298 = vmin.f32 %v1282, 6.0
      %v1299 = vmin.f32 %v1283, 6.0
      %v1300 = vpack.c.bf16 %v1285, %v1284
      %v1301 = vpack.c.bf16 %v1287, %v1286
      %v1302 = vpack.c.bf16 %v1289, %v1288
      %v1303 = vpack.c.bf16 %v1291, %v1290
      %v1304 = vpack.c.bf16 %v1293, %v1292
      %v1305 = vpack.c.bf16 %v1295, %v1294
      %v1306 = vpack.c.bf16 %v1297, %v1296
      %v1307 = vpack.c.bf16 %v1299, %v1298
      %v1308 = vld [vmem:[%s5] sm:$0xf]
      %v1309 = vld [vmem:[%s5 + $0x4] sm:$0xf]
      %v1310 = vld [vmem:[%s5 + $0x8] sm:$0xf]
      %v1311 = vld [vmem:[%s5 + $0xc] sm:$0xf]
      %v1312 = vld [vmem:[%s5 + $0x10] sm:$0xf]
      %v1313 = vld [vmem:[%s5 + $0x14] sm:$0xf]
      %v1314 = vld [vmem:[%s5 + $0x18] sm:$0xf]
      %v1315 = vld [vmem:[%s5 + $0x1c] sm:$0xf]
      %v1316 = vld [vmem:[%s5 + $0x20] sm:$0xf]
      %v1317 = vld [vmem:[%s5 + $0x24] sm:$0xf]
      %v1318 = vld [vmem:[%s5 + $0x28] sm:$0xf]
      %v1319 = vld [vmem:[%s5 + $0x2c] sm:$0xf]
      %v1320 = vld [vmem:[%s6] sm:$0x1]
      %v1322 = vperm.slane %v1320, 0
      %v1336 = vunpack.c.l.b16 %v1308
      %v1337 = vunpack.c.l.b16 %v1309
      %v1338 = vunpack.c.l.b16 %v1310
      %v1339 = vunpack.c.l.b16 %v1311
      %v1340 = vunpack.c.l.b16 %v1312
      %v1341 = vunpack.c.l.b16 %v1313
      %v1342 = vunpack.c.l.b16 %v1314
      %v1343 = vunpack.c.l.b16 %v1315
      %v1344 = vunpack.c.l.b16 %v1316
      %v1345 = vunpack.c.l.b16 %v1317
      %v1346 = vunpack.c.l.b16 %v1318
      %v1347 = vunpack.c.l.b16 %v1319
      %v1348 = vpack.c.b16 %v1337, %v1336
      %v1349 = vpack.c.b16 %v1339, %v1338
      %v1350 = vpack.c.b16 %v1341, %v1340
      %v1351 = vpack.c.b16 %v1343, %v1342
      %v1352 = vpack.c.b16 %v1345, %v1344
      %v1353 = vpack.c.b16 %v1347, %v1346
      %v1361 = vsel %vm755, %v1300, 0
      %v1364 = vsel %vm755, %v1301, 0
      %v1367 = vsel %vm755, %v1302, 0
      %v1370 = vsel %vm755, %v1303, 0
      %v1373 = vsel %vm755, %v1304, 0
      %v1376 = vsel %vm755, %v1305, 0
      %v1379 = vsel %vm755, %v1306, 0
      %v1382 = vsel %vm755, %v1307, 0
      %1384 = vmatpush.bf16.msra.mxu0 0
      %1385 = vmatpush.bf16.msra.mxu0 0
      %1386 = vmatpush.bf16.msra.mxu0 %v1353
      %1387 = vmatpush.bf16.msra.mxu0 %v1352
      %1388 = vmatpush.bf16.msra.mxu0 %v1351
      %1389 = vmatpush.bf16.msra.mxu0 %v1350
      %1390 = vmatpush.bf16.msra.mxu0 %v1349
      %1391 = vmatpush.bf16.msra.mxu0 %v1348
      %1392 = vmatmul.bf16.gmra.mxu0 %v1361
      %v1393 = vpop.f32.mrf.mxu0
      %v1394 = vadd.f32 %v1322, %v1393
      %v1395 = vpop.f32.mrf.mxu0
      %v1396 = vadd.f32 %v1322, %v1395
      %1397 = vmatmul.bf16.gmra.mxu0 %v1364
      %v1398 = vpop.f32.mrf.mxu0
      %v1399 = vadd.f32 %v1322, %v1398
      %v1400 = vpop.f32.mrf.mxu0
      %v1401 = vadd.f32 %v1322, %v1400
      %1402 = vmatmul.bf16.gmra.mxu0 %v1367
      %v1403 = vpop.f32.mrf.mxu0
      %v1404 = vadd.f32 %v1322, %v1403
      %v1405 = vpop.f32.mrf.mxu0
      %v1406 = vadd.f32 %v1322, %v1405
      %1407 = vmatmul.bf16.gmra.mxu0 %v1370
      %v1408 = vpop.f32.mrf.mxu0
      %v1409 = vadd.f32 %v1322, %v1408
      %v1410 = vpop.f32.mrf.mxu0
      %v1411 = vadd.f32 %v1322, %v1410
      %1412 = vmatmul.bf16.gmra.mxu0 %v1373
      %v1413 = vpop.f32.mrf.mxu0
      %v1414 = vadd.f32 %v1322, %v1413
      %v1415 = vpop.f32.mrf.mxu0
      %v1416 = vadd.f32 %v1322, %v1415
      %1417 = vmatmul.bf16.gmra.mxu0 %v1376
      %v1418 = vpop.f32.mrf.mxu0
      %v1419 = vadd.f32 %v1322, %v1418
      %v1420 = vpop.f32.mrf.mxu0
      %v1421 = vadd.f32 %v1322, %v1420
      %1422 = vmatmul.bf16.gmra.mxu0 %v1379
      %v1423 = vpop.f32.mrf.mxu0
      %v1424 = vadd.f32 %v1322, %v1423
      %v1425 = vpop.f32.mrf.mxu0
      %v1426 = vadd.f32 %v1322, %v1425
      %1427 = vmatmul.bf16.gmra.mxu0 %v1382
      %v1428 = vpop.f32.mrf.mxu0
      %v1429 = vadd.f32 %v1322, %v1428
      %v1430 = vpop.f32.mrf.mxu0
      %v1431 = vadd.f32 %v1322, %v1430
      %1432 = vdwg.mxu0
      %s1433 = sadd.s32 %s305, 1
      %s1434 = smul.u32 %s1433, 24
      %s1435 = scalar_lea.vmem %s292, %s1434
      %v1436 = vld [vmem:[%s1435 + $0x1] sm:$0xff]
      %v1437 = vld [vmem:[%s1435 + $0x9] sm:$0xff]
      %v1438 = vld [vmem:[%s1435 + $0x19] sm:$0xff]
      %v1439 = vld [vmem:[%s1435 + $0x21] sm:$0xff]
      %v1440 = vld [vmem:[%s1435 + $0x31] sm:$0xff]
      %v1441 = vld [vmem:[%s1435 + $0x39] sm:$0xff]
      %v1442 = vld [vmem:[%s1435 + $0x49] sm:$0xff]
      %v1443 = vld [vmem:[%s1435 + $0x51] sm:$0xff]
      %v1444 = vld [vmem:[%s1435 + $0x61] sm:$0xff]
      %v1445 = vld [vmem:[%s1435 + $0x69] sm:$0xff]
      %v1446 = vld [vmem:[%s1435 + $0x79] sm:$0xff]
      %v1447 = vld [vmem:[%s1435 + $0x81] sm:$0xff]
      %v1448 = vld [vmem:[%s1435 + $0x91] sm:$0xff]
      %v1449 = vld [vmem:[%s1435 + $0x99] sm:$0xff]
      %v1450 = vld [vmem:[%s1435 + $0xa9] sm:$0xff]
      %v1451 = vld [vmem:[%s1435 + $0xb1] sm:$0xff]
      %v1452 = vadd.f32 %v1394, %v1436
      %v1453 = vadd.f32 %v1396, %v1437
      %v1454 = vadd.f32 %v1399, %v1438
      %v1455 = vadd.f32 %v1401, %v1439
      %v1456 = vadd.f32 %v1404, %v1440
      %v1457 = vadd.f32 %v1406, %v1441
      %v1458 = vadd.f32 %v1409, %v1442
      %v1459 = vadd.f32 %v1411, %v1443
      %v1460 = vadd.f32 %v1414, %v1444
      %v1461 = vadd.f32 %v1416, %v1445
      %v1462 = vadd.f32 %v1419, %v1446
      %v1463 = vadd.f32 %v1421, %v1447
      %v1464 = vadd.f32 %v1424, %v1448
      %v1465 = vadd.f32 %v1426, %v1449
      %v1466 = vadd.f32 %v1429, %v1450
      %v1467 = vadd.f32 %v1431, %v1451
      %1468 = vst.msk [vmem:[%s302] sm:$0xff] %vm365, %v1452
      %1469 = vst.msk [vmem:[%s302 + $0x8] sm:$0xff] %vm365, %v1453
      %1470 = vst.msk [vmem:[%s302 + $0x10] sm:$0xff] %vm365, %v1454
      %1471 = vst.msk [vmem:[%s302 + $0x18] sm:$0xff] %vm365, %v1455
      %1472 = vst.msk [vmem:[%s302 + $0x20] sm:$0xff] %vm365, %v1456
      %1473 = vst.msk [vmem:[%s302 + $0x28] sm:$0xff] %vm365, %v1457
      %1474 = vst.msk [vmem:[%s302 + $0x30] sm:$0xff] %vm365, %v1458
      %1475 = vst.msk [vmem:[%s302 + $0x38] sm:$0xff] %vm365, %v1459
      %1476 = vst.msk [vmem:[%s302 + $0x40] sm:$0xff] %vm365, %v1460
      %1477 = vst.msk [vmem:[%s302 + $0x48] sm:$0xff] %vm365, %v1461
      %1478 = vst.msk [vmem:[%s302 + $0x50] sm:$0xff] %vm365, %v1462
      %1479 = vst.msk [vmem:[%s302 + $0x58] sm:$0xff] %vm365, %v1463
      %1480 = vst.msk [vmem:[%s302 + $0x60] sm:$0xff] %vm365, %v1464
      %1481 = vst.msk [vmem:[%s302 + $0x68] sm:$0xff] %vm365, %v1465
      %1482 = vst.msk [vmem:[%s302 + $0x70] sm:$0xff] %vm365, %v1466
      %1483 = vst.msk [vmem:[%s302 + $0x78] sm:$0xff] %vm365, %v1467
      %s1484 = smul.u32 8, %s23
      %p1485 = scmp.lt.s32.totalorder %s22, 1
      %s1486 = scalar_select %p1485, %s22, 1
      %p1487 = scmp.lt.s32.totalorder %s1484, 15
      %s1488 = scalar_select %p1487, %s1484, 15
      %s1489 = smul.addr %s1488, 2
      %s1490 = smul.addr %s1486, 32
      %s1491 = sadd.s32 %s1489, %s1490
      %s1492 = smul.addr %s1491, 8
      %s1493 = scalar_lea.vmem %s7, %s1492
      // Predicated region
      $region49: #{fwd.2} parent=47 // pred_check
        %p1494 = pneg %p202
      $region50: #{fwd.2} parent=47 // pred_check_branch
        %1496 = sbr.rel (%p1494) target = $region52
      $region51: #{fwd.2} parent=47 // pred_region
        %s1497 = smul.u32 8, %s23
      $region52: #{fwd.2} parent=47 // pred_fallthru
        _
    $region48: #{fwd.2} parent=5 // pred_fallthru
      _
    %p1498 = scmp.le.s32.totalorder 2, %s13
    // Predicated region
    $region53: #{fwd.2} parent=5 // pred_check
      %p1499 = pneg %p1498
    $region54: #{fwd.2} parent=5 // pred_check_branch
      %1501 = sbr.rel (%p1499) target = $region56
    $region55: #{fwd.2} parent=5 // pred_region
      %s1502 = ssub.s32 %s13, 2
      // Predicated region
      $region57: #{fwd.2} parent=55 // pred_check
        %p1503 = pneg %p208
      $region58: #{fwd.2} parent=55 // pred_check_branch
        %1505 = sbr.rel (%p1503) target = $region60
      $region59: #{fwd.2} parent=55 // pred_region
        %s1506 = smul.u32 8, %s25
        %p1507 = scmp.lt.s32.totalorder %s24, 1
        %s1508 = scalar_select %p1507, %s24, 1
        %p1509 = scmp.lt.s32.totalorder %s1506, 15
        %s1510 = scalar_select %p1509, %s1506, 15
        %s1511 = smul.addr %s1510, 2
        %s1512 = smul.addr %s1508, 32
        %s1513 = sadd.s32 %s1511, %s1512
        %s1514 = smul.addr %s1513, 8
        %s1515 = scalar_lea.vmem %s7, %s1514
      $region60: #{fwd.2} parent=55 // pred_fallthru
        _
    $region56: #{fwd.2} parent=5 // pred_fallthru
      _
  $region6: #{fwd.2} parent=0 // loop_footer
    %s17 = sadd.s32 1, %s13
  $region7: #{fwd.2} parent=0 // loop_footer_branch
    %12 = sbr.rel target = $region3
  $region8: #{fwd.2} parent=0 // loop_exit
    _

// kernel: fwd.3
$region0: #{fwd.3}
  #allocation0 [shape = 'u32[]', space=smem, size = 0x4, offset = 0x4, fixed_abs, tag = 'smem constant byte address 0x4 - core index']
  #allocation1 [shape = 'u32[72,128]{1,0:T(1,128)}', space=vmem, size = 0x9000, scoped, tag = 'internal scratch']
  #allocation2 [shape = 'f32[17,24,96]{2,1,0:T(8,128)}', space=vmem, size = 0x33000, scoped, tag = 'scratch operand']
  %s0 = inlined_call_operand.vmem [shape: f32[2,18,24,16], index: 0, kind: input, shape index: {}]
  %s1 = inlined_call_operand.vmem [shape: bf16[16,96], index: 1, kind: input, shape index: {}]
  %s2 = inlined_call_operand.vmem [shape: f32[1,96], index: 2, kind: input, shape index: {}]
  %s3 = inlined_call_operand.vmem [shape: f32[9,1,96], index: 3, kind: input, shape index: {}]
  %s4 = inlined_call_operand.vmem [shape: f32[1,96], index: 4, kind: input, shape index: {}]
  %s5 = inlined_call_operand.vmem [shape: bf16[96,24], index: 5, kind: input, shape index: {}]
  %s6 = inlined_call_operand.vmem [shape: f32[1,24], index: 6, kind: input, shape index: {}]
  %s7 = inlined_call_operand.hbm [shape: f32[2,8,8,24], index: 7, kind: output, shape index: {}]
  %s8 = sld [smem:[#allocation0]]
  $region61: #{fwd.3} parent=0
    _
  %s10 = ssub.s32 1, %s8
  %s11 = scalar_select 0, %s10, %s8
  $region1: #{fwd.3} parent=0
    #allocation3 [shape = 'u8[65536]{0}', space=vmem, size = 0x10000, scoped, tag = 'output window, operand 0']
    #allocation4 [shape = 's32[2]{0}', space=sflag, size = 0x8, scoped, tag = 'scoped memory for fwd.3']
    %12 = vsyncpa [#allocation4], 0
    %s13 = scalar_lea.sflag [#allocation4], 1
    %14 = vsyncpa %s13, 0
    loop: start=0, step=1, limit=4
    $region2: #{fwd.3} parent=1 // loop_pre_header
      _
    $region3: #{fwd.3} parent=1 // loop_header
      %s16 = sphi 0, %s20
      %p17 = scmp.ge.s32.totalorder %s16, 4
      %s23 = sphi 0, %s35
      %s24 = sphi 0, %s31
      %s25 = sphi 0, %s23
      %s26 = sphi 0, %s24
      %s27 = sphi 0, %s25
      %s28 = sphi 0, %s26
      %s38 = sphi 0, %s40
      %s41 = sphi 0, %s38
      %s42 = sphi 0, %s41
      %s58 = sphi 0, %s42
      %s62 = sphi 0, %s62
      %s64 = sphi 0, %s62
      %s65 = sphi 0, %s64
      %s79 = sphi 0, %s65
      %s83 = sphi 0, %s83
      %s85 = sphi 0, %s83
      %s86 = sphi 0, %s85
      %s100 = sphi 0, %s86
      %s104 = sphi 0, %s104
      %s106 = sphi 0, %s104
      %s107 = sphi 0, %s106
      %s121 = sphi 0, %s107
      %s125 = sphi 0, %s125
      %s127 = sphi 0, %s125
      %s128 = sphi 0, %s127
      %s142 = sphi 0, %s128
      %s146 = sphi 0, %s146
      %s148 = sphi 0, %s146
      %s149 = sphi 0, %s148
      %s163 = sphi 0, %s149
      %s167 = sphi 0, %s167
      %s169 = sphi 0, %s167
      %s170 = sphi 0, %s169
      %s184 = sphi 0, %s170
      %s192 = sphi 0, %s194
      %s195 = sphi 0, %s192
      %s196 = sphi 0, %s195
      %s212 = sphi 0, %s196
    $region4: #{fwd.3} parent=1 // loop_header_branch
      %19 = sbr.rel (%p17) target = $region8
    $region5: #{fwd.3} parent=1 // loop_body
      %s21 = ssub.s32 %s16, 1
      %s22 = ssub.s32 %s16, 2
      %s29 = sadd.s32 1, %s24
      %p30 = scmp.ge.s32.totalorder %s29, 1
      %s31 = scalar_select %p30, 0, %s29
      %s32 = sadd.s32 1, %s23
      %s33 = scalar_select %p30, %s32, %s23
      %p34 = scmp.ge.s32.totalorder %s33, 2
      %s35 = scalar_select %p34, 0, %s33
      %s36 = ssub.s32 %s23, %s35
      %p37 = scmp.eq.s32.totalorder %s36, 0
      %s39 = sadd.s32 %s38, 1
      %s40 = scalar_select %p37, %s38, %s39
      %p43 = pneg %p37
      %p44 = scmp.eq.s32.totalorder %s16, 1
      %p45 = por %p43, %p44
      %p46 = scmp.ne.s32.totalorder %s38, %s41
      %p47 = scmp.eq.s32.totalorder %s16, 0
      %p48 = por %p46, %p47
      %p49 = scmp.ne.s32.totalorder %s38, %s41
      %p50 = scmp.eq.s32.totalorder %s21, 1
      %p51 = por %p49, %p50
      %p52 = scmp.ne.s32.totalorder %s41, %s42
      %p53 = scmp.eq.s32.totalorder %s21, 0
      %p54 = por %p52, %p53
      %p55 = scmp.ne.s32.totalorder %s41, %s42
      %p56 = scmp.eq.s32.totalorder %s22, 1
      %p57 = por %p55, %p56
      %p59 = scmp.ne.s32.totalorder %s42, %s58
      %p60 = scmp.eq.s32.totalorder %s22, 0
      %p61 = por %p59, %p60
      %s63 = sadd.s32 %s62, 1
      %p66 = scmp.eq.s32.totalorder %s16, 1
      %p67 = scmp.ne.s32.totalorder %s62, %s64
      %p68 = scmp.eq.s32.totalorder %s16, 0
      %p69 = por %p67, %p68
      %p70 = scmp.ne.s32.totalorder %s62, %s64
      %p71 = scmp.eq.s32.totalorder %s21, 1
      %p72 = por %p70, %p71
      %p73 = scmp.ne.s32.totalorder %s64, %s65
      %p74 = scmp.eq.s32.totalorder %s21, 0
      %p75 = por %p73, %p74
      %p76 = scmp.ne.s32.totalorder %s64, %s65
      %p77 = scmp.eq.s32.totalorder %s22, 1
      %p78 = por %p76, %p77
      %p80 = scmp.ne.s32.totalorder %s65, %s79
      %p81 = scmp.eq.s32.totalorder %s22, 0
      %p82 = por %p80, %p81
      %s84 = sadd.s32 %s83, 1
      %p87 = scmp.eq.s32.totalorder %s16, 1
      %p88 = scmp.ne.s32.totalorder %s83, %s85
      %p89 = scmp.eq.s32.totalorder %s16, 0
      %p90 = por %p88, %p89
      %p91 = scmp.ne.s32.totalorder %s83, %s85
      %p92 = scmp.eq.s32.totalorder %s21, 1
      %p93 = por %p91, %p92
      %p94 = scmp.ne.s32.totalorder %s85, %s86
      %p95 = scmp.eq.s32.totalorder %s21, 0
      %p96 = por %p94, %p95
      %p97 = scmp.ne.s32.totalorder %s85, %s86
      %p98 = scmp.eq.s32.totalorder %s22, 1
      %p99 = por %p97, %p98
      %p101 = scmp.ne.s32.totalorder %s86, %s100
      %p102 = scmp.eq.s32.totalorder %s22, 0
      %p103 = por %p101, %p102
      %s105 = sadd.s32 %s104, 1
      %p108 = scmp.eq.s32.totalorder %s16, 1
      %p109 = scmp.ne.s32.totalorder %s104, %s106
      %p110 = scmp.eq.s32.totalorder %s16, 0
      %p111 = por %p109, %p110
      %p112 = scmp.ne.s32.totalorder %s104, %s106
      %p113 = scmp.eq.s32.totalorder %s21, 1
      %p114 = por %p112, %p113
      %p115 = scmp.ne.s32.totalorder %s106, %s107
      %p116 = scmp.eq.s32.totalorder %s21, 0
      %p117 = por %p115, %p116
      %p118 = scmp.ne.s32.totalorder %s106, %s107
      %p119 = scmp.eq.s32.totalorder %s22, 1
      %p120 = por %p118, %p119
      %p122 = scmp.ne.s32.totalorder %s107, %s121
      %p123 = scmp.eq.s32.totalorder %s22, 0
      %p124 = por %p122, %p123
      %s126 = sadd.s32 %s125, 1
      %p129 = scmp.eq.s32.totalorder %s16, 1
      %p130 = scmp.ne.s32.totalorder %s125, %s127
      %p131 = scmp.eq.s32.totalorder %s16, 0
      %p132 = por %p130, %p131
      %p133 = scmp.ne.s32.totalorder %s125, %s127
      %p134 = scmp.eq.s32.totalorder %s21, 1
      %p135 = por %p133, %p134
      %p136 = scmp.ne.s32.totalorder %s127, %s128
      %p137 = scmp.eq.s32.totalorder %s21, 0
      %p138 = por %p136, %p137
      %p139 = scmp.ne.s32.totalorder %s127, %s128
      %p140 = scmp.eq.s32.totalorder %s22, 1
      %p141 = por %p139, %p140
      %p143 = scmp.ne.s32.totalorder %s128, %s142
      %p144 = scmp.eq.s32.totalorder %s22, 0
      %p145 = por %p143, %p144
      %s147 = sadd.s32 %s146, 1
      %p150 = scmp.eq.s32.totalorder %s16, 1
      %p151 = scmp.ne.s32.totalorder %s146, %s148
      %p152 = scmp.eq.s32.totalorder %s16, 0
      %p153 = por %p151, %p152
      %p154 = scmp.ne.s32.totalorder %s146, %s148
      %p155 = scmp.eq.s32.totalorder %s21, 1
      %p156 = por %p154, %p155
      %p157 = scmp.ne.s32.totalorder %s148, %s149
      %p158 = scmp.eq.s32.totalorder %s21, 0
      %p159 = por %p157, %p158
      %p160 = scmp.ne.s32.totalorder %s148, %s149
      %p161 = scmp.eq.s32.totalorder %s22, 1
      %p162 = por %p160, %p161
      %p164 = scmp.ne.s32.totalorder %s149, %s163
      %p165 = scmp.eq.s32.totalorder %s22, 0
      %p166 = por %p164, %p165
      %s168 = sadd.s32 %s167, 1
      %p171 = scmp.eq.s32.totalorder %s16, 1
      %p172 = scmp.ne.s32.totalorder %s167, %s169
      %p173 = scmp.eq.s32.totalorder %s16, 0
      %p174 = por %p172, %p173
      %p175 = scmp.ne.s32.totalorder %s167, %s169
      %p176 = scmp.eq.s32.totalorder %s21, 1
      %p177 = por %p175, %p176
      %p178 = scmp.ne.s32.totalorder %s169, %s170
      %p179 = scmp.eq.s32.totalorder %s21, 0
      %p180 = por %p178, %p179
      %p181 = scmp.ne.s32.totalorder %s169, %s170
      %p182 = scmp.eq.s32.totalorder %s22, 1
      %p183 = por %p181, %p182
      %p185 = scmp.ne.s32.totalorder %s170, %s184
      %p186 = scmp.eq.s32.totalorder %s22, 0
      %p187 = por %p185, %p186
      %s188 = ssub.s32 %s23, %s35
      %s189 = ssub.s32 %s24, %s31
      %s190 = sor.u32 %s188, %s189
      %p191 = scmp.eq.s32.totalorder %s190, 0
      %s193 = sadd.s32 %s192, 1
      %s194 = scalar_select %p191, %s192, %s193
      %p197 = pneg %p191
      %p198 = scmp.eq.s32.totalorder %s16, 1
      %p199 = por %p197, %p198
      %p200 = scmp.ne.s32.totalorder %s192, %s195
      %p201 = scmp.eq.s32.totalorder %s16, 0
      %p202 = por %p200, %p201
      %p203 = scmp.ne.s32.totalorder %s192, %s195
      %p204 = scmp.eq.s32.totalorder %s21, 1
      %p205 = por %p203, %p204
      %p206 = scmp.ne.s32.totalorder %s195, %s196
      %p207 = scmp.eq.s32.totalorder %s21, 0
      %p208 = por %p206, %p207
      %p209 = scmp.ne.s32.totalorder %s195, %s196
      %p210 = scmp.eq.s32.totalorder %s22, 1
      %p211 = por %p209, %p210
      %p213 = scmp.ne.s32.totalorder %s196, %s212
      %p214 = scmp.eq.s32.totalorder %s22, 0
      %p215 = por %p213, %p214
      %p216 = scmp.le.s32.totalorder 1, %s16
      %p217 = scmp.lt.s32.totalorder %s16, 3
      %p218 = pnand %p216, %p217
      %p219 = pneg %p218
      // Predicated region
      $region9: #{fwd.3} parent=5 // pred_check
        _
      $region10: #{fwd.3} parent=5 // pred_check_branch
        %221 = sbr.rel (%p218) target = $region12
      $region11: #{fwd.3} parent=5 // pred_region
        %s222 = ssub.s32 %s16, 1
        // Predicated region
        $region13: #{fwd.3} parent=11 // pred_check
          %p223 = pneg %p75
        $region14: #{fwd.3} parent=11 // pred_check_branch
          %225 = sbr.rel (%p223) target = $region16
        $region15: #{fwd.3} parent=11 // pred_region
          _
        $region16: #{fwd.3} parent=11 // pred_fallthru
          _
        // Predicated region
        $region17: #{fwd.3} parent=11 // pred_check
          %p226 = pneg %p96
        $region18: #{fwd.3} parent=11 // pred_check_branch
          %228 = sbr.rel (%p226) target = $region20
        $region19: #{fwd.3} parent=11 // pred_region
          _
        $region20: #{fwd.3} parent=11 // pred_fallthru
          _
        // Predicated region
        $region21: #{fwd.3} parent=11 // pred_check
          %p229 = pneg %p117
        $region22: #{fwd.3} parent=11 // pred_check_branch
          %231 = sbr.rel (%p229) target = $region24
        $region23: #{fwd.3} parent=11 // pred_region
          _
        $region24: #{fwd.3} parent=11 // pred_fallthru
          _
        // Predicated region
        $region25: #{fwd.3} parent=11 // pred_check
          %p232 = pneg %p138
        $region26: #{fwd.3} parent=11 // pred_check_branch
          %234 = sbr.rel (%p232) target = $region28
        $region27: #{fwd.3} parent=11 // pred_region
          _
        $region28: #{fwd.3} parent=11 // pred_fallthru
          _
        // Predicated region
        $region29: #{fwd.3} parent=11 // pred_check
          %p235 = pneg %p159
        $region30: #{fwd.3} parent=11 // pred_check_branch
          %237 = sbr.rel (%p235) target = $region32
        $region31: #{fwd.3} parent=11 // pred_region
          _
        $region32: #{fwd.3} parent=11 // pred_fallthru
          _
        // Predicated region
        $region33: #{fwd.3} parent=11 // pred_check
          %p238 = pneg %p180
        $region34: #{fwd.3} parent=11 // pred_check_branch
          %240 = sbr.rel (%p238) target = $region36
        $region35: #{fwd.3} parent=11 // pred_region
          _
        $region36: #{fwd.3} parent=11 // pred_fallthru
          _
      $region12: #{fwd.3} parent=5 // pred_fallthru
        _
      %p241 = scmp.lt.s32.totalorder %s16, 2
      // Predicated region
      $region37: #{fwd.3} parent=5 // pred_check
        %p242 = pneg %p241
      $region38: #{fwd.3} parent=5 // pred_check_branch
        %244 = sbr.rel (%p242) target = $region40
      $region39: #{fwd.3} parent=5 // pred_region
        // Predicated region
        $region41: #{fwd.3} parent=39 // pred_check
          %p245 = pneg %p48
        $region42: #{fwd.3} parent=39 // pred_check_branch
          %247 = sbr.rel (%p245) target = $region44
        $region43: #{fwd.3} parent=39 // pred_region
          %p248 = scmp.lt.s32.totalorder %s23, 1
          %s249 = scalar_select %p248, %s23, 1
          %s250 = smul.addr %s249, 54
          %s251 = smul.addr %s250, 8
          %s252 = scalar_lea.vmem %s0, %s251
        $region44: #{fwd.3} parent=39 // pred_fallthru
          _
      $region40: #{fwd.3} parent=5 // pred_fallthru
        _
      %p253 = scmp.le.s32.totalorder 1, %s16
      %p254 = scmp.lt.s32.totalorder %s16, 3
      %p255 = pnand %p253, %p254
      %p256 = pneg %p255
      // Predicated region
      $region45: #{fwd.3} parent=5 // pred_check
        _
      $region46: #{fwd.3} parent=5 // pred_check_branch
        %258 = sbr.rel (%p255) target = $region48
      $region47: #{fwd.3} parent=5 // pred_region
        %s259 = ssub.s32 %s16, 1
        %p260 = scmp.lt.s32.totalorder %s25, 1
        %s261 = scalar_select %p260, %s25, 1
        %s262 = smul.addr %s261, 54
        %s263 = smul.addr %s262, 8
        %s264 = scalar_lea.vmem %s0, %s263
        %p265 = pneg %p54
        %p266 = pneg %p51
        %p267 = pneg %p75
        %p268 = pneg %p72
        %p269 = pneg %p96
        %p270 = pneg %p93
        %p271 = pneg %p117
        %p272 = pneg %p114
        %p273 = pneg %p138
        %p274 = pneg %p135
        %p275 = pneg %p159
        %p276 = pneg %p156
        %p277 = pneg %p180
        %p278 = pneg %p177
        %p279 = pneg %p208
        %p280 = pneg %p205
        %s281 = sand.u32 %s195, 1
        %s282 = scalar_lea.sflag [#allocation4], %s281
        %s283 = sand.u32 %s195, 1
        %s284 = smul.addr %s283, 64
        %s285 = scalar_lea.vmem [#allocation3], %s284
        %p286 = scmp.lt.s32.totalorder %s25, 1
        %s287 = scalar_select %p286, %s25, 1
        %s288 = smul.addr %s287, 54
        %s289 = smul.addr %s288, 8
        %s290 = scalar_lea.vmem %s0, %s289
        %s291 = smul.u32 8, %s26
        %s293 = smul.u32 %s26, 16
        %s294 = smul.u32 %s293, 24
        %s295 = scalar_lea.vmem %s290, %s294
        %v296 = vld [vmem:[%s295] sm:$0xff]
        %v297 = vld [vmem:[%s295 + $0x8] sm:$0xff]
        %v298 = vld [vmem:[%s295 + $0x10] sm:$0xff]
        %v299 = vld [vmem:[%s295 + $0x18] sm:$0xff]
        %v300 = vld [vmem:[%s295 + $0x20] sm:$0xff]
        %v301 = vld [vmem:[%s295 + $0x28] sm:$0xff]
        %v302 = vld [vmem:[%s295 + $0x30] sm:$0xff]
        %v303 = vld [vmem:[%s295 + $0x38] sm:$0xff]
        %v304 = vld [vmem:[%s295 + $0x40] sm:$0xff]
        %v305 = vld [vmem:[%s295 + $0x48] sm:$0xff]
        %v306 = vld [vmem:[%s295 + $0x50] sm:$0xff]
        %v307 = vld [vmem:[%s295 + $0x58] sm:$0xff]
        %v308 = vld [vmem:[%s295 + $0x60] sm:$0xff]
        %v309 = vld [vmem:[%s295 + $0x68] sm:$0xff]
        %v310 = vld [vmem:[%s295 + $0x70] sm:$0xff]
        %v311 = vld [vmem:[%s295 + $0x78] sm:$0xff]
        %v312 = vld [vmem:[%s295 + $0x80] sm:$0xff]
        %v313 = vld [vmem:[%s295 + $0x88] sm:$0xff]
        %v314 = vld [vmem:[%s295 + $0x90] sm:$0xff]
        %v315 = vld [vmem:[%s295 + $0x98] sm:$0xff]
        %v316 = vld [vmem:[%s295 + $0xa0] sm:$0xff]
        %v317 = vld [vmem:[%s295 + $0xa8] sm:$0xff]
        %v318 = vld [vmem:[%s295 + $0xb0] sm:$0xff]
        %v319 = vld [vmem:[%s295 + $0xb8] sm:$0xff]
        %v320 = vld [vmem:[%s295 + $0xc0] sm:$0xff]
        %v321 = vld [vmem:[%s295 + $0xc8] sm:$0xff]
        %v322 = vld [vmem:[%s295 + $0xd0] sm:$0xff]
        %v323 = vld [vmem:[%s295 + $0xd8] sm:$0xff]
        %v324 = vld [vmem:[%s295 + $0xe0] sm:$0xff]
        %v325 = vld [vmem:[%s295 + $0xe8] sm:$0xff]
        %v326 = vld [vmem:[%s295 + $0xf0] sm:$0xff]
        %v327 = vld [vmem:[%s295 + $0xf8] sm:$0xff]
        %v328 = vld [vmem:[%s295 + $0x100] sm:$0xff]
        %v329 = vld [vmem:[%s295 + $0x108] sm:$0xff]
        %v330 = vld [vmem:[%s295 + $0x110] sm:$0xff]
        %v331 = vld [vmem:[%s295 + $0x118] sm:$0xff]
        %v332 = vld [vmem:[%s295 + $0x120] sm:$0xff]
        %v333 = vld [vmem:[%s295 + $0x128] sm:$0xff]
        %v334 = vld [vmem:[%s295 + $0x130] sm:$0xff]
        %v335 = vld [vmem:[%s295 + $0x138] sm:$0xff]
        %v336 = vld [vmem:[%s295 + $0x140] sm:$0xff]
        %v337 = vld [vmem:[%s295 + $0x148] sm:$0xff]
        %v338 = vld [vmem:[%s295 + $0x150] sm:$0xff]
        %v339 = vld [vmem:[%s295 + $0x158] sm:$0xff]
        %v340 = vld [vmem:[%s295 + $0x160] sm:$0xff]
        %v341 = vld [vmem:[%s295 + $0x168] sm:$0xff]
        %v342 = vld [vmem:[%s295 + $0x170] sm:$0xff]
        %v343 = vld [vmem:[%s295 + $0x178] sm:$0xff]
        %v344 = vld [vmem:[%s295 + $0x180] sm:$0xff]
        %v345 = vld [vmem:[%s295 + $0x188] sm:$0xff]
        %v346 = vld [vmem:[%s295 + $0x190] sm:$0xff]
        %v347 = vpack.c.bf16 %v297, %v296
        %v348 = vpack.c.bf16 %v299, %v298
        %v349 = vpack.c.bf16 %v301, %v300
        %v350 = vpack.c.bf16 %v303, %v302
        %v351 = vpack.c.bf16 %v305, %v304
        %v352 = vpack.c.bf16 %v307, %v306
        %v353 = vpack.c.bf16 %v309, %v308
        %v354 = vpack.c.bf16 %v311, %v310
        %v355 = vpack.c.bf16 %v313, %v312
        %v356 = vpack.c.bf16 %v315, %v314
        %v357 = vpack.c.bf16 %v317, %v316
        %v358 = vpack.c.bf16 %v319, %v318
        %v359 = vpack.c.bf16 %v321, %v320
        %v360 = vpack.c.bf16 %v323, %v322
        %v361 = vpack.c.bf16 %v325, %v324
        %v362 = vpack.c.bf16 %v327, %v326
        %v363 = vpack.c.bf16 %v329, %v328
        %v364 = vpack.c.bf16 %v331, %v330
        %v365 = vpack.c.bf16 %v333, %v332
        %v366 = vpack.c.bf16 %v335, %v334
        %v367 = vpack.c.bf16 %v337, %v336
        %v368 = vpack.c.bf16 %v339, %v338
        %v369 = vpack.c.bf16 %v341, %v340
        %v370 = vpack.c.bf16 %v343, %v342
        %v371 = vpack.c.bf16 %v345, %v344
        %v372 = vpack.c.bf16 %v346, %v346
        %v373 = vld [vmem:[%s1] sm:$0xf]
        %v374 = vld [vmem:[%s1 + $0x4] sm:$0xf]
        %v375 = vld [vmem:[%s2] sm:$0x1]
        %v377 = vperm.slane %v375, 0
        %v381 = vunpack.c.l.b16 %v373
        %v382 = vunpack.c.l.b16 %v374
        %v383 = vpack.c.b16 %v382, %v381
        %vm385 = vcmask 130048
        %v387 = vsel %vm385, %v347, 0
        %v390 = vsel %vm385, %v348, 0
        %v393 = vsel %vm385, %v349, 0
        %v396 = vsel %vm385, %v350, 0
        %v399 = vsel %vm385, %v351, 0
        %v402 = vsel %vm385, %v352, 0
        %v405 = vsel %vm385, %v353, 0
        %v408 = vsel %vm385, %v354, 0
        %v411 = vsel %vm385, %v355, 0
        %v414 = vsel %vm385, %v356, 0
        %v417 = vsel %vm385, %v357, 0
        %v420 = vsel %vm385, %v358, 0
        %v423 = vsel %vm385, %v359, 0
        %v426 = vsel %vm385, %v360, 0
        %v429 = vsel %vm385, %v361, 0
        %v432 = vsel %vm385, %v362, 0
        %v435 = vsel %vm385, %v363, 0
        %v438 = vsel %vm385, %v364, 0
        %v441 = vsel %vm385, %v365, 0
        %v444 = vsel %vm385, %v366, 0
        %v447 = vsel %vm385, %v367, 0
        %v450 = vsel %vm385, %v368, 0
        %v453 = vsel %vm385, %v369, 0
        %v456 = vsel %vm385, %v370, 0
        %v459 = vsel %vm385, %v371, 0
        %v462 = vsel %vm385, %v372, 0
        %464 = vmatpush.bf16.msra.mxu0 0
        %465 = vmatpush.bf16.msra.mxu0 0
        %466 = vmatpush.bf16.msra.mxu0 0
        %467 = vmatpush.bf16.msra.mxu0 0
        %468 = vmatpush.bf16.msra.mxu0 0
        %469 = vmatpush.bf16.msra.mxu0 0
        %470 = vmatpush.bf16.msra.mxu0 0
        %471 = vmatpush.bf16.msra.mxu0 %v383
        %472 = vmatmul.bf16.gmra.mxu0 %v387
        %v473 = vpop.f32.mrf.mxu0
        %v474 = vadd.f32 %v377, %v473
        %v475 = vpop.f32.mrf.mxu0
        %v476 = vadd.f32 %v377, %v475
        %477 = vmatmul.bf16.gmra.mxu0 %v390
        %v478 = vpop.f32.mrf.mxu0
        %v479 = vadd.f32 %v377, %v478
        %v480 = vpop.f32.mrf.mxu0
        %v481 = vadd.f32 %v377, %v480
        %482 = vmatmul.bf16.gmra.mxu0 %v393
        %v483 = vpop.f32.mrf.mxu0
        %v484 = vadd.f32 %v377, %v483
        %v485 = vpop.f32.mrf.mxu0
        %v486 = vadd.f32 %v377, %v485
        %487 = vmatmul.bf16.gmra.mxu0 %v396
        %v488 = vpop.f32.mrf.mxu0
        %v489 = vadd.f32 %v377, %v488
        %v490 = vpop.f32.mrf.mxu0
        %v491 = vadd.f32 %v377, %v490
        %492 = vmatmul.bf16.gmra.mxu0 %v399
        %v493 = vpop.f32.mrf.mxu0
        %v494 = vadd.f32 %v377, %v493
        %v495 = vpop.f32.mrf.mxu0
        %v496 = vadd.f32 %v377, %v495
        %497 = vmatmul.bf16.gmra.mxu0 %v402
        %v498 = vpop.f32.mrf.mxu0
        %v499 = vadd.f32 %v377, %v498
        %v500 = vpop.f32.mrf.mxu0
        %v501 = vadd.f32 %v377, %v500
        %502 = vmatmul.bf16.gmra.mxu0 %v405
        %v503 = vpop.f32.mrf.mxu0
        %v504 = vadd.f32 %v377, %v503
        %v505 = vpop.f32.mrf.mxu0
        %v506 = vadd.f32 %v377, %v505
        %507 = vmatmul.bf16.gmra.mxu0 %v408
        %v508 = vpop.f32.mrf.mxu0
        %v509 = vadd.f32 %v377, %v508
        %v510 = vpop.f32.mrf.mxu0
        %v511 = vadd.f32 %v377, %v510
        %512 = vmatmul.bf16.gmra.mxu0 %v411
        %v513 = vpop.f32.mrf.mxu0
        %v514 = vadd.f32 %v377, %v513
        %v515 = vpop.f32.mrf.mxu0
        %v516 = vadd.f32 %v377, %v515
        %517 = vmatmul.bf16.gmra.mxu0 %v414
        %v518 = vpop.f32.mrf.mxu0
        %v519 = vadd.f32 %v377, %v518
        %v520 = vpop.f32.mrf.mxu0
        %v521 = vadd.f32 %v377, %v520
        %522 = vmatmul.bf16.gmra.mxu0 %v417
        %v523 = vpop.f32.mrf.mxu0
        %v524 = vadd.f32 %v377, %v523
        %v525 = vpop.f32.mrf.mxu0
        %v526 = vadd.f32 %v377, %v525
        %527 = vmatmul.bf16.gmra.mxu0 %v420
        %v528 = vpop.f32.mrf.mxu0
        %v529 = vadd.f32 %v377, %v528
        %v530 = vpop.f32.mrf.mxu0
        %v531 = vadd.f32 %v377, %v530
        %532 = vmatmul.bf16.gmra.mxu0 %v423
        %v533 = vpop.f32.mrf.mxu0
        %v534 = vadd.f32 %v377, %v533
        %v535 = vpop.f32.mrf.mxu0
        %v536 = vadd.f32 %v377, %v535
        %537 = vmatmul.bf16.gmra.mxu0 %v426
        %v538 = vpop.f32.mrf.mxu0
        %v539 = vadd.f32 %v377, %v538
        %v540 = vpop.f32.mrf.mxu0
        %v541 = vadd.f32 %v377, %v540
        %542 = vmatmul.bf16.gmra.mxu0 %v429
        %v543 = vpop.f32.mrf.mxu0
        %v544 = vadd.f32 %v377, %v543
        %v545 = vpop.f32.mrf.mxu0
        %v546 = vadd.f32 %v377, %v545
        %547 = vmatmul.bf16.gmra.mxu0 %v432
        %v548 = vpop.f32.mrf.mxu0
        %v549 = vadd.f32 %v377, %v548
        %v550 = vpop.f32.mrf.mxu0
        %v551 = vadd.f32 %v377, %v550
        %552 = vmatmul.bf16.gmra.mxu0 %v435
        %v553 = vpop.f32.mrf.mxu0
        %v554 = vadd.f32 %v377, %v553
        %v555 = vpop.f32.mrf.mxu0
        %v556 = vadd.f32 %v377, %v555
        %557 = vmatmul.bf16.gmra.mxu0 %v438
        %v558 = vpop.f32.mrf.mxu0
        %v559 = vadd.f32 %v377, %v558
        %v560 = vpop.f32.mrf.mxu0
        %v561 = vadd.f32 %v377, %v560
        %562 = vmatmul.bf16.gmra.mxu0 %v441
        %v563 = vpop.f32.mrf.mxu0
        %v564 = vadd.f32 %v377, %v563
        %v565 = vpop.f32.mrf.mxu0
        %v566 = vadd.f32 %v377, %v565
        %567 = vmatmul.bf16.gmra.mxu0 %v444
        %v568 = vpop.f32.mrf.mxu0
        %v569 = vadd.f32 %v377, %v568
        %v570 = vpop.f32.mrf.mxu0
        %v571 = vadd.f32 %v377, %v570
        %572 = vmatmul.bf16.gmra.mxu0 %v447
        %v573 = vpop.f32.mrf.mxu0
        %v574 = vadd.f32 %v377, %v573
        %v575 = vpop.f32.mrf.mxu0
        %v576 = vadd.f32 %v377, %v575
        %577 = vmatmul.bf16.gmra.mxu0 %v450
        %v578 = vpop.f32.mrf.mxu0
        %v579 = vadd.f32 %v377, %v578
        %v580 = vpop.f32.mrf.mxu0
        %v581 = vadd.f32 %v377, %v580
        %582 = vmatmul.bf16.gmra.mxu0 %v453
        %v583 = vpop.f32.mrf.mxu0
        %v584 = vadd.f32 %v377, %v583
        %v585 = vpop.f32.mrf.mxu0
        %v586 = vadd.f32 %v377, %v585
        %587 = vmatmul.bf16.gmra.mxu0 %v456
        %v588 = vpop.f32.mrf.mxu0
        %v589 = vadd.f32 %v377, %v588
        %v590 = vpop.f32.mrf.mxu0
        %v591 = vadd.f32 %v377, %v590
        %592 = vmatmul.bf16.gmra.mxu0 %v459
        %v593 = vpop.f32.mrf.mxu0
        %v594 = vadd.f32 %v377, %v593
        %v595 = vpop.f32.mrf.mxu0
        %v596 = vadd.f32 %v377, %v595
        %597 = vmatmul.bf16.gmra.mxu0 %v462
        %v598 = vpop.f32.mrf.mxu0
        %v599 = vadd.f32 %v377, %v598
        %v600 = vpop.f32.mrf.mxu0
        %601 = vdwg.mxu0
        %v602 = vmax.f32 %v474, 0.0
        %v603 = vmax.f32 %v476, 0.0
        %v604 = vmax.f32 %v479, 0.0
        %v605 = vmax.f32 %v481, 0.0
        %v606 = vmax.f32 %v484, 0.0
        %v607 = vmax.f32 %v486, 0.0
        %v608 = vmax.f32 %v489, 0.0
        %v609 = vmax.f32 %v491, 0.0
        %v610 = vmax.f32 %v494, 0.0
        %v611 = vmax.f32 %v496, 0.0
        %v612 = vmax.f32 %v499, 0.0
        %v613 = vmax.f32 %v501, 0.0
        %v614 = vmax.f32 %v504, 0.0
        %v615 = vmax.f32 %v506, 0.0
        %v616 = vmax.f32 %v509, 0.0
        %v617 = vmax.f32 %v511, 0.0
        %v618 = vmax.f32 %v514, 0.0
        %v619 = vmax.f32 %v516, 0.0
        %v620 = vmax.f32 %v519, 0.0
        %v621 = vmax.f32 %v521, 0.0
        %v622 = vmax.f32 %v524, 0.0
        %v623 = vmax.f32 %v526, 0.0
        %v624 = vmax.f32 %v529, 0.0
        %v625 = vmax.f32 %v531, 0.0
        %v626 = vmax.f32 %v534, 0.0
        %v627 = vmax.f32 %v536, 0.0
        %v628 = vmax.f32 %v539, 0.0
        %v629 = vmax.f32 %v541, 0.0
        %v630 = vmax.f32 %v544, 0.0
        %v631 = vmax.f32 %v546, 0.0
        %v632 = vmax.f32 %v549, 0.0
        %v633 = vmax.f32 %v551, 0.0
        %v634 = vmax.f32 %v554, 0.0
        %v635 = vmax.f32 %v556, 0.0
        %v636 = vmax.f32 %v559, 0.0
        %v637 = vmax.f32 %v561, 0.0
        %v638 = vmax.f32 %v564, 0.0
        %v639 = vmax.f32 %v566, 0.0
        %v640 = vmax.f32 %v569, 0.0
        %v641 = vmax.f32 %v571, 0.0
        %v642 = vmax.f32 %v574, 0.0
        %v643 = vmax.f32 %v576, 0.0
        %v644 = vmax.f32 %v579, 0.0
        %v645 = vmax.f32 %v581, 0.0
        %v646 = vmax.f32 %v584, 0.0
        %v647 = vmax.f32 %v586, 0.0
        %v648 = vmax.f32 %v589, 0.0
        %v649 = vmax.f32 %v591, 0.0
        %v650 = vmax.f32 %v594, 0.0
        %v651 = vmax.f32 %v596, 0.0
        %v652 = vmax.f32 %v599, 0.0
        %v653 = vmin.f32 %v602, 6.0
        %v654 = vmin.f32 %v603, 6.0
        %v655 = vmin.f32 %v604, 6.0
        %v656 = vmin.f32 %v605, 6.0
        %v657 = vmin.f32 %v606, 6.0
        %v658 = vmin.f32 %v607, 6.0
        %v659 = vmin.f32 %v608, 6.0
        %v660 = vmin.f32 %v609, 6.0
        %v661 = vmin.f32 %v610, 6.0
        %v662 = vmin.f32 %v611, 6.0
        %v663 = vmin.f32 %v612, 6.0
        %v664 = vmin.f32 %v613, 6.0
        %v665 = vmin.f32 %v614, 6.0
        %v666 = vmin.f32 %v615, 6.0
        %v667 = vmin.f32 %v616, 6.0
        %v668 = vmin.f32 %v617, 6.0
        %v669 = vmin.f32 %v618, 6.0
        %v670 = vmin.f32 %v619, 6.0
        %v671 = vmin.f32 %v620, 6.0
        %v672 = vmin.f32 %v621, 6.0
        %v673 = vmin.f32 %v622, 6.0
        %v674 = vmin.f32 %v623, 6.0
        %v675 = vmin.f32 %v624, 6.0
        %v676 = vmin.f32 %v625, 6.0
        %v677 = vmin.f32 %v626, 6.0
        %v678 = vmin.f32 %v627, 6.0
        %v679 = vmin.f32 %v628, 6.0
        %v680 = vmin.f32 %v629, 6.0
        %v681 = vmin.f32 %v630, 6.0
        %v682 = vmin.f32 %v631, 6.0
        %v683 = vmin.f32 %v632, 6.0
        %v684 = vmin.f32 %v633, 6.0
        %v685 = vmin.f32 %v634, 6.0
        %v686 = vmin.f32 %v635, 6.0
        %v687 = vmin.f32 %v636, 6.0
        %v688 = vmin.f32 %v637, 6.0
        %v689 = vmin.f32 %v638, 6.0
        %v690 = vmin.f32 %v639, 6.0
        %v691 = vmin.f32 %v640, 6.0
        %v692 = vmin.f32 %v641, 6.0
        %v693 = vmin.f32 %v642, 6.0
        %v694 = vmin.f32 %v643, 6.0
        %v695 = vmin.f32 %v644, 6.0
        %v696 = vmin.f32 %v645, 6.0
        %v697 = vmin.f32 %v646, 6.0
        %v698 = vmin.f32 %v647, 6.0
        %v699 = vmin.f32 %v648, 6.0
        %v700 = vmin.f32 %v649, 6.0
        %v701 = vmin.f32 %v650, 6.0
        %v702 = vmin.f32 %v651, 6.0
        %v703 = vmin.f32 %v652, 6.0
        %v704 = vstv %s293
        %v705 = vadd.s32 %v704, 1
        %v706 = vadd.s32 %v704, 2
        %v707 = vadd.s32 %v704, 3
        %v708 = vadd.s32 %v704, 4
        %v709 = vadd.s32 %v704, 5
        %v710 = vadd.s32 %v704, 6
        %v711 = vadd.s32 %v704, 7
        %v712 = vadd.s32 %v704, 8
        %v713 = vadd.s32 %v704, 9
        %v714 = vadd.s32 %v704, 10
        %v715 = vadd.s32 %v704, 11
        %v716 = vadd.s32 %v704, 12
        %v717 = vadd.s32 %v704, 13
        %v718 = vadd.s32 %v704, 14
        %v719 = vadd.s32 %v704, 15
        %v720 = vadd.s32 %v704, 16
        %v721 = vlaneseq
        %v722 = vshrl.u32 %v721, 7
        %v723 = vadd.s32 %v722, 8
        %v724 = vadd.s32 %v722, 16
        %vm725 = vcmp.ge.s32.totalorder %v704, 1
        %vm726 = vcmp.ge.s32.totalorder %v705, 1
        %vm727 = vcmp.ge.s32.totalorder %v706, 1
        %vm728 = vcmp.ge.s32.totalorder %v707, 1
        %vm729 = vcmp.ge.s32.totalorder %v708, 1
        %vm730 = vcmp.ge.s32.totalorder %v709, 1
        %vm731 = vcmp.ge.s32.totalorder %v710, 1
        %vm732 = vcmp.ge.s32.totalorder %v711, 1
        %vm733 = vcmp.ge.s32.totalorder %v712, 1
        %vm734 = vcmp.ge.s32.totalorder %v713, 1
        %vm735 = vcmp.ge.s32.totalorder %v714, 1
        %vm736 = vcmp.ge.s32.totalorder %v715, 1
        %vm737 = vcmp.ge.s32.totalorder %v716, 1
        %vm738 = vcmp.ge.s32.totalorder %v717, 1
        %vm739 = vcmp.ge.s32.totalorder %v718, 1
        %vm740 = vcmp.ge.s32.totalorder %v719, 1
        %vm741 = vcmp.ge.s32.totalorder %v720, 1
        %vm742 = vcmp.le.s32.totalorder %v704, 16
        %vm743 = vcmp.le.s32.totalorder %v705, 16
        %vm744 = vcmp.le.s32.totalorder %v706, 16
        %vm745 = vcmp.le.s32.totalorder %v707, 16
        %vm746 = vcmp.le.s32.totalorder %v708, 16
        %vm747 = vcmp.le.s32.totalorder %v709, 16
        %vm748 = vcmp.le.s32.totalorder %v710, 16
        %vm749 = vcmp.le.s32.totalorder %v711, 16
        %vm750 = vcmp.le.s32.totalorder %v712, 16
        %vm751 = vcmp.le.s32.totalorder %v713, 16
        %vm752 = vcmp.le.s32.totalorder %v714, 16
        %vm753 = vcmp.le.s32.totalorder %v715, 16
        %vm754 = vcmp.le.s32.totalorder %v716, 16
        %vm755 = vcmp.le.s32.totalorder %v717, 16
        %vm756 = vcmp.le.s32.totalorder %v718, 16
        %vm757 = vcmp.le.s32.totalorder %v719, 16
        %vm758 = vcmp.le.s32.totalorder %v720, 16
        %vm759 = vmand %vm725, %vm742
        %vm760 = vmand %vm726, %vm743
        %vm761 = vmand %vm727, %vm744
        %vm762 = vmand %vm728, %vm745
        %vm763 = vmand %vm729, %vm746
        %vm764 = vmand %vm730, %vm747
        %vm765 = vmand %vm731, %vm748
        %vm766 = vmand %vm732, %vm749
        %vm767 = vmand %vm733, %vm750
        %vm768 = vmand %vm734, %vm751
        %vm769 = vmand %vm735, %vm752
        %vm770 = vmand %vm736, %vm753
        %vm771 = vmand %vm737, %vm754
        %vm772 = vmand %vm738, %vm755
        %vm773 = vmand %vm739, %vm756
        %vm774 = vmand %vm740, %vm757
        %vm775 = vmand %vm741, %vm758
        %vm776 = vcmp.ge.s32.totalorder %v722, 1
        %vm777 = vcmp.ge.s32.totalorder %v723, 1
        %vm778 = vcmp.ge.s32.totalorder %v724, 1
        %vm779 = vmand %vm759, %vm776
        %vm780 = vmand %vm759, %vm777
        %vm781 = vmand %vm759, %vm778
        %vm782 = vmand %vm760, %vm776
        %vm783 = vmand %vm760, %vm777
        %vm784 = vmand %vm760, %vm778
        %vm785 = vmand %vm761, %vm776
        %vm786 = vmand %vm761, %vm777
        %vm787 = vmand %vm761, %vm778
        %vm788 = vmand %vm762, %vm776
        %vm789 = vmand %vm762, %vm777
        %vm790 = vmand %vm762, %vm778
        %vm791 = vmand %vm763, %vm776
        %vm792 = vmand %vm763, %vm777
        %vm793 = vmand %vm763, %vm778
        %vm794 = vmand %vm764, %vm776
        %vm795 = vmand %vm764, %vm777
        %vm796 = vmand %vm764, %vm778
        %vm797 = vmand %vm765, %vm776
        %vm798 = vmand %vm765, %vm777
        %vm799 = vmand %vm765, %vm778
        %vm800 = vmand %vm766, %vm776
        %vm801 = vmand %vm766, %vm777
        %vm802 = vmand %vm766, %vm778
        %vm803 = vmand %vm767, %vm776
        %vm804 = vmand %vm767, %vm777
        %vm805 = vmand %vm767, %vm778
        %vm806 = vmand %vm768, %vm776
        %vm807 = vmand %vm768, %vm777
        %vm808 = vmand %vm768, %vm778
        %vm809 = vmand %vm769, %vm776
        %vm810 = vmand %vm769, %vm777
        %vm811 = vmand %vm769, %vm778
        %vm812 = vmand %vm770, %vm776
        %vm813 = vmand %vm770, %vm777
        %vm814 = vmand %vm770, %vm778
        %vm815 = vmand %vm771, %vm776
        %vm816 = vmand %vm771, %vm777
        %vm817 = vmand %vm771, %vm778
        %vm818 = vmand %vm772, %vm776
        %vm819 = vmand %vm772, %vm777
        %vm820 = vmand %vm772, %vm778
        %vm821 = vmand %vm773, %vm776
        %vm822 = vmand %vm773, %vm777
        %vm823 = vmand %vm773, %vm778
        %vm824 = vmand %vm774, %vm776
        %vm825 = vmand %vm774, %vm777
        %vm826 = vmand %vm774, %vm778
        %vm827 = vmand %vm775, %vm776
        %vm828 = vmand %vm775, %vm777
        %vm829 = vmand %vm775, %vm778
        %vm830 = vcmp.le.s32.totalorder %v722, 16
        %vm831 = vcmp.le.s32.totalorder %v723, 16
        %vm832 = vcmp.le.s32.totalorder %v724, 16
        %vm833 = vmand %vm779, %vm830
        %vm834 = vmand %vm780, %vm831
        %vm835 = vmand %vm781, %vm832
        %vm836 = vmand %vm782, %vm830
        %vm837 = vmand %vm783, %vm831
        %vm838 = vmand %vm784, %vm832
        %vm839 = vmand %vm785, %vm830
        %vm840 = vmand %vm786, %vm831
        %vm841 = vmand %vm787, %vm832
        %vm842 = vmand %vm788, %vm830
        %vm843 = vmand %vm789, %vm831
        %vm844 = vmand %vm790, %vm832
        %vm845 = vmand %vm791, %vm830
        %vm846 = vmand %vm792, %vm831
        %vm847 = vmand %vm793, %vm832
        %vm848 = vmand %vm794, %vm830
        %vm849 = vmand %vm795, %vm831
        %vm850 = vmand %vm796, %vm832
        %vm851 = vmand %vm797, %vm830
        %vm852 = vmand %vm798, %vm831
        %vm853 = vmand %vm799, %vm832
        %vm854 = vmand %vm800, %vm830
        %vm855 = vmand %vm801, %vm831
        %vm856 = vmand %vm802, %vm832
        %vm857 = vmand %vm803, %vm830
        %vm858 = vmand %vm804, %vm831
        %vm859 = vmand %vm805, %vm832
        %vm860 = vmand %vm806, %vm830
        %vm861 = vmand %vm807, %vm831
        %vm862 = vmand %vm808, %vm832
        %vm863 = vmand %vm809, %vm830
        %vm864 = vmand %vm810, %vm831
        %vm865 = vmand %vm811, %vm832
        %vm866 = vmand %vm812, %vm830
        %vm867 = vmand %vm813, %vm831
        %vm868 = vmand %vm814, %vm832
        %vm869 = vmand %vm815, %vm830
        %vm870 = vmand %vm816, %vm831
        %vm871 = vmand %vm817, %vm832
        %vm872 = vmand %vm818, %vm830
        %vm873 = vmand %vm819, %vm831
        %vm874 = vmand %vm820, %vm832
        %vm875 = vmand %vm821, %vm830
        %vm876 = vmand %vm822, %vm831
        %vm877 = vmand %vm823, %vm832
        %vm878 = vmand %vm824, %vm830
        %vm879 = vmand %vm825, %vm831
        %vm880 = vmand %vm826, %vm832
        %vm881 = vmand %vm827, %vm830
        %vm882 = vmand %vm828, %vm831
        %vm883 = vmand %vm829, %vm832
        %v884 = vsel %vm833, 1, 0
        %v885 = vsel %vm834, 1, 0
        %v886 = vsel %vm835, 1, 0
        %v887 = vsel %vm836, 1, 0
        %v888 = vsel %vm837, 1, 0
        %v889 = vsel %vm838, 1, 0
        %v890 = vsel %vm839, 1, 0
        %v891 = vsel %vm840, 1, 0
        %v892 = vsel %vm841, 1, 0
        %v893 = vsel %vm842, 1, 0
        %v894 = vsel %vm843, 1, 0
        %v895 = vsel %vm844, 1, 0
        %v896 = vsel %vm845, 1, 0
        %v897 = vsel %vm846, 1, 0
        %v898 = vsel %vm847, 1, 0
        %v899 = vsel %vm848, 1, 0
        %v900 = vsel %vm849, 1, 0
        %v901 = vsel %vm850, 1, 0
        %v902 = vsel %vm851, 1, 0
        %v903 = vsel %vm852, 1, 0
        %v904 = vsel %vm853, 1, 0
        %v905 = vsel %vm854, 1, 0
        %v906 = vsel %vm855, 1, 0
        %v907 = vsel %vm856, 1, 0
        %v908 = vsel %vm857, 1, 0
        %v909 = vsel %vm858, 1, 0
        %v910 = vsel %vm859, 1, 0
        %v911 = vsel %vm860, 1, 0
        %v912 = vsel %vm861, 1, 0
        %v913 = vsel %vm862, 1, 0
        %v914 = vsel %vm863, 1, 0
        %v915 = vsel %vm864, 1, 0
        %v916 = vsel %vm865, 1, 0
        %v917 = vsel %vm866, 1, 0
        %v918 = vsel %vm867, 1, 0
        %v919 = vsel %vm868, 1, 0
        %v920 = vsel %vm869, 1, 0
        %v921 = vsel %vm870, 1, 0
        %v922 = vsel %vm871, 1, 0
        %v923 = vsel %vm872, 1, 0
        %v924 = vsel %vm873, 1, 0
        %v925 = vsel %vm874, 1, 0
        %v926 = vsel %vm875, 1, 0
        %v927 = vsel %vm876, 1, 0
        %v928 = vsel %vm877, 1, 0
        %v929 = vsel %vm878, 1, 0
        %v930 = vsel %vm879, 1, 0
        %v931 = vsel %vm880, 1, 0
        %v932 = vsel %vm881, 1, 0
        %v933 = vsel %vm882, 1, 0
        %v934 = vsel %vm883, 1, 0
        %vm935 = vcmp.eq.s32.totalorder %v884, 1
        %vm936 = vcmp.eq.s32.totalorder %v885, 1
        %vm937 = vcmp.eq.s32.totalorder %v886, 1
        %vm938 = vcmp.eq.s32.totalorder %v887, 1
        %vm939 = vcmp.eq.s32.totalorder %v888, 1
        %vm940 = vcmp.eq.s32.totalorder %v889, 1
        %vm941 = vcmp.eq.s32.totalorder %v890, 1
        %vm942 = vcmp.eq.s32.totalorder %v891, 1
        %vm943 = vcmp.eq.s32.totalorder %v892, 1
        %vm944 = vcmp.eq.s32.totalorder %v893, 1
        %vm945 = vcmp.eq.s32.totalorder %v894, 1
        %vm946 = vcmp.eq.s32.totalorder %v895, 1
        %vm947 = vcmp.eq.s32.totalorder %v896, 1
        %vm948 = vcmp.eq.s32.totalorder %v897, 1
        %vm949 = vcmp.eq.s32.totalorder %v898, 1
        %vm950 = vcmp.eq.s32.totalorder %v899, 1
        %vm951 = vcmp.eq.s32.totalorder %v900, 1
        %vm952 = vcmp.eq.s32.totalorder %v901, 1
        %vm953 = vcmp.eq.s32.totalorder %v902, 1
        %vm954 = vcmp.eq.s32.totalorder %v903, 1
        %vm955 = vcmp.eq.s32.totalorder %v904, 1
        %vm956 = vcmp.eq.s32.totalorder %v905, 1
        %vm957 = vcmp.eq.s32.totalorder %v906, 1
        %vm958 = vcmp.eq.s32.totalorder %v907, 1
        %vm959 = vcmp.eq.s32.totalorder %v908, 1
        %vm960 = vcmp.eq.s32.totalorder %v909, 1
        %vm961 = vcmp.eq.s32.totalorder %v910, 1
        %vm962 = vcmp.eq.s32.totalorder %v911, 1
        %vm963 = vcmp.eq.s32.totalorder %v912, 1
        %vm964 = vcmp.eq.s32.totalorder %v913, 1
        %vm965 = vcmp.eq.s32.totalorder %v914, 1
        %vm966 = vcmp.eq.s32.totalorder %v915, 1
        %vm967 = vcmp.eq.s32.totalorder %v916, 1
        %vm968 = vcmp.eq.s32.totalorder %v917, 1
        %vm969 = vcmp.eq.s32.totalorder %v918, 1
        %vm970 = vcmp.eq.s32.totalorder %v919, 1
        %vm971 = vcmp.eq.s32.totalorder %v920, 1
        %vm972 = vcmp.eq.s32.totalorder %v921, 1
        %vm973 = vcmp.eq.s32.totalorder %v922, 1
        %vm974 = vcmp.eq.s32.totalorder %v923, 1
        %vm975 = vcmp.eq.s32.totalorder %v924, 1
        %vm976 = vcmp.eq.s32.totalorder %v925, 1
        %vm977 = vcmp.eq.s32.totalorder %v926, 1
        %vm978 = vcmp.eq.s32.totalorder %v927, 1
        %vm979 = vcmp.eq.s32.totalorder %v928, 1
        %vm980 = vcmp.eq.s32.totalorder %v929, 1
        %vm981 = vcmp.eq.s32.totalorder %v930, 1
        %vm982 = vcmp.eq.s32.totalorder %v931, 1
        %vm983 = vcmp.eq.s32.totalorder %v932, 1
        %vm984 = vcmp.eq.s32.totalorder %v933, 1
        %vm985 = vcmp.eq.s32.totalorder %v934, 1
        %v986 = vsel %vm935, %v653, 0.0
        %v987 = vsel %vm936, %v654, 0.0
        %v988 = vsel %vm937, %v655, 0.0
        %v989 = vsel %vm938, %v656, 0.0
        %v990 = vsel %vm939, %v657, 0.0
        %v991 = vsel %vm940, %v658, 0.0
        %v992 = vsel %vm941, %v659, 0.0
        %v993 = vsel %vm942, %v660, 0.0
        %v994 = vsel %vm943, %v661, 0.0
        %v995 = vsel %vm944, %v662, 0.0
        %v996 = vsel %vm945, %v663, 0.0
        %v997 = vsel %vm946, %v664, 0.0
        %v998 = vsel %vm947, %v665, 0.0
        %v999 = vsel %vm948, %v666, 0.0
        %v1000 = vsel %vm949, %v667, 0.0
        %v1001 = vsel %vm950, %v668, 0.0
        %v1002 = vsel %vm951, %v669, 0.0
        %v1003 = vsel %vm952, %v670, 0.0
        %v1004 = vsel %vm953, %v671, 0.0
        %v1005 = vsel %vm954, %v672, 0.0
        %v1006 = vsel %vm955, %v673, 0.0
        %v1007 = vsel %vm956, %v674, 0.0
        %v1008 = vsel %vm957, %v675, 0.0
        %v1009 = vsel %vm958, %v676, 0.0
        %v1010 = vsel %vm959, %v677, 0.0
        %v1011 = vsel %vm960, %v678, 0.0
        %v1012 = vsel %vm961, %v679, 0.0
        %v1013 = vsel %vm962, %v680, 0.0
        %v1014 = vsel %vm963, %v681, 0.0
        %v1015 = vsel %vm964, %v682, 0.0
        %v1016 = vsel %vm965, %v683, 0.0
        %v1017 = vsel %vm966, %v684, 0.0
        %v1018 = vsel %vm967, %v685, 0.0
        %v1019 = vsel %vm968, %v686, 0.0
        %v1020 = vsel %vm969, %v687, 0.0
        %v1021 = vsel %vm970, %v688, 0.0
        %v1022 = vsel %vm971, %v689, 0.0
        %v1023 = vsel %vm972, %v690, 0.0
        %v1024 = vsel %vm973, %v691, 0.0
        %v1025 = vsel %vm974, %v692, 0.0
        %v1026 = vsel %vm975, %v693, 0.0
        %v1027 = vsel %vm976, %v694, 0.0
        %v1028 = vsel %vm977, %v695, 0.0
        %v1029 = vsel %vm978, %v696, 0.0
        %v1030 = vsel %vm979, %v697, 0.0
        %v1031 = vsel %vm980, %v698, 0.0
        %v1032 = vsel %vm981, %v699, 0.0
        %v1033 = vsel %vm982, %v700, 0.0
        %v1034 = vsel %vm983, %v701, 0.0
        %v1035 = vsel %vm984, %v702, 0.0
        %v1036 = vsel %vm985, %v703, 0.0
        %vm1037 = vcmask 785408
        %1038 = vst.msk [vmem:[#allocation2] sm:$0xff] %vm1037, %v986
        %1039 = vst.msk [vmem:[#allocation2 + $0x8] sm:$0xff] %vm1037, %v987
        %1040 = vst.msk [vmem:[#allocation2 + $0x10] sm:$0xff] %vm1037, %v988
        %1041 = vst.msk [vmem:[#allocation2 + $0x18] sm:$0xff] %vm1037, %v989
        %1042 = vst.msk [vmem:[#allocation2 + $0x20] sm:$0xff] %vm1037, %v990
        %1043 = vst.msk [vmem:[#allocation2 + $0x28] sm:$0xff] %vm1037, %v991
        %1044 = vst.msk [vmem:[#allocation2 + $0x30] sm:$0xff] %vm1037, %v992
        %1045 = vst.msk [vmem:[#allocation2 + $0x38] sm:$0xff] %vm1037, %v993
        %1046 = vst.msk [vmem:[#allocation2 + $0x40] sm:$0xff] %vm1037, %v994
        %1047 = vst.msk [vmem:[#allocation2 + $0x48] sm:$0xff] %vm1037, %v995
        %1048 = vst.msk [vmem:[#allocation2 + $0x50] sm:$0xff] %vm1037, %v996
        %1049 = vst.msk [vmem:[#allocation2 + $0x58] sm:$0xff] %vm1037, %v997
        %1050 = vst.msk [vmem:[#allocation2 + $0x60] sm:$0xff] %vm1037, %v998
        %1051 = vst.msk [vmem:[#allocation2 + $0x68] sm:$0xff] %vm1037, %v999
        %1052 = vst.msk [vmem:[#allocation2 + $0x70] sm:$0xff] %vm1037, %v1000
        %1053 = vst.msk [vmem:[#allocation2 + $0x78] sm:$0xff] %vm1037, %v1001
        %1054 = vst.msk [vmem:[#allocation2 + $0x80] sm:$0xff] %vm1037, %v1002
        %1055 = vst.msk [vmem:[#allocation2 + $0x88] sm:$0xff] %vm1037, %v1003
        %1056 = vst.msk [vmem:[#allocation2 + $0x90] sm:$0xff] %vm1037, %v1004
        %1057 = vst.msk [vmem:[#allocation2 + $0x98] sm:$0xff] %vm1037, %v1005
        %1058 = vst.msk [vmem:[#allocation2 + $0xa0] sm:$0xff] %vm1037, %v1006
        %1059 = vst.msk [vmem:[#allocation2 + $0xa8] sm:$0xff] %vm1037, %v1007
        %1060 = vst.msk [vmem:[#allocation2 + $0xb0] sm:$0xff] %vm1037, %v1008
        %1061 = vst.msk [vmem:[#allocation2 + $0xb8] sm:$0xff] %vm1037, %v1009
        %1062 = vst.msk [vmem:[#allocation2 + $0xc0] sm:$0xff] %vm1037, %v1010
        %1063 = vst.msk [vmem:[#allocation2 + $0xc8] sm:$0xff] %vm1037, %v1011
        %1064 = vst.msk [vmem:[#allocation2 + $0xd0] sm:$0xff] %vm1037, %v1012
        %1065 = vst.msk [vmem:[#allocation2 + $0xd8] sm:$0xff] %vm1037, %v1013
        %1066 = vst.msk [vmem:[#allocation2 + $0xe0] sm:$0xff] %vm1037, %v1014
        %1067 = vst.msk [vmem:[#allocation2 + $0xe8] sm:$0xff] %vm1037, %v1015
        %1068 = vst.msk [vmem:[#allocation2 + $0xf0] sm:$0xff] %vm1037, %v1016
        %1069 = vst.msk [vmem:[#allocation2 + $0xf8] sm:$0xff] %vm1037, %v1017
        %1070 = vst.msk [vmem:[#allocation2 + $0x100] sm:$0xff] %vm1037, %v1018
        %1071 = vst.msk [vmem:[#allocation2 + $0x108] sm:$0xff] %vm1037, %v1019
        %1072 = vst.msk [vmem:[#allocation2 + $0x110] sm:$0xff] %vm1037, %v1020
        %1073 = vst.msk [vmem:[#allocation2 + $0x118] sm:$0xff] %vm1037, %v1021
        %1074 = vst.msk [vmem:[#allocation2 + $0x120] sm:$0xff] %vm1037, %v1022
        %1075 = vst.msk [vmem:[#allocation2 + $0x128] sm:$0xff] %vm1037, %v1023
        %1076 = vst.msk [vmem:[#allocation2 + $0x130] sm:$0xff] %vm1037, %v1024
        %1077 = vst.msk [vmem:[#allocation2 + $0x138] sm:$0xff] %vm1037, %v1025
        %1078 = vst.msk [vmem:[#allocation2 + $0x140] sm:$0xff] %vm1037, %v1026
        %1079 = vst.msk [vmem:[#allocation2 + $0x148] sm:$0xff] %vm1037, %v1027
        %1080 = vst.msk [vmem:[#allocation2 + $0x150] sm:$0xff] %vm1037, %v1028
        %1081 = vst.msk [vmem:[#allocation2 + $0x158] sm:$0xff] %vm1037, %v1029
        %1082 = vst.msk [vmem:[#allocation2 + $0x160] sm:$0xff] %vm1037, %v1030
        %1083 = vst.msk [vmem:[#allocation2 + $0x168] sm:$0xff] %vm1037, %v1031
        %1084 = vst.msk [vmem:[#allocation2 + $0x170] sm:$0xff] %vm1037, %v1032
        %1085 = vst.msk [vmem:[#allocation2 + $0x178] sm:$0xff] %vm1037, %v1033
        %1086 = vst.msk [vmem:[#allocation2 + $0x180] sm:$0xff] %vm1037, %v1034
        %1087 = vst.msk [vmem:[#allocation2 + $0x188] sm:$0xff] %vm1037, %v1035
        %1088 = vst.msk [vmem:[#allocation2 + $0x190] sm:$0xff] %vm1037, %v1036
        %v1089 = vld [vmem:[#allocation2] ss:$2 sm:$0xff]
        %s1090 = scalar_lea.vmem [#allocation2], 48
        %v1091 = vld [vmem:[%s1090] ss:$2 sm:$0xff]
        %s1092 = scalar_lea.vmem [#allocation2], 96
        %v1093 = vld [vmem:[%s1092] ss:$2 sm:$0xff]
        %s1094 = scalar_lea.vmem [#allocation2], 144
        %v1095 = vld [vmem:[%s1094] ss:$2 sm:$0xff]
        %s1096 = scalar_lea.vmem [#allocation2], 192
        %v1097 = vld [vmem:[%s1096] ss:$2 sm:$0xff]
        %s1098 = scalar_lea.vmem [#allocation2], 240
        %v1099 = vld [vmem:[%s1098] ss:$2 sm:$0xff]
        %s1100 = scalar_lea.vmem [#allocation2], 288
        %v1101 = vld [vmem:[%s1100] ss:$2 sm:$0xff]
        %s1102 = scalar_lea.vmem [#allocation2], 336
        %v1103 = vld [vmem:[%s1102] ss:$2 sm:$0xff]
        %v1104 = vld [vmem:[%s3] sm:$0x1]
        %v1106 = vperm.slane %v1104, 0
        %v1108 = vmul.f32 %v1089, %v1106
        %v1109 = vmul.f32 %v1091, %v1106
        %v1110 = vmul.f32 %v1093, %v1106
        %v1111 = vmul.f32 %v1095, %v1106
        %v1112 = vmul.f32 %v1097, %v1106
        %v1113 = vmul.f32 %v1099, %v1106
        %v1114 = vmul.f32 %v1101, %v1106
        %v1115 = vmul.f32 %v1103, %v1106
        %s1116 = scalar_lea.vmem [#allocation2], 1
        %v1117 = vld [vmem:[%s1116] ss:$2 sm:$0xff]
        %s1118 = scalar_lea.vmem [#allocation2], 49
        %v1119 = vld [vmem:[%s1118] ss:$2 sm:$0xff]
        %s1120 = scalar_lea.vmem [#allocation2], 97
        %v1121 = vld [vmem:[%s1120] ss:$2 sm:$0xff]
        %s1122 = scalar_lea.vmem [#allocation2], 145
        %v1123 = vld [vmem:[%s1122] ss:$2 sm:$0xff]
        %s1124 = scalar_lea.vmem [#allocation2], 193
        %v1125 = vld [vmem:[%s1124] ss:$2 sm:$0xff]
        %s1126 = scalar_lea.vmem [#allocation2], 241
        %v1127 = vld [vmem:[%s1126] ss:$2 sm:$0xff]
        %s1128 = scalar_lea.vmem [#allocation2], 289
        %v1129 = vld [vmem:[%s1128] ss:$2 sm:$0xff]
        %s1130 = scalar_lea.vmem [#allocation2], 337
        %v1131 = vld [vmem:[%s1130] ss:$2 sm:$0xff]
        %s1132 = scalar_lea.vmem %s3, 1
        %v1133 = vld [vmem:[%s1132] sm:$0x1]
        %v1135 = vperm.slane %v1133, 0
        %v1137 = vmul.f32 %v1117, %v1135
        %v1138 = vmul.f32 %v1119, %v1135
        %v1139 = vmul.f32 %v1121, %v1135
        %v1140 = vmul.f32 %v1123, %v1135
        %v1141 = vmul.f32 %v1125, %v1135
        %v1142 = vmul.f32 %v1127, %v1135
        %v1143 = vmul.f32 %v1129, %v1135
        %v1144 = vmul.f32 %v1131, %v1135
        %v1145 = vadd.f32 %v1108, %v1137
        %v1146 = vadd.f32 %v1109, %v1138
        %v1147 = vadd.f32 %v1110, %v1139
        %v1148 = vadd.f32 %v1111, %v1140
        %v1149 = vadd.f32 %v1112, %v1141
        %v1150 = vadd.f32 %v1113, %v1142
        %v1151 = vadd.f32 %v1114, %v1143
        %v1152 = vadd.f32 %v1115, %v1144
        %s1153 = scalar_lea.vmem [#allocation2], 2
        %v1154 = vld [vmem:[%s1153] ss:$2 sm:$0xff]
        %s1155 = scalar_lea.vmem [#allocation2], 50
        %v1156 = vld [vmem:[%s1155] ss:$2 sm:$0xff]
        %s1157 = scalar_lea.vmem [#allocation2], 98
        %v1158 = vld [vmem:[%s1157] ss:$2 sm:$0xff]
        %s1159 = scalar_lea.vmem [#allocation2], 146
        %v1160 = vld [vmem:[%s1159] ss:$2 sm:$0xff]
        %s1161 = scalar_lea.vmem [#allocation2], 194
        %v1162 = vld [vmem:[%s1161] ss:$2 sm:$0xff]
        %s1163 = scalar_lea.vmem [#allocation2], 242
        %v1164 = vld [vmem:[%s1163] ss:$2 sm:$0xff]
        %s1165 = scalar_lea.vmem [#allocation2], 290
        %v1166 = vld [vmem:[%s1165] ss:$2 sm:$0xff]
        %s1167 = scalar_lea.vmem [#allocation2], 338
        %v1168 = vld [vmem:[%s1167] ss:$2 sm:$0xff]
        %s1169 = scalar_lea.vmem %s3, 2
        %v1170 = vld [vmem:[%s1169] sm:$0x1]
        %v1172 = vperm.slane %v1170, 0
        %v1174 = vmul.f32 %v1154, %v1172
        %v1175 = vmul.f32 %v1156, %v1172
        %v1176 = vmul.f32 %v1158, %v1172
        %v1177 = vmul.f32 %v1160, %v1172
        %v1178 = vmul.f32 %v1162, %v1172
        %v1179 = vmul.f32 %v1164, %v1172
        %v1180 = vmul.f32 %v1166, %v1172
        %v1181 = vmul.f32 %v1168, %v1172
        %s1182 = scalar_lea.vmem [#allocation2], 24
        %v1183 = vld [vmem:[%s1182] ss:$2 sm:$0xff]
        %s1184 = scalar_lea.vmem %s1182, 48 [#allocation2]
        %v1185 = vld [vmem:[%s1184] ss:$2 sm:$0xff]
        %s1186 = scalar_lea.vmem %s1182, 96 [#allocation2]
        %v1187 = vld [vmem:[%s1186] ss:$2 sm:$0xff]
        %s1188 = scalar_lea.vmem %s1182, 144 [#allocation2]
        %v1189 = vld [vmem:[%s1188] ss:$2 sm:$0xff]
        %s1190 = scalar_lea.vmem %s1182, 192 [#allocation2]
        %v1191 = vld [vmem:[%s1190] ss:$2 sm:$0xff]
        %s1192 = scalar_lea.vmem %s1182, 240 [#allocation2]
        %v1193 = vld [vmem:[%s1192] ss:$2 sm:$0xff]
        %s1194 = scalar_lea.vmem %s1182, 288 [#allocation2]
        %v1195 = vld [vmem:[%s1194] ss:$2 sm:$0xff]
        %s1196 = scalar_lea.vmem %s1182, 336 [#allocation2]
        %v1197 = vld [vmem:[%s1196] ss:$2 sm:$0xff]
        %s1198 = scalar_lea.vmem %s3, 3
        %v1199 = vld [vmem:[%s1198] sm:$0x1]
        %v1201 = vperm.slane %v1199, 0
        %v1203 = vmul.f32 %v1183, %v1201
        %v1204 = vmul.f32 %v1185, %v1201
        %v1205 = vmul.f32 %v1187, %v1201
        %v1206 = vmul.f32 %v1189, %v1201
        %v1207 = vmul.f32 %v1191, %v1201
        %v1208 = vmul.f32 %v1193, %v1201
        %v1209 = vmul.f32 %v1195, %v1201
        %v1210 = vmul.f32 %v1197, %v1201
        %v1211 = vadd.f32 %v1174, %v1203
        %v1212 = vadd.f32 %v1175, %v1204
        %v1213 = vadd.f32 %v1176, %v1205
        %v1214 = vadd.f32 %v1177, %v1206
        %v1215 = vadd.f32 %v1178, %v1207
        %v1216 = vadd.f32 %v1179, %v1208
        %v1217 = vadd.f32 %v1180, %v1209
        %v1218 = vadd.f32 %v1181, %v1210
        %s1219 = scalar_lea.vmem %s1182, 1 [#allocation2]
        %v1220 = vld [vmem:[%s1219] ss:$2 sm:$0xff]
        %s1221 = scalar_lea.vmem %s1182, 49 [#allocation2]
        %v1222 = vld [vmem:[%s1221] ss:$2 sm:$0xff]
        %s1223 = scalar_lea.vmem %s1182, 97 [#allocation2]
        %v1224 = vld [vmem:[%s1223] ss:$2 sm:$0xff]
        %s1225 = scalar_lea.vmem %s1182, 145 [#allocation2]
        %v1226 = vld [vmem:[%s1225] ss:$2 sm:$0xff]
        %s1227 = scalar_lea.vmem %s1182, 193 [#allocation2]
        %v1228 = vld [vmem:[%s1227] ss:$2 sm:$0xff]
        %s1229 = scalar_lea.vmem %s1182, 241 [#allocation2]
        %v1230 = vld [vmem:[%s1229] ss:$2 sm:$0xff]
        %s1231 = scalar_lea.vmem %s1182, 289 [#allocation2]
        %v1232 = vld [vmem:[%s1231] ss:$2 sm:$0xff]
        %s1233 = scalar_lea.vmem %s1182, 337 [#allocation2]
        %v1234 = vld [vmem:[%s1233] ss:$2 sm:$0xff]
        %s1235 = scalar_lea.vmem %s3, 4
        %v1236 = vld [vmem:[%s1235] sm:$0x1]
        %v1238 = vperm.slane %v1236, 0
        %v1240 = vmul.f32 %v1220, %v1238
        %v1241 = vmul.f32 %v1222, %v1238
        %v1242 = vmul.f32 %v1224, %v1238
        %v1243 = vmul.f32 %v1226, %v1238
        %v1244 = vmul.f32 %v1228, %v1238
        %v1245 = vmul.f32 %v1230, %v1238
        %v1246 = vmul.f32 %v1232, %v1238
        %v1247 = vmul.f32 %v1234, %v1238
        %s1248 = scalar_lea.vmem %s1182, 2 [#allocation2]
        %v1249 = vld [vmem:[%s1248] ss:$2 sm:$0xff]
        %s1250 = scalar_lea.vmem %s1182, 50 [#allocation2]
        %v1251 = vld [vmem:[%s1250] ss:$2 sm:$0xff]
        %s1252 = scalar_lea.vmem %s1182, 98 [#allocation2]
        %v1253 = vld [vmem:[%s1252] ss:$2 sm:$0xff]
        %s1254 = scalar_lea.vmem %s1182, 146 [#allocation2]
        %v1255 = vld [vmem:[%s1254] ss:$2 sm:$0xff]
        %s1256 = scalar_lea.vmem %s1182, 194 [#allocation2]
        %v1257 = vld [vmem:[%s1256] ss:$2 sm:$0xff]
        %s1258 = scalar_lea.vmem %s1182, 242 [#allocation2]
        %v1259 = vld [vmem:[%s1258] ss:$2 sm:$0xff]
        %s1260 = scalar_lea.vmem %s1182, 290 [#allocation2]
        %v1261 = vld [vmem:[%s1260] ss:$2 sm:$0xff]
        %s1262 = scalar_lea.vmem %s1182, 338 [#allocation2]
        %v1263 = vld [vmem:[%s1262] ss:$2 sm:$0xff]
        %s1264 = scalar_lea.vmem %s3, 5
        %v1265 = vld [vmem:[%s1264] sm:$0x1]
        %v1267 = vperm.slane %v1265, 0
        %v1269 = vmul.f32 %v1249, %v1267
        %v1270 = vmul.f32 %v1251, %v1267
        %v1271 = vmul.f32 %v1253, %v1267
        %v1272 = vmul.f32 %v1255, %v1267
        %v1273 = vmul.f32 %v1257, %v1267
        %v1274 = vmul.f32 %v1259, %v1267
        %v1275 = vmul.f32 %v1261, %v1267
        %v1276 = vmul.f32 %v1263, %v1267
        %v1277 = vadd.f32 %v1240, %v1269
        %v1278 = vadd.f32 %v1241, %v1270
        %v1279 = vadd.f32 %v1242, %v1271
        %v1280 = vadd.f32 %v1243, %v1272
        %v1281 = vadd.f32 %v1244, %v1273
        %v1282 = vadd.f32 %v1245, %v1274
        %v1283 = vadd.f32 %v1246, %v1275
        %v1284 = vadd.f32 %v1247, %v1276
        %s1285 = scalar_lea.vmem [#allocation2], 48
        %v1286 = vld [vmem:[%s1285] ss:$2 sm:$0xff]
        %s1287 = scalar_lea.vmem %s1285, 48 [#allocation2]
        %v1288 = vld [vmem:[%s1287] ss:$2 sm:$0xff]
        %s1289 = scalar_lea.vmem %s1285, 96 [#allocation2]
        %v1290 = vld [vmem:[%s1289] ss:$2 sm:$0xff]
        %s1291 = scalar_lea.vmem %s1285, 144 [#allocation2]
        %v1292 = vld [vmem:[%s1291] ss:$2 sm:$0xff]
        %s1293 = scalar_lea.vmem %s1285, 192 [#allocation2]
        %v1294 = vld [vmem:[%s1293] ss:$2 sm:$0xff]
        %s1295 = scalar_lea.vmem %s1285, 240 [#allocation2]
        %v1296 = vld [vmem:[%s1295] ss:$2 sm:$0xff]
        %s1297 = scalar_lea.vmem %s1285, 288 [#allocation2]
        %v1298 = vld [vmem:[%s1297] ss:$2 sm:$0xff]
        %s1299 = scalar_lea.vmem %s1285, 336 [#allocation2]
        %v1300 = vld [vmem:[%s1299] ss:$2 sm:$0xff]
        %s1301 = scalar_lea.vmem %s3, 6
        %v1302 = vld [vmem:[%s1301] sm:$0x1]
        %v1304 = vperm.slane %v1302, 0
        %v1306 = vmul.f32 %v1286, %v1304
        %v1307 = vmul.f32 %v1288, %v1304
        %v1308 = vmul.f32 %v1290, %v1304
        %v1309 = vmul.f32 %v1292, %v1304
        %v1310 = vmul.f32 %v1294, %v1304
        %v1311 = vmul.f32 %v1296, %v1304
        %v1312 = vmul.f32 %v1298, %v1304
        %v1313 = vmul.f32 %v1300, %v1304
        %s1314 = scalar_lea.vmem %s1285, 1 [#allocation2]
        %v1315 = vld [vmem:[%s1314] ss:$2 sm:$0xff]
        %s1316 = scalar_lea.vmem %s1285, 49 [#allocation2]
        %v1317 = vld [vmem:[%s1316] ss:$2 sm:$0xff]
        %s1318 = scalar_lea.vmem %s1285, 97 [#allocation2]
        %v1319 = vld [vmem:[%s1318] ss:$2 sm:$0xff]
        %s1320 = scalar_lea.vmem %s1285, 145 [#allocation2]
        %v1321 = vld [vmem:[%s1320] ss:$2 sm:$0xff]
        %s1322 = scalar_lea.vmem %s1285, 193 [#allocation2]
        %v1323 = vld [vmem:[%s1322] ss:$2 sm:$0xff]
        %s1324 = scalar_lea.vmem %s1285, 241 [#allocation2]
        %v1325 = vld [vmem:[%s1324] ss:$2 sm:$0xff]
        %s1326 = scalar_lea.vmem %s1285, 289 [#allocation2]
        %v1327 = vld [vmem:[%s1326] ss:$2 sm:$0xff]
        %s1328 = scalar_lea.vmem %s1285, 337 [#allocation2]
        %v1329 = vld [vmem:[%s1328] ss:$2 sm:$0xff]
        %s1330 = scalar_lea.vmem %s3, 7
        %v1331 = vld [vmem:[%s1330] sm:$0x1]
        %v1333 = vperm.slane %v1331, 0
        %v1335 = vmul.f32 %v1315, %v1333
        %v1336 = vmul.f32 %v1317, %v1333
        %v1337 = vmul.f32 %v1319, %v1333
        %v1338 = vmul.f32 %v1321, %v1333
        %v1339 = vmul.f32 %v1323, %v1333
        %v1340 = vmul.f32 %v1325, %v1333
        %v1341 = vmul.f32 %v1327, %v1333
        %v1342 = vmul.f32 %v1329, %v1333
        %v1343 = vadd.f32 %v1306, %v1335
        %v1344 = vadd.f32 %v1307, %v1336
        %v1345 = vadd.f32 %v1308, %v1337
        %v1346 = vadd.f32 %v1309, %v1338
        %v1347 = vadd.f32 %v1310, %v1339
        %v1348 = vadd.f32 %v1311, %v1340
        %v1349 = vadd.f32 %v1312, %v1341
        %v1350 = vadd.f32 %v1313, %v1342
        %v1351 = vadd.f32 %v1145, %v1211
        %v1352 = vadd.f32 %v1146, %v1212
        %v1353 = vadd.f32 %v1147, %v1213
        %v1354 = vadd.f32 %v1148, %v1214
        %v1355 = vadd.f32 %v1149, %v1215
        %v1356 = vadd.f32 %v1150, %v1216
        %v1357 = vadd.f32 %v1151, %v1217
        %v1358 = vadd.f32 %v1152, %v1218
        %v1359 = vadd.f32 %v1277, %v1343
        %v1360 = vadd.f32 %v1278, %v1344
        %v1361 = vadd.f32 %v1279, %v1345
        %v1362 = vadd.f32 %v1280, %v1346
        %v1363 = vadd.f32 %v1281, %v1347
        %v1364 = vadd.f32 %v1282, %v1348
        %v1365 = vadd.f32 %v1283, %v1349
        %v1366 = vadd.f32 %v1284, %v1350
        %v1367 = vadd.f32 %v1351, %v1359
        %v1368 = vadd.f32 %v1352, %v1360
        %v1369 = vadd.f32 %v1353, %v1361
        %v1370 = vadd.f32 %v1354, %v1362
        %v1371 = vadd.f32 %v1355, %v1363
        %v1372 = vadd.f32 %v1356, %v1364
        %v1373 = vadd.f32 %v1357, %v1365
        %v1374 = vadd.f32 %v1358, %v1366
        %s1375 = scalar_lea.vmem %s1285, 2 [#allocation2]
        %v1376 = vld [vmem:[%s1375] ss:$2 sm:$0xff]
        %s1377 = scalar_lea.vmem %s1285, 50 [#allocation2]
        %v1378 = vld [vmem:[%s1377] ss:$2 sm:$0xff]
        %s1379 = scalar_lea.vmem %s1285, 98 [#allocation2]
        %v1380 = vld [vmem:[%s1379] ss:$2 sm:$0xff]
        %s1381 = scalar_lea.vmem %s1285, 146 [#allocation2]
        %v1382 = vld [vmem:[%s1381] ss:$2 sm:$0xff]
        %s1383 = scalar_lea.vmem %s1285, 194 [#allocation2]
        %v1384 = vld [vmem:[%s1383] ss:$2 sm:$0xff]
        %s1385 = scalar_lea.vmem %s1285, 242 [#allocation2]
        %v1386 = vld [vmem:[%s1385] ss:$2 sm:$0xff]
        %s1387 = scalar_lea.vmem %s1285, 290 [#allocation2]
        %v1388 = vld [vmem:[%s1387] ss:$2 sm:$0xff]
        %s1389 = scalar_lea.vmem %s1285, 338 [#allocation2]
        %v1390 = vld [vmem:[%s1389] ss:$2 sm:$0xff]
        %s1391 = scalar_lea.vmem %s3, 8
        %v1392 = vld [vmem:[%s1391] sm:$0x1]
        %v1394 = vperm.slane %v1392, 0
        %v1396 = vmul.f32 %v1376, %v1394
        %v1397 = vmul.f32 %v1378, %v1394
        %v1398 = vmul.f32 %v1380, %v1394
        %v1399 = vmul.f32 %v1382, %v1394
        %v1400 = vmul.f32 %v1384, %v1394
        %v1401 = vmul.f32 %v1386, %v1394
        %v1402 = vmul.f32 %v1388, %v1394
        %v1403 = vmul.f32 %v1390, %v1394
        %v1404 = vadd.f32 %v1367, %v1396
        %v1405 = vadd.f32 %v1368, %v1397
        %v1406 = vadd.f32 %v1369, %v1398
        %v1407 = vadd.f32 %v1370, %v1399
        %v1408 = vadd.f32 %v1371, %v1400
        %v1409 = vadd.f32 %v1372, %v1401
        %v1410 = vadd.f32 %v1373, %v1402
        %v1411 = vadd.f32 %v1374, %v1403
        %v1412 = vld [vmem:[%s4] sm:$0x1]
        %v1414 = vperm.slane %v1412, 0
        %v1416 = vadd.f32 %v1404, %v1414
        %v1417 = vadd.f32 %v1405, %v1414
        %v1418 = vadd.f32 %v1406, %v1414
        %v1419 = vadd.f32 %v1407, %v1414
        %v1420 = vadd.f32 %v1408, %v1414
        %v1421 = vadd.f32 %v1409, %v1414
        %v1422 = vadd.f32 %v1410, %v1414
        %v1423 = vadd.f32 %v1411, %v1414
        %v1424 = vmax.f32 %v1416, 0.0
        %v1425 = vmax.f32 %v1417, 0.0
        %v1426 = vmax.f32 %v1418, 0.0
        %v1427 = vmax.f32 %v1419, 0.0
        %v1428 = vmax.f32 %v1420, 0.0
        %v1429 = vmax.f32 %v1421, 0.0
        %v1430 = vmax.f32 %v1422, 0.0
        %v1431 = vmax.f32 %v1423, 0.0
        %v1432 = vmin.f32 %v1424, 6.0
        %v1433 = vmin.f32 %v1425, 6.0
        %v1434 = vmin.f32 %v1426, 6.0
        %v1435 = vmin.f32 %v1427, 6.0
        %v1436 = vmin.f32 %v1428, 6.0
        %v1437 = vmin.f32 %v1429, 6.0
        %v1438 = vmin.f32 %v1430, 6.0
        %v1439 = vmin.f32 %v1431, 6.0
        %v1440 = vpack.c.bf16 %v1433, %v1432
        %v1441 = vpack.c.bf16 %v1435, %v1434
        %v1442 = vpack.c.bf16 %v1437, %v1436
        %v1443 = vpack.c.bf16 %v1439, %v1438
        %v1444 = vld [vmem:[%s5] sm:$0xf]
        %v1445 = vld [vmem:[%s5 + $0x4] sm:$0xf]
        %v1446 = vld [vmem:[%s5 + $0x8] sm:$0xf]
        %v1447 = vld [vmem:[%s5 + $0xc] sm:$0xf]
        %v1448 = vld [vmem:[%s5 + $0x10] sm:$0xf]
        %v1449 = vld [vmem:[%s5 + $0x14] sm:$0xf]
        %v1450 = vld [vmem:[%s5 + $0x18] sm:$0xf]
        %v1451 = vld [vmem:[%s5 + $0x1c] sm:$0xf]
        %v1452 = vld [vmem:[%s5 + $0x20] sm:$0xf]
        %v1453 = vld [vmem:[%s5 + $0x24] sm:$0xf]
        %v1454 = vld [vmem:[%s5 + $0x28] sm:$0xf]
        %v1455 = vld [vmem:[%s5 + $0x2c] sm:$0xf]
        %v1456 = vld [vmem:[%s6] sm:$0x1]
        %v1458 = vperm.slane %v1456, 0
        %v1472 = vunpack.c.l.b16 %v1444
        %v1473 = vunpack.c.l.b16 %v1445
        %v1474 = vunpack.c.l.b16 %v1446
        %v1475 = vunpack.c.l.b16 %v1447
        %v1476 = vunpack.c.l.b16 %v1448
        %v1477 = vunpack.c.l.b16 %v1449
        %v1478 = vunpack.c.l.b16 %v1450
        %v1479 = vunpack.c.l.b16 %v1451
        %v1480 = vunpack.c.l.b16 %v1452
        %v1481 = vunpack.c.l.b16 %v1453
        %v1482 = vunpack.c.l.b16 %v1454
        %v1483 = vunpack.c.l.b16 %v1455
        %v1484 = vpack.c.b16 %v1473, %v1472
        %v1485 = vpack.c.b16 %v1475, %v1474
        %v1486 = vpack.c.b16 %v1477, %v1476
        %v1487 = vpack.c.b16 %v1479, %v1478
        %v1488 = vpack.c.b16 %v1481, %v1480
        %v1489 = vpack.c.b16 %v1483, %v1482
        %v1497 = vsel %vm1037, %v1440, 0
        %v1500 = vsel %vm1037, %v1441, 0
        %v1503 = vsel %vm1037, %v1442, 0
        %v1506 = vsel %vm1037, %v1443, 0
        %1508 = vmatpush.bf16.msra.mxu0 0
        %1509 = vmatpush.bf16.msra.mxu0 0
        %1510 = vmatpush.bf16.msra.mxu0 %v1489
        %1511 = vmatpush.bf16.msra.mxu0 %v1488
        %1512 = vmatpush.bf16.msra.mxu0 %v1487
        %1513 = vmatpush.bf16.msra.mxu0 %v1486
        %1514 = vmatpush.bf16.msra.mxu0 %v1485
        %1515 = vmatpush.bf16.msra.mxu0 %v1484
        %1516 = vmatmul.bf16.gmra.mxu0 %v1497
        %v1517 = vpop.f32.mrf.mxu0
        %v1518 = vadd.f32 %v1458, %v1517
        %v1519 = vpop.f32.mrf.mxu0
        %v1520 = vadd.f32 %v1458, %v1519
        %1521 = vmatmul.bf16.gmra.mxu0 %v1500
        %v1522 = vpop.f32.mrf.mxu0
        %v1523 = vadd.f32 %v1458, %v1522
        %v1524 = vpop.f32.mrf.mxu0
        %v1525 = vadd.f32 %v1458, %v1524
        %1526 = vmatmul.bf16.gmra.mxu0 %v1503
        %v1527 = vpop.f32.mrf.mxu0
        %v1528 = vadd.f32 %v1458, %v1527
        %v1529 = vpop.f32.mrf.mxu0
        %v1530 = vadd.f32 %v1458, %v1529
        %1531 = vmatmul.bf16.gmra.mxu0 %v1506
        %v1532 = vpop.f32.mrf.mxu0
        %v1533 = vadd.f32 %v1458, %v1532
        %v1534 = vpop.f32.mrf.mxu0
        %v1535 = vadd.f32 %v1458, %v1534
        %1536 = vdwg.mxu0
        %vm1537 = vcmask 195584
        %1538 = vst.msk [vmem:[%s285] sm:$0xff] %vm1537, %v1518
        %1539 = vst.msk [vmem:[%s285 + $0x8] sm:$0xff] %vm1537, %v1520
        %1540 = vst.msk [vmem:[%s285 + $0x10] sm:$0xff] %vm1537, %v1523
        %1541 = vst.msk [vmem:[%s285 + $0x18] sm:$0xff] %vm1537, %v1525
        %1542 = vst.msk [vmem:[%s285 + $0x20] sm:$0xff] %vm1537, %v1528
        %1543 = vst.msk [vmem:[%s285 + $0x28] sm:$0xff] %vm1537, %v1530
        %1544 = vst.msk [vmem:[%s285 + $0x30] sm:$0xff] %vm1537, %v1533
        %1545 = vst.msk [vmem:[%s285 + $0x38] sm:$0xff] %vm1537, %v1535
        %s1546 = sand.u32 %s195, 1
        %s1547 = scalar_lea.sflag [#allocation4], %s1546
        %s1548 = sand.u32 %s195, 1
        %s1549 = smul.addr %s1548, 64
        %s1550 = scalar_lea.vmem [#allocation3], %s1549
        // Predicated region
        $region49: #{fwd.3} parent=47 // pred_check
          %p1551 = pneg %p205
        $region50: #{fwd.3} parent=47 // pred_check_branch
          %1553 = sbr.rel (%p1551) target = $region52
        $region51: #{fwd.3} parent=47 // pred_region
          %s1554 = smul.u32 8, %s26
          %1556 = vsyncadd %s1547, 0
          %s1557 = smul.addr %s25, 8
          %s1558 = sadd.s32 %s1554, %s1557
          %s1559 = smul.addr %s1558, 8
          %s1560 = scalar_lea.hbm %s7, %s1559
          %s1561 = sshll.u32 %s1550, 4
          %s1562 = int_to_ptr.vmem [resolvable:$true] %s1561
          %s1563 = sshll.u32 %s1560, 4
          %s1564 = int_to_ptr.hbm [resolvable:$true] %s1563
          %1569 = dma.vmem_to_hbm [thread:$0]  %s1562, 1024, %s1564, %s1547, 128, 128, 8
        $region52: #{fwd.3} parent=47 // pred_fallthru
          _
      $region48: #{fwd.3} parent=5 // pred_fallthru
        _
      %p1570 = scmp.le.s32.totalorder 2, %s16
      // Predicated region
      $region53: #{fwd.3} parent=5 // pred_check
        %p1571 = pneg %p1570
      $region54: #{fwd.3} parent=5 // pred_check_branch
        %1573 = sbr.rel (%p1571) target = $region56
      $region55: #{fwd.3} parent=5 // pred_region
        %s1574 = ssub.s32 %s16, 2
        // Predicated region
        $region57: #{fwd.3} parent=55 // pred_check
          %p1575 = pneg %p211
        $region58: #{fwd.3} parent=55 // pred_check_branch
          %1577 = sbr.rel (%p1575) target = $region60
        $region59: #{fwd.3} parent=55 // pred_region
          %s1578 = sand.u32 %s196, 1
          %s1579 = scalar_lea.sflag [#allocation4], %s1578
          %s1580 = sand.u32 %s196, 1
          %s1581 = smul.addr %s1580, 64
          %s1582 = scalar_lea.vmem [#allocation3], %s1581
          %1584 = dma.done %s1579, 1024
        $region60: #{fwd.3} parent=55 // pred_fallthru
          _
      $region56: #{fwd.3} parent=5 // pred_fallthru
        _
    $region6: #{fwd.3} parent=1 // loop_footer
      %s20 = sadd.s32 1, %s16
    $region7: #{fwd.3} parent=1 // loop_footer_branch
      %15 = sbr.rel target = $region3
    $region8: #{fwd.3} parent=1 // loop_exit
      _
    %1585 = vsyncpa [#allocation4], 1
    %s1586 = scalar_lea.sflag [#allocation4], 1
    %1587 = vsyncpa %s1586, 1

</llo_original>
